<compile_context>
chip_gen: v5e
topology: v5e:2x2
jax: 0.10.0
libtpu: 0.0.40
codegen_flags: <defaults>
</compile_context>

<pallas_src>
import jax
import jax.numpy as jnp
from jax import lax
from jax.experimental import pallas as pl
from jax.experimental.pallas import tpu as pltpu

BN_EPS = 1e-5
LANES = 128              # padded lane width: fc1 out (32) and fc2 out (10) -> 128
VMEM_LIMIT = 48 << 20    # safe on v5e/v6e (128 MiB) and v7x (64 MiB physical)
VMEM_USABLE = 40 << 20   # budget used when sizing batch tiles (headroom vs VMEM_LIMIT)


def _fused_pool_fc_kernel(x_ref, w1_ref, b1_ref, w2_ref, b2_ref, o_ref):
    """Pool folded into fc1.  x_ref: (TB, C*S) lane-dense; w1_ref: (C*S, 128) = repeat(w1/S)."""
    h = jnp.dot(x_ref[...], w1_ref[...], preferred_element_type=jnp.float32) + b1_ref[...]
    h = jnp.maximum(h, 0.0)                                            # fc1 + ReLU, (TB, 128)
    z = jnp.dot(h, w2_ref[...], preferred_element_type=jnp.float32) + b2_ref[...]
    o_ref[...] = z.astype(o_ref.dtype)                                 # (TB, 128) lane-dense store


def _pool_fc_kernel(x_ref, w1_ref, b1_ref, w2_ref, b2_ref, o_ref):
    """In-kernel pool (v7x large-S path).  x_ref: (TB, S, C) channels-on-lanes;
    w1_ref: (C, 128) pre-scaled by 1/S so a plain sum implements the average pool."""
    feat = jnp.sum(x_ref[...].astype(jnp.float32), axis=1)             # (TB, C), sublane reduce
    h = jnp.dot(feat, w1_ref[...], preferred_element_type=jnp.float32) + b1_ref[...]
    h = jnp.maximum(h, 0.0)
    z = jnp.dot(h, w2_ref[...], preferred_element_type=jnp.float32) + b2_ref[...]
    o_ref[...] = z.astype(o_ref.dtype)


def _pick_batch_tile(batch, row_bytes, budget_bytes):
    """Largest divisor TB of batch with (TB % 8 == 0 or TB == batch) whose x block fits
    budget_bytes.  Prefers TB < batch (>= 2 grid steps) so v7x's two cores both get work."""
    cands = [tb for tb in range(1, batch + 1)
             if batch % tb == 0 and (tb % 8 == 0 or tb == batch)]
    within = [tb for tb in cands if tb * row_bytes <= budget_bytes]
    if not within:
        return min(cands)                      # smallest legal tile; budget is best-effort
    multi = [tb for tb in within if tb < batch]
    return max(multi) if multi else max(within)


def net_f_head(x_nchw, w1, b1, w2, b2, gamma, beta, *, w1_rep_limit_bytes=12 << 20):
    """x_nchw: (B, 1024, H, W) — the GoogLeNet inception5b output (any float dtype)."""
    B, C, H, W = x_nchw.shape
    assert C == 1024, "fc1 expects 1024 input channels"
    S = H * W
    dt_bytes = jnp.dtype(x_nchw.dtype).itemsize

    # Lane-dense, zero-padded head parameters (tiny, built once). Padded rows/cols are zero
    # so the padded matmuls are numerically identical to the 32-/10-wide ones.
    w1_pad = jnp.zeros((C, LANES), jnp.float32).at[:, :w1.shape[0]].set(w1.T)        # (1024, 128)
    b1_pad = jnp.zeros((1, LANES), jnp.float32).at[0, :b1.shape[0]].set(b1)
    w2_pad = jnp.zeros((LANES, LANES), jnp.float32).at[:w2.shape[1], :w2.shape[0]].set(w2.T)
    b2_pad = jnp.zeros((1, LANES), jnp.float32).at[0, :b2.shape[0]].set(b2)

    w1_rep_bytes = C * S * LANES * 4
    use_fused = w1_rep_bytes <= w1_rep_limit_bytes

    if use_fused:
        # Path A: pool-as-matmul on a (B, C*S) view (free reshape, fully lane-dense DMAs).
        x_in = x_nchw.reshape(B, C * S)
        w1_in = jnp.repeat(w1_pad / float(S), S, axis=0)                # (C*S, 128), 1/S baked in
        kernel = _fused_pool_fc_kernel
        row_bytes = C * S * dt_bytes
        fixed = 2 * w1_rep_bytes + 2 * (LANES * LANES * 4)              # double-buffered weights
        x_spec = pl.BlockSpec((None, C * S), lambda i: (i, 0))
        x_spec = pl.BlockSpec  # placeholder replaced below (needs TB)
        w1_spec = pl.BlockSpec((C * S, LANES), lambda i: (0, 0))
        make_x_spec = lambda tb: pl.BlockSpec((tb, C * S), lambda i: (i, 0))
    else:
        # Path B (large S / v7x 64 MiB VMEM): one wrapper transpose so channels sit on lanes;
        # keeps the 512 KiB fc1 weight and the lane-dense matmul layout.
        x_in = jnp.transpose(x_nchw.reshape(B, C, S), (0, 2, 1))        # (B, S, C)
        w1_in = w1_pad / float(S)                                       # 1/S baked in -> sum pool
        kernel = _pool_fc_kernel
        row_bytes = S * C * dt_bytes
        fixed = 2 * (C * LANES * 4) + 2 * (LANES * LANES * 4)
        w1_spec = pl.BlockSpec((C, LANES), lambda i: (0, 0))
        make_x_spec = lambda tb: pl.BlockSpec((tb, S, C), lambda i: (i, 0, 0))

    x_budget = max(1 << 20, (VMEM_USABLE - fixed) // 2)                 # per x buffer (2 bufs)
    TB = _pick_batch_tile(B, row_bytes, x_budget)
    grid = (B // TB,)

    z_pad = pl.pallas_call(
        kernel,
        out_shape=jax.ShapeDtypeStruct((B, LANES), jnp.float32),
        grid=grid,
        in_specs=[
            make_x_spec(TB),
            w1_spec,
            pl.BlockSpec((1, LANES), lambda i: (0, 0)),
            pl.BlockSpec((LANES, LANES), lambda i: (0, 0)),
            pl.BlockSpec((1, LANES), lambda i: (0, 0)),
        ],
        out_specs=pl.BlockSpec((TB, LANES), lambda i: (i, 0)),
        compiler_params=pltpu.CompilerParams(
            dimension_semantics=("parallel",),
            vmem_limit_bytes=VMEM_LIMIT,
        ),
    )(x_in, w1_in, b1_pad, w2_pad, b2_pad)

    # BatchNorm1d(10), training-mode (per-call batch) statistics.  O(B*10): plain jnp so XLA
    # fuses mean/var/normalize/slice into one tiny pass — no extra kernel launch or HBM trip.
    z = z_pad[:, :10]
    mu = jnp.mean(z, axis=0, keepdims=True)
    var = jnp.mean((z - mu) ** 2, axis=0, keepdims=True)
    return gamma * (z - mu) * lax.rsqrt(var + BN_EPS) + beta


def _reference(x_nchw, w1, b1, w2, b2, gamma, beta):
    B = x_nchw.shape[0]
    feat = jnp.mean(x_nchw.astype(jnp.float32), axis=(2, 3)).reshape(B, 1024)
    h = jnp.maximum(feat @ w1.T + b1, 0.0)
    z = h @ w2.T + b2
    mu = jnp.mean(z, axis=0, keepdims=True)
    var = jnp.mean((z - mu) ** 2, axis=0, keepdims=True)
    return gamma * (z - mu) / jnp.sqrt(var + BN_EPS) + beta


if __name__ == "__main__":
    key = jax.random.PRNGKey(0)
    k_x, k_w1, k_b1, k_w2, k_b2 = jax.random.split(key, 5)

    B, C, H, W = 8, 1024, 4, 4
    # Deterministic synthetic "inception5b output" feature map and head parameters.
    x = jax.random.normal(k_x, (B, C, H, W), dtype=jnp.float32)

    # fc1: Linear(1024, 32)  (PyTorch stores weight as (out, in))
    lim1 = 1.0 / jnp.sqrt(1024.0)
    w1 = jax.random.uniform(k_w1, (32, 1024), jnp.float32, -lim1, lim1)
    b1 = jax.random.uniform(k_b1, (32,), jnp.float32, -lim1, lim1)
    # fc2: Linear(32, 10)
    lim2 = 1.0 / jnp.sqrt(32.0)
    w2 = jax.random.uniform(k_w2, (10, 32), jnp.float32, -lim2, lim2)
    b2 = jax.random.uniform(k_b2, (10,), jnp.float32, -lim2, lim2)
    # BatchNorm1d(10): default affine init
    gamma = jnp.ones((10,), jnp.float32)
    beta = jnp.zeros((10,), jnp.float32)

    ref = _reference(x, w1, b1, w2, b2, gamma, beta)

    # Path A: pool folded into fc1 (lane-dense (B, C*S) view) — default for small S.
    out_a = jax.block_until_ready(net_f_head(x, w1, b1, w2, b2, gamma, beta))
    assert out_a.shape == (B, 10)
    assert jnp.allclose(out_a, ref, atol=1e-3, rtol=1e-3), (out_a, ref)

    # Path B: in-kernel pool on (B, S, C) — the large-S / v7x-VMEM fallback, forced here.
    out_b = jax.block_until_ready(
        net_f_head(x, w1, b1, w2, b2, gamma, beta, w1_rep_limit_bytes=0))
    assert out_b.shape == (B, 10)
    assert jnp.allclose(out_b, ref, atol=1e-3, rtol=1e-3), (out_b, ref)

    print("KERNEL_OK")
</pallas_src>

<mosaic_0001>
module attributes {stable_mosaic.version = 11 : i64} {
  func.func @_fused_pool_fc_kernel(%arg0: i32, %arg1: memref<8x16384xf32, #tpu.memory_space<vmem>>, %arg2: memref<16384x128xf32, #tpu.memory_space<vmem>>, %arg3: memref<1x128xf32, #tpu.memory_space<vmem>>, %arg4: memref<128x128xf32, #tpu.memory_space<vmem>>, %arg5: memref<1x128xf32, #tpu.memory_space<vmem>>, %arg6: memref<8x128xf32, #tpu.memory_space<vmem>>) attributes {dimension_semantics = [#tpu.dimension_semantics<parallel>], iteration_bounds = array<i64: 1>, scalar_prefetch = 0 : i64, scratch_operands = 0 : i64, tpu.core_type = #tpu.core_type<tc>, window_params = [{transform_indices = @transform_0, window_bounds = array<i64: 8, 16384>}, {pipeline_mode = #tpu.pipeline_mode<synchronous>, transform_indices = @transform_1, window_bounds = array<i64: 16384, 128>}, {pipeline_mode = #tpu.pipeline_mode<synchronous>, transform_indices = @transform_2, window_bounds = array<i64: 1, 128>}, {pipeline_mode = #tpu.pipeline_mode<synchronous>, transform_indices = @transform_3, window_bounds = array<i64: 128, 128>}, {pipeline_mode = #tpu.pipeline_mode<synchronous>, transform_indices = @transform_4, window_bounds = array<i64: 1, 128>}, {transform_indices = @transform_5, window_bounds = array<i64: 8, 128>}]} {
    %c0 = arith.constant 0 : index
    %c0_0 = arith.constant 0 : index
    %0 = vector.load %arg1[%c0, %c0_0] : memref<8x16384xf32, #tpu.memory_space<vmem>>, vector<8x16384xf32>
    %c0_1 = arith.constant 0 : index
    %c0_2 = arith.constant 0 : index
    %1 = vector.load %arg2[%c0_1, %c0_2] : memref<16384x128xf32, #tpu.memory_space<vmem>>, vector<16384x128xf32>
    %cst = arith.constant dense<0.000000e+00> : vector<8x128xf32>
    %2 = tpu.matmul %0, %1, %cst {dimension_numbers = #tpu.dot_dimension_numbers<[1], [0], [0], [1], [0, 0, 1, 1], [], []>} : vector<8x16384xf32>, vector<16384x128xf32>, vector<8x128xf32> -> vector<8x128xf32>
    %c0_3 = arith.constant 0 : index
    %c0_4 = arith.constant 0 : index
    %3 = vector.load %arg3[%c0_3, %c0_4] : memref<1x128xf32, #tpu.memory_space<vmem>>, vector<1x128xf32>
    %4 = vector.broadcast %3 : vector<1x128xf32> to vector<8x128xf32>
    %5 = arith.addf %2, %4 : vector<8x128xf32>
    %cst_5 = arith.constant 0.000000e+00 : f32
    %6 = vector.broadcast %cst_5 : f32 to vector<8x128xf32>
    %7 = arith.maximumf %5, %6 : vector<8x128xf32>
    %c0_6 = arith.constant 0 : index
    %c0_7 = arith.constant 0 : index
    %8 = vector.load %arg4[%c0_6, %c0_7] : memref<128x128xf32, #tpu.memory_space<vmem>>, vector<128x128xf32>
    %cst_8 = arith.constant dense<0.000000e+00> : vector<8x128xf32>
    %9 = tpu.matmul %7, %8, %cst_8 {dimension_numbers = #tpu.dot_dimension_numbers<[1], [0], [0], [1], [0, 0, 1, 1], [], []>} : vector<8x128xf32>, vector<128x128xf32>, vector<8x128xf32> -> vector<8x128xf32>
    %c0_9 = arith.constant 0 : index
    %c0_10 = arith.constant 0 : index
    %10 = vector.load %arg5[%c0_9, %c0_10] : memref<1x128xf32, #tpu.memory_space<vmem>>, vector<1x128xf32>
    %11 = vector.broadcast %10 : vector<1x128xf32> to vector<8x128xf32>
    %12 = arith.addf %9, %11 : vector<8x128xf32>
    %c0_11 = arith.constant 0 : index
    %c0_12 = arith.constant 0 : index
    %13 = vector.load %arg6[%c0_11, %c0_12] : memref<8x128xf32, #tpu.memory_space<vmem>>, vector<8x128xf32>
    tpu.vector_store %arg6[%c0_11, %c0_12], %12 {strides = array<i32>} : memref<8x128xf32, #tpu.memory_space<vmem>>, vector<8x128xf32>,
    return
  }
  func.func @transform_0(%arg0: i32) -> (i32, i32) {
    %c0_i32 = arith.constant 0 : i32
    %c0_i32_0 = arith.constant 0 : i32
    return %arg0, %c0_i32 : i32, i32
  }
  func.func @transform_1(%arg0: i32) -> (i32, i32) {
    %c0_i32 = arith.constant 0 : i32
    %c0_i32_0 = arith.constant 0 : i32
    %c0_i32_1 = arith.constant 0 : i32
    return %c0_i32, %c0_i32_0 : i32, i32
  }
  func.func @transform_2(%arg0: i32) -> (i32, i32) {
    %c0_i32 = arith.constant 0 : i32
    %c0_i32_0 = arith.constant 0 : i32
    %c0_i32_1 = arith.constant 0 : i32
    return %c0_i32, %c0_i32_0 : i32, i32
  }
  func.func @transform_3(%arg0: i32) -> (i32, i32) {
    %c0_i32 = arith.constant 0 : i32
    %c0_i32_0 = arith.constant 0 : i32
    %c0_i32_1 = arith.constant 0 : i32
    return %c0_i32, %c0_i32_0 : i32, i32
  }
  func.func @transform_4(%arg0: i32) -> (i32, i32) {
    %c0_i32 = arith.constant 0 : i32
    %c0_i32_0 = arith.constant 0 : i32
    %c0_i32_1 = arith.constant 0 : i32
    return %c0_i32, %c0_i32_0 : i32, i32
  }
  func.func @transform_5(%arg0: i32) -> (i32, i32) {
    %c0_i32 = arith.constant 0 : i32
    %c0_i32_0 = arith.constant 0 : i32
    return %arg0, %c0_i32 : i32, i32
  }
}

</mosaic_0001>

<llo_original>
// kernel: tpu_custom_call.1
$region0: #{tpu_custom_call.1}
  #allocation0 [shape = 'u32[]', space=smem, size = 0x4, offset = 0x4, fixed_abs, tag = 'smem constant byte address 0x4 - core index']
  #allocation1 [shape = 'u32[72,128]{1,0:T(1,128)}', space=vmem, size = 0x9000, scoped, tag = 'internal scratch']
  %s0 = inlined_call_operand.hbm [shape: f32[8,16384], index: 0, kind: input, shape index: {}]
  %s1 = inlined_call_operand.hbm [shape: f32[16384,128], index: 1, kind: input, shape index: {}]
  %s2 = inlined_call_operand.hbm [shape: f32[1,128], index: 2, kind: input, shape index: {}]
  %s3 = inlined_call_operand.hbm [shape: f32[128,128], index: 3, kind: input, shape index: {}]
  %s4 = inlined_call_operand.hbm [shape: f32[1,128], index: 4, kind: input, shape index: {}]
  %s5 = inlined_call_operand.hbm [shape: f32[8,128], index: 5, kind: output, shape index: {}]
  %s6 = sld [smem:[#allocation0]]
  $region50: #{tpu_custom_call.1} parent=0
    _
  %s8 = ssub.s32 1, %s6
  %s9 = scalar_select 0, %s8, %s6
  $region1: #{tpu_custom_call.1} parent=0
    #allocation2 [shape = 'u8[524288]{0}', space=vmem, size = 0x80000, scoped, tag = 'input window, operand 0, single buffered']
    #allocation3 [shape = 's32[1]{0}', space=sflag, size = 0x4, scoped, tag = 'scoped memory for tpu_custom_call.1']
    #allocation4 [shape = 's32[1]{0}', space=sflag, size = 0x4, scoped, tag = 'scoped memory for tpu_custom_call.1']
    #allocation5 [shape = 'u8[8388608]{0}', space=vmem, size = 0x800000, scoped, tag = 'input window, operand 1, single buffered']
    #allocation6 [shape = 's32[1]{0}', space=sflag, size = 0x4, scoped, tag = 'scoped memory for tpu_custom_call.1']
    #allocation7 [shape = 'u8[512]{0}', space=vmem, size = 0x400, scoped, tag = 'input window, operand 2, single buffered']
    #allocation8 [shape = 'u8[65536]{0}', space=vmem, size = 0x10000, scoped, tag = 'input window, operand 3, single buffered']
    #allocation9 [shape = 's32[1]{0}', space=sflag, size = 0x4, scoped, tag = 'scoped memory for tpu_custom_call.1']
    #allocation10 [shape = 'u8[512]{0}', space=vmem, size = 0x400, scoped, tag = 'input window, operand 4, single buffered']
    #allocation11 [shape = 'u8[4096]{0}', space=vmem, size = 0x1000, scoped, tag = 'output window, operand 0, single buffered']
    %10 = vsyncpa [#allocation3], 0
    %11 = vsyncpa [#allocation6], 0
    %12 = vsyncpa [#allocation9], 0
    %13 = vsyncpa [#allocation4], 0
    // Predicated region
    $region2: #{tpu_custom_call.1} parent=1 // pred_check
      _
    $region3: #{tpu_custom_call.1} parent=1 // pred_check_branch
      %15 = sbr.rel (0) target = $region5
    $region4: #{tpu_custom_call.1} parent=1 // pred_region
      %17 = vsyncadd [#allocation3], 0
      %s19 = sshll.u32 %s0, 4
      %s20 = int_to_ptr.hbm [resolvable:$true] %s19
      %s21 = sshll.u32 [#allocation2], 4
      %s22 = int_to_ptr.vmem [resolvable:$true] %s21
      %24 = dma.hbm_to_vmem [thread:$0]  %s20, 16384, %s22, [#allocation3]
    $region5: #{tpu_custom_call.1} parent=1 // pred_fallthru
      _
    // Predicated region
    $region6: #{tpu_custom_call.1} parent=1 // pred_check
      _
    $region7: #{tpu_custom_call.1} parent=1 // pred_check_branch
      %26 = sbr.rel (0) target = $region9
    $region8: #{tpu_custom_call.1} parent=1 // pred_region
      %28 = vsyncadd [#allocation6], 0
      %s29 = sshll.u32 %s1, 4
      %s30 = int_to_ptr.hbm [resolvable:$true] %s29
      %s31 = sshll.u32 [#allocation5], 4
      %s32 = int_to_ptr.vmem [resolvable:$true] %s31
      %37 = dma.hbm_to_vmem [thread:$0]  %s30, 262144, %s32, [#allocation6], 128, 128, 8
    $region9: #{tpu_custom_call.1} parent=1 // pred_fallthru
      _
    // Predicated region
    $region10: #{tpu_custom_call.1} parent=1 // pred_check
      _
    $region11: #{tpu_custom_call.1} parent=1 // pred_check_branch
      %39 = sbr.rel (0) target = $region13
    $region12: #{tpu_custom_call.1} parent=1 // pred_region
      %41 = vsyncadd [#allocation6], 0
      %s43 = sshll.u32 %s2, 4
      %s44 = int_to_ptr.hbm [resolvable:$true] %s43
      %s45 = sshll.u32 [#allocation7], 4
      %s46 = int_to_ptr.vmem [resolvable:$true] %s45
      %48 = dma.hbm_to_vmem [thread:$0]  %s44, 16, %s46, [#allocation6]
    $region13: #{tpu_custom_call.1} parent=1 // pred_fallthru
      _
    // Predicated region
    $region14: #{tpu_custom_call.1} parent=1 // pred_check
      _
    $region15: #{tpu_custom_call.1} parent=1 // pred_check_branch
      %50 = sbr.rel (0) target = $region17
    $region16: #{tpu_custom_call.1} parent=1 // pred_region
      %52 = vsyncadd [#allocation9], 0
      %s53 = sshll.u32 %s3, 4
      %s54 = int_to_ptr.hbm [resolvable:$true] %s53
      %s55 = sshll.u32 [#allocation8], 4
      %s56 = int_to_ptr.vmem [resolvable:$true] %s55
      %61 = dma.hbm_to_vmem [thread:$0]  %s54, 2048, %s56, [#allocation9], 128, 128, 8
    $region17: #{tpu_custom_call.1} parent=1 // pred_fallthru
      _
    // Predicated region
    $region18: #{tpu_custom_call.1} parent=1 // pred_check
      _
    $region19: #{tpu_custom_call.1} parent=1 // pred_check_branch
      %63 = sbr.rel (0) target = $region21
    $region20: #{tpu_custom_call.1} parent=1 // pred_region
      %65 = vsyncadd [#allocation9], 0
      %s67 = sshll.u32 %s4, 4
      %s68 = int_to_ptr.hbm [resolvable:$true] %s67
      %s69 = sshll.u32 [#allocation10], 4
      %s70 = int_to_ptr.vmem [resolvable:$true] %s69
      %72 = dma.hbm_to_vmem [thread:$0]  %s68, 16, %s70, [#allocation9]
    $region21: #{tpu_custom_call.1} parent=1 // pred_fallthru
      _
    // Predicated region
    $region22: #{tpu_custom_call.1} parent=1 // pred_check
      _
    $region23: #{tpu_custom_call.1} parent=1 // pred_check_branch
      %74 = sbr.rel (0) target = $region25
    $region24: #{tpu_custom_call.1} parent=1 // pred_region
      %76 = dma.done [#allocation3], 16384
    $region25: #{tpu_custom_call.1} parent=1 // pred_fallthru
      _
    // Predicated region
    $region26: #{tpu_custom_call.1} parent=1 // pred_check
      _
    $region27: #{tpu_custom_call.1} parent=1 // pred_check_branch
      %78 = sbr.rel (0) target = $region29
    $region28: #{tpu_custom_call.1} parent=1 // pred_region
      %80 = dma.done [#allocation6], 262144
    $region29: #{tpu_custom_call.1} parent=1 // pred_fallthru
      _
    // Predicated region
    $region30: #{tpu_custom_call.1} parent=1 // pred_check
      _
    $region31: #{tpu_custom_call.1} parent=1 // pred_check_branch
      %82 = sbr.rel (0) target = $region33
    $region32: #{tpu_custom_call.1} parent=1 // pred_region
      %84 = dma.done [#allocation6], 16
    $region33: #{tpu_custom_call.1} parent=1 // pred_fallthru
      _
    // Predicated region
    $region34: #{tpu_custom_call.1} parent=1 // pred_check
      _
    $region35: #{tpu_custom_call.1} parent=1 // pred_check_branch
      %86 = sbr.rel (0) target = $region37
    $region36: #{tpu_custom_call.1} parent=1 // pred_region
      %88 = dma.done [#allocation9], 2048
    $region37: #{tpu_custom_call.1} parent=1 // pred_fallthru
      _
    // Predicated region
    $region38: #{tpu_custom_call.1} parent=1 // pred_check
      _
    $region39: #{tpu_custom_call.1} parent=1 // pred_check_branch
      %90 = sbr.rel (0) target = $region41
    $region40: #{tpu_custom_call.1} parent=1 // pred_region
      %92 = dma.done [#allocation9], 16
    $region41: #{tpu_custom_call.1} parent=1 // pred_fallthru
      _
    %v93 = vld [vmem:[#allocation2] sm:$0xff]
    %v94 = vld [vmem:[#allocation2 + $0x8] sm:$0xff]
    %v95 = vld [vmem:[#allocation2 + $0x10] sm:$0xff]
    %v96 = vld [vmem:[#allocation2 + $0x18] sm:$0xff]
    %v97 = vld [vmem:[#allocation2 + $0x20] sm:$0xff]
    %v98 = vld [vmem:[#allocation2 + $0x28] sm:$0xff]
    %v99 = vld [vmem:[#allocation2 + $0x30] sm:$0xff]
    %v100 = vld [vmem:[#allocation2 + $0x38] sm:$0xff]
    %v101 = vld [vmem:[#allocation2 + $0x40] sm:$0xff]
    %v102 = vld [vmem:[#allocation2 + $0x48] sm:$0xff]
    %v103 = vld [vmem:[#allocation2 + $0x50] sm:$0xff]
    %v104 = vld [vmem:[#allocation2 + $0x58] sm:$0xff]
    %v105 = vld [vmem:[#allocation2 + $0x60] sm:$0xff]
    %v106 = vld [vmem:[#allocation2 + $0x68] sm:$0xff]
    %v107 = vld [vmem:[#allocation2 + $0x70] sm:$0xff]
    %v108 = vld [vmem:[#allocation2 + $0x78] sm:$0xff]
    %v109 = vld [vmem:[#allocation2 + $0x80] sm:$0xff]
    %v110 = vld [vmem:[#allocation2 + $0x88] sm:$0xff]
    %v111 = vld [vmem:[#allocation2 + $0x90] sm:$0xff]
    %v112 = vld [vmem:[#allocation2 + $0x98] sm:$0xff]
    %v113 = vld [vmem:[#allocation2 + $0xa0] sm:$0xff]
    %v114 = vld [vmem:[#allocation2 + $0xa8] sm:$0xff]
    %v115 = vld [vmem:[#allocation2 + $0xb0] sm:$0xff]
    %v116 = vld [vmem:[#allocation2 + $0xb8] sm:$0xff]
    %v117 = vld [vmem:[#allocation2 + $0xc0] sm:$0xff]
    %v118 = vld [vmem:[#allocation2 + $0xc8] sm:$0xff]
    %v119 = vld [vmem:[#allocation2 + $0xd0] sm:$0xff]
    %v120 = vld [vmem:[#allocation2 + $0xd8] sm:$0xff]
    %v121 = vld [vmem:[#allocation2 + $0xe0] sm:$0xff]
    %v122 = vld [vmem:[#allocation2 + $0xe8] sm:$0xff]
    %v123 = vld [vmem:[#allocation2 + $0xf0] sm:$0xff]
    %v124 = vld [vmem:[#allocation2 + $0xf8] sm:$0xff]
    %v125 = vld [vmem:[#allocation2 + $0x100] sm:$0xff]
    %v126 = vld [vmem:[#allocation2 + $0x108] sm:$0xff]
    %v127 = vld [vmem:[#allocation2 + $0x110] sm:$0xff]
    %v128 = vld [vmem:[#allocation2 + $0x118] sm:$0xff]
    %v129 = vld [vmem:[#allocation2 + $0x120] sm:$0xff]
    %v130 = vld [vmem:[#allocation2 + $0x128] sm:$0xff]
    %v131 = vld [vmem:[#allocation2 + $0x130] sm:$0xff]
    %v132 = vld [vmem:[#allocation2 + $0x138] sm:$0xff]
    %v133 = vld [vmem:[#allocation2 + $0x140] sm:$0xff]
    %v134 = vld [vmem:[#allocation2 + $0x148] sm:$0xff]
    %v135 = vld [vmem:[#allocation2 + $0x150] sm:$0xff]
    %v136 = vld [vmem:[#allocation2 + $0x158] sm:$0xff]
    %v137 = vld [vmem:[#allocation2 + $0x160] sm:$0xff]
    %v138 = vld [vmem:[#allocation2 + $0x168] sm:$0xff]
    %v139 = vld [vmem:[#allocation2 + $0x170] sm:$0xff]
    %v140 = vld [vmem:[#allocation2 + $0x178] sm:$0xff]
    %v141 = vld [vmem:[#allocation2 + $0x180] sm:$0xff]
    %v142 = vld [vmem:[#allocation2 + $0x188] sm:$0xff]
    %v143 = vld [vmem:[#allocation2 + $0x190] sm:$0xff]
    %v144 = vld [vmem:[#allocation2 + $0x198] sm:$0xff]
    %v145 = vld [vmem:[#allocation2 + $0x1a0] sm:$0xff]
    %v146 = vld [vmem:[#allocation2 + $0x1a8] sm:$0xff]
    %v147 = vld [vmem:[#allocation2 + $0x1b0] sm:$0xff]
    %v148 = vld [vmem:[#allocation2 + $0x1b8] sm:$0xff]
    %v149 = vld [vmem:[#allocation2 + $0x1c0] sm:$0xff]
    %v150 = vld [vmem:[#allocation2 + $0x1c8] sm:$0xff]
    %v151 = vld [vmem:[#allocation2 + $0x1d0] sm:$0xff]
    %v152 = vld [vmem:[#allocation2 + $0x1d8] sm:$0xff]
    %v153 = vld [vmem:[#allocation2 + $0x1e0] sm:$0xff]
    %v154 = vld [vmem:[#allocation2 + $0x1e8] sm:$0xff]
    %v155 = vld [vmem:[#allocation2 + $0x1f0] sm:$0xff]
    %v156 = vld [vmem:[#allocation2 + $0x1f8] sm:$0xff]
    %v157 = vld [vmem:[#allocation2 + $0x200] sm:$0xff]
    %v158 = vld [vmem:[#allocation2 + $0x208] sm:$0xff]
    %v159 = vld [vmem:[#allocation2 + $0x210] sm:$0xff]
    %v160 = vld [vmem:[#allocation2 + $0x218] sm:$0xff]
    %v161 = vld [vmem:[#allocation2 + $0x220] sm:$0xff]
    %v162 = vld [vmem:[#allocation2 + $0x228] sm:$0xff]
    %v163 = vld [vmem:[#allocation2 + $0x230] sm:$0xff]
    %v164 = vld [vmem:[#allocation2 + $0x238] sm:$0xff]
    %v165 = vld [vmem:[#allocation2 + $0x240] sm:$0xff]
    %v166 = vld [vmem:[#allocation2 + $0x248] sm:$0xff]
    %v167 = vld [vmem:[#allocation2 + $0x250] sm:$0xff]
    %v168 = vld [vmem:[#allocation2 + $0x258] sm:$0xff]
    %v169 = vld [vmem:[#allocation2 + $0x260] sm:$0xff]
    %v170 = vld [vmem:[#allocation2 + $0x268] sm:$0xff]
    %v171 = vld [vmem:[#allocation2 + $0x270] sm:$0xff]
    %v172 = vld [vmem:[#allocation2 + $0x278] sm:$0xff]
    %v173 = vld [vmem:[#allocation2 + $0x280] sm:$0xff]
    %v174 = vld [vmem:[#allocation2 + $0x288] sm:$0xff]
    %v175 = vld [vmem:[#allocation2 + $0x290] sm:$0xff]
    %v176 = vld [vmem:[#allocation2 + $0x298] sm:$0xff]
    %v177 = vld [vmem:[#allocation2 + $0x2a0] sm:$0xff]
    %v178 = vld [vmem:[#allocation2 + $0x2a8] sm:$0xff]
    %v179 = vld [vmem:[#allocation2 + $0x2b0] sm:$0xff]
    %v180 = vld [vmem:[#allocation2 + $0x2b8] sm:$0xff]
    %v181 = vld [vmem:[#allocation2 + $0x2c0] sm:$0xff]
    %v182 = vld [vmem:[#allocation2 + $0x2c8] sm:$0xff]
    %v183 = vld [vmem:[#allocation2 + $0x2d0] sm:$0xff]
    %v184 = vld [vmem:[#allocation2 + $0x2d8] sm:$0xff]
    %v185 = vld [vmem:[#allocation2 + $0x2e0] sm:$0xff]
    %v186 = vld [vmem:[#allocation2 + $0x2e8] sm:$0xff]
    %v187 = vld [vmem:[#allocation2 + $0x2f0] sm:$0xff]
    %v188 = vld [vmem:[#allocation2 + $0x2f8] sm:$0xff]
    %v189 = vld [vmem:[#allocation2 + $0x300] sm:$0xff]
    %v190 = vld [vmem:[#allocation2 + $0x308] sm:$0xff]
    %v191 = vld [vmem:[#allocation2 + $0x310] sm:$0xff]
    %v192 = vld [vmem:[#allocation2 + $0x318] sm:$0xff]
    %v193 = vld [vmem:[#allocation2 + $0x320] sm:$0xff]
    %v194 = vld [vmem:[#allocation2 + $0x328] sm:$0xff]
    %v195 = vld [vmem:[#allocation2 + $0x330] sm:$0xff]
    %v196 = vld [vmem:[#allocation2 + $0x338] sm:$0xff]
    %v197 = vld [vmem:[#allocation2 + $0x340] sm:$0xff]
    %v198 = vld [vmem:[#allocation2 + $0x348] sm:$0xff]
    %v199 = vld [vmem:[#allocation2 + $0x350] sm:$0xff]
    %v200 = vld [vmem:[#allocation2 + $0x358] sm:$0xff]
    %v201 = vld [vmem:[#allocation2 + $0x360] sm:$0xff]
    %v202 = vld [vmem:[#allocation2 + $0x368] sm:$0xff]
    %v203 = vld [vmem:[#allocation2 + $0x370] sm:$0xff]
    %v204 = vld [vmem:[#allocation2 + $0x378] sm:$0xff]
    %v205 = vld [vmem:[#allocation2 + $0x380] sm:$0xff]
    %v206 = vld [vmem:[#allocation2 + $0x388] sm:$0xff]
    %v207 = vld [vmem:[#allocation2 + $0x390] sm:$0xff]
    %v208 = vld [vmem:[#allocation2 + $0x398] sm:$0xff]
    %v209 = vld [vmem:[#allocation2 + $0x3a0] sm:$0xff]
    %v210 = vld [vmem:[#allocation2 + $0x3a8] sm:$0xff]
    %v211 = vld [vmem:[#allocation2 + $0x3b0] sm:$0xff]
    %v212 = vld [vmem:[#allocation2 + $0x3b8] sm:$0xff]
    %v213 = vld [vmem:[#allocation2 + $0x3c0] sm:$0xff]
    %v214 = vld [vmem:[#allocation2 + $0x3c8] sm:$0xff]
    %v215 = vld [vmem:[#allocation2 + $0x3d0] sm:$0xff]
    %v216 = vld [vmem:[#allocation2 + $0x3d8] sm:$0xff]
    %v217 = vld [vmem:[#allocation2 + $0x3e0] sm:$0xff]
    %v218 = vld [vmem:[#allocation2 + $0x3e8] sm:$0xff]
    %v219 = vld [vmem:[#allocation2 + $0x3f0] sm:$0xff]
    %v220 = vld [vmem:[#allocation2 + $0x3f8] sm:$0xff]
    %v221 = vld [vmem:[#allocation5] sm:$0xff]
    %v222 = vld [vmem:[#allocation5 + $0x8] sm:$0xff]
    %v223 = vld [vmem:[#allocation5 + $0x10] sm:$0xff]
    %v224 = vld [vmem:[#allocation5 + $0x18] sm:$0xff]
    %v225 = vld [vmem:[#allocation5 + $0x20] sm:$0xff]
    %v226 = vld [vmem:[#allocation5 + $0x28] sm:$0xff]
    %v227 = vld [vmem:[#allocation5 + $0x30] sm:$0xff]
    %v228 = vld [vmem:[#allocation5 + $0x38] sm:$0xff]
    %v229 = vld [vmem:[#allocation5 + $0x40] sm:$0xff]
    %v230 = vld [vmem:[#allocation5 + $0x48] sm:$0xff]
    %v231 = vld [vmem:[#allocation5 + $0x50] sm:$0xff]
    %v232 = vld [vmem:[#allocation5 + $0x58] sm:$0xff]
    %v233 = vld [vmem:[#allocation5 + $0x60] sm:$0xff]
    %v234 = vld [vmem:[#allocation5 + $0x68] sm:$0xff]
    %v235 = vld [vmem:[#allocation5 + $0x70] sm:$0xff]
    %v236 = vld [vmem:[#allocation5 + $0x78] sm:$0xff]
    %v237 = vld [vmem:[#allocation5 + $0x80] sm:$0xff]
    %v238 = vld [vmem:[#allocation5 + $0x88] sm:$0xff]
    %v239 = vld [vmem:[#allocation5 + $0x90] sm:$0xff]
    %v240 = vld [vmem:[#allocation5 + $0x98] sm:$0xff]
    %v241 = vld [vmem:[#allocation5 + $0xa0] sm:$0xff]
    %v242 = vld [vmem:[#allocation5 + $0xa8] sm:$0xff]
    %v243 = vld [vmem:[#allocation5 + $0xb0] sm:$0xff]
    %v244 = vld [vmem:[#allocation5 + $0xb8] sm:$0xff]
    %v245 = vld [vmem:[#allocation5 + $0xc0] sm:$0xff]
    %v246 = vld [vmem:[#allocation5 + $0xc8] sm:$0xff]
    %v247 = vld [vmem:[#allocation5 + $0xd0] sm:$0xff]
    %v248 = vld [vmem:[#allocation5 + $0xd8] sm:$0xff]
    %v249 = vld [vmem:[#allocation5 + $0xe0] sm:$0xff]
    %v250 = vld [vmem:[#allocation5 + $0xe8] sm:$0xff]
    %v251 = vld [vmem:[#allocation5 + $0xf0] sm:$0xff]
    %v252 = vld [vmem:[#allocation5 + $0xf8] sm:$0xff]
    %v253 = vld [vmem:[#allocation5 + $0x100] sm:$0xff]
    %v254 = vld [vmem:[#allocation5 + $0x108] sm:$0xff]
    %v255 = vld [vmem:[#allocation5 + $0x110] sm:$0xff]
    %v256 = vld [vmem:[#allocation5 + $0x118] sm:$0xff]
    %v257 = vld [vmem:[#allocation5 + $0x120] sm:$0xff]
    %v258 = vld [vmem:[#allocation5 + $0x128] sm:$0xff]
    %v259 = vld [vmem:[#allocation5 + $0x130] sm:$0xff]
    %v260 = vld [vmem:[#allocation5 + $0x138] sm:$0xff]
    %v261 = vld [vmem:[#allocation5 + $0x140] sm:$0xff]
    %v262 = vld [vmem:[#allocation5 + $0x148] sm:$0xff]
    %v263 = vld [vmem:[#allocation5 + $0x150] sm:$0xff]
    %v264 = vld [vmem:[#allocation5 + $0x158] sm:$0xff]
    %v265 = vld [vmem:[#allocation5 + $0x160] sm:$0xff]
    %v266 = vld [vmem:[#allocation5 + $0x168] sm:$0xff]
    %v267 = vld [vmem:[#allocation5 + $0x170] sm:$0xff]
    %v268 = vld [vmem:[#allocation5 + $0x178] sm:$0xff]
    %v269 = vld [vmem:[#allocation5 + $0x180] sm:$0xff]
    %v270 = vld [vmem:[#allocation5 + $0x188] sm:$0xff]
    %v271 = vld [vmem:[#allocation5 + $0x190] sm:$0xff]
    %v272 = vld [vmem:[#allocation5 + $0x198] sm:$0xff]
    %v273 = vld [vmem:[#allocation5 + $0x1a0] sm:$0xff]
    %v274 = vld [vmem:[#allocation5 + $0x1a8] sm:$0xff]
    %v275 = vld [vmem:[#allocation5 + $0x1b0] sm:$0xff]
    %v276 = vld [vmem:[#allocation5 + $0x1b8] sm:$0xff]
    %v277 = vld [vmem:[#allocation5 + $0x1c0] sm:$0xff]
    %v278 = vld [vmem:[#allocation5 + $0x1c8] sm:$0xff]
    %v279 = vld [vmem:[#allocation5 + $0x1d0] sm:$0xff]
    %v280 = vld [vmem:[#allocation5 + $0x1d8] sm:$0xff]
    %v281 = vld [vmem:[#allocation5 + $0x1e0] sm:$0xff]
    %v282 = vld [vmem:[#allocation5 + $0x1e8] sm:$0xff]
    %v283 = vld [vmem:[#allocation5 + $0x1f0] sm:$0xff]
    %v284 = vld [vmem:[#allocation5 + $0x1f8] sm:$0xff]
    %v285 = vld [vmem:[#allocation5 + $0x200] sm:$0xff]
    %v286 = vld [vmem:[#allocation5 + $0x208] sm:$0xff]
    %v287 = vld [vmem:[#allocation5 + $0x210] sm:$0xff]
    %v288 = vld [vmem:[#allocation5 + $0x218] sm:$0xff]
    %v289 = vld [vmem:[#allocation5 + $0x220] sm:$0xff]
    %v290 = vld [vmem:[#allocation5 + $0x228] sm:$0xff]
    %v291 = vld [vmem:[#allocation5 + $0x230] sm:$0xff]
    %v292 = vld [vmem:[#allocation5 + $0x238] sm:$0xff]
    %v293 = vld [vmem:[#allocation5 + $0x240] sm:$0xff]
    %v294 = vld [vmem:[#allocation5 + $0x248] sm:$0xff]
    %v295 = vld [vmem:[#allocation5 + $0x250] sm:$0xff]
    %v296 = vld [vmem:[#allocation5 + $0x258] sm:$0xff]
    %v297 = vld [vmem:[#allocation5 + $0x260] sm:$0xff]
    %v298 = vld [vmem:[#allocation5 + $0x268] sm:$0xff]
    %v299 = vld [vmem:[#allocation5 + $0x270] sm:$0xff]
    %v300 = vld [vmem:[#allocation5 + $0x278] sm:$0xff]
    %v301 = vld [vmem:[#allocation5 + $0x280] sm:$0xff]
    %v302 = vld [vmem:[#allocation5 + $0x288] sm:$0xff]
    %v303 = vld [vmem:[#allocation5 + $0x290] sm:$0xff]
    %v304 = vld [vmem:[#allocation5 + $0x298] sm:$0xff]
    %v305 = vld [vmem:[#allocation5 + $0x2a0] sm:$0xff]
    %v306 = vld [vmem:[#allocation5 + $0x2a8] sm:$0xff]
    %v307 = vld [vmem:[#allocation5 + $0x2b0] sm:$0xff]
    %v308 = vld [vmem:[#allocation5 + $0x2b8] sm:$0xff]
    %v309 = vld [vmem:[#allocation5 + $0x2c0] sm:$0xff]
    %v310 = vld [vmem:[#allocation5 + $0x2c8] sm:$0xff]
    %v311 = vld [vmem:[#allocation5 + $0x2d0] sm:$0xff]
    %v312 = vld [vmem:[#allocation5 + $0x2d8] sm:$0xff]
    %v313 = vld [vmem:[#allocation5 + $0x2e0] sm:$0xff]
    %v314 = vld [vmem:[#allocation5 + $0x2e8] sm:$0xff]
    %v315 = vld [vmem:[#allocation5 + $0x2f0] sm:$0xff]
    %v316 = vld [vmem:[#allocation5 + $0x2f8] sm:$0xff]
    %v317 = vld [vmem:[#allocation5 + $0x300] sm:$0xff]
    %v318 = vld [vmem:[#allocation5 + $0x308] sm:$0xff]
    %v319 = vld [vmem:[#allocation5 + $0x310] sm:$0xff]
    %v320 = vld [vmem:[#allocation5 + $0x318] sm:$0xff]
    %v321 = vld [vmem:[#allocation5 + $0x320] sm:$0xff]
    %v322 = vld [vmem:[#allocation5 + $0x328] sm:$0xff]
    %v323 = vld [vmem:[#allocation5 + $0x330] sm:$0xff]
    %v324 = vld [vmem:[#allocation5 + $0x338] sm:$0xff]
    %v325 = vld [vmem:[#allocation5 + $0x340] sm:$0xff]
    %v326 = vld [vmem:[#allocation5 + $0x348] sm:$0xff]
    %v327 = vld [vmem:[#allocation5 + $0x350] sm:$0xff]
    %v328 = vld [vmem:[#allocation5 + $0x358] sm:$0xff]
    %v329 = vld [vmem:[#allocation5 + $0x360] sm:$0xff]
    %v330 = vld [vmem:[#allocation5 + $0x368] sm:$0xff]
    %v331 = vld [vmem:[#allocation5 + $0x370] sm:$0xff]
    %v332 = vld [vmem:[#allocation5 + $0x378] sm:$0xff]
    %v333 = vld [vmem:[#allocation5 + $0x380] sm:$0xff]
    %v334 = vld [vmem:[#allocation5 + $0x388] sm:$0xff]
    %v335 = vld [vmem:[#allocation5 + $0x390] sm:$0xff]
    %v336 = vld [vmem:[#allocation5 + $0x398] sm:$0xff]
    %v337 = vld [vmem:[#allocation5 + $0x3a0] sm:$0xff]
    %v338 = vld [vmem:[#allocation5 + $0x3a8] sm:$0xff]
    %v339 = vld [vmem:[#allocation5 + $0x3b0] sm:$0xff]
    %v340 = vld [vmem:[#allocation5 + $0x3b8] sm:$0xff]
    %v341 = vld [vmem:[#allocation5 + $0x3c0] sm:$0xff]
    %v342 = vld [vmem:[#allocation5 + $0x3c8] sm:$0xff]
    %v343 = vld [vmem:[#allocation5 + $0x3d0] sm:$0xff]
    %v344 = vld [vmem:[#allocation5 + $0x3d8] sm:$0xff]
    %v345 = vld [vmem:[#allocation5 + $0x3e0] sm:$0xff]
    %v346 = vld [vmem:[#allocation5 + $0x3e8] sm:$0xff]
    %v347 = vld [vmem:[#allocation5 + $0x3f0] sm:$0xff]
    %v348 = vld [vmem:[#allocation5 + $0x3f8] sm:$0xff]
    %v349 = vld [vmem:[#allocation5 + $0x400] sm:$0xff]
    %v350 = vld [vmem:[#allocation5 + $0x408] sm:$0xff]
    %v351 = vld [vmem:[#allocation5 + $0x410] sm:$0xff]
    %v352 = vld [vmem:[#allocation5 + $0x418] sm:$0xff]
    %v353 = vld [vmem:[#allocation5 + $0x420] sm:$0xff]
    %v354 = vld [vmem:[#allocation5 + $0x428] sm:$0xff]
    %v355 = vld [vmem:[#allocation5 + $0x430] sm:$0xff]
    %v356 = vld [vmem:[#allocation5 + $0x438] sm:$0xff]
    %v357 = vld [vmem:[#allocation5 + $0x440] sm:$0xff]
    %v358 = vld [vmem:[#allocation5 + $0x448] sm:$0xff]
    %v359 = vld [vmem:[#allocation5 + $0x450] sm:$0xff]
    %v360 = vld [vmem:[#allocation5 + $0x458] sm:$0xff]
    %v361 = vld [vmem:[#allocation5 + $0x460] sm:$0xff]
    %v362 = vld [vmem:[#allocation5 + $0x468] sm:$0xff]
    %v363 = vld [vmem:[#allocation5 + $0x470] sm:$0xff]
    %v364 = vld [vmem:[#allocation5 + $0x478] sm:$0xff]
    %v365 = vld [vmem:[#allocation5 + $0x480] sm:$0xff]
    %v366 = vld [vmem:[#allocation5 + $0x488] sm:$0xff]
    %v367 = vld [vmem:[#allocation5 + $0x490] sm:$0xff]
    %v368 = vld [vmem:[#allocation5 + $0x498] sm:$0xff]
    %v369 = vld [vmem:[#allocation5 + $0x4a0] sm:$0xff]
    %v370 = vld [vmem:[#allocation5 + $0x4a8] sm:$0xff]
    %v371 = vld [vmem:[#allocation5 + $0x4b0] sm:$0xff]
    %v372 = vld [vmem:[#allocation5 + $0x4b8] sm:$0xff]
    %v373 = vld [vmem:[#allocation5 + $0x4c0] sm:$0xff]
    %v374 = vld [vmem:[#allocation5 + $0x4c8] sm:$0xff]
    %v375 = vld [vmem:[#allocation5 + $0x4d0] sm:$0xff]
    %v376 = vld [vmem:[#allocation5 + $0x4d8] sm:$0xff]
    %v377 = vld [vmem:[#allocation5 + $0x4e0] sm:$0xff]
    %v378 = vld [vmem:[#allocation5 + $0x4e8] sm:$0xff]
    %v379 = vld [vmem:[#allocation5 + $0x4f0] sm:$0xff]
    %v380 = vld [vmem:[#allocation5 + $0x4f8] sm:$0xff]
    %v381 = vld [vmem:[#allocation5 + $0x500] sm:$0xff]
    %v382 = vld [vmem:[#allocation5 + $0x508] sm:$0xff]
    %v383 = vld [vmem:[#allocation5 + $0x510] sm:$0xff]
    %v384 = vld [vmem:[#allocation5 + $0x518] sm:$0xff]
    %v385 = vld [vmem:[#allocation5 + $0x520] sm:$0xff]
    %v386 = vld [vmem:[#allocation5 + $0x528] sm:$0xff]
    %v387 = vld [vmem:[#allocation5 + $0x530] sm:$0xff]
    %v388 = vld [vmem:[#allocation5 + $0x538] sm:$0xff]
    %v389 = vld [vmem:[#allocation5 + $0x540] sm:$0xff]
    %v390 = vld [vmem:[#allocation5 + $0x548] sm:$0xff]
    %v391 = vld [vmem:[#allocation5 + $0x550] sm:$0xff]
    %v392 = vld [vmem:[#allocation5 + $0x558] sm:$0xff]
    %v393 = vld [vmem:[#allocation5 + $0x560] sm:$0xff]
    %v394 = vld [vmem:[#allocation5 + $0x568] sm:$0xff]
    %v395 = vld [vmem:[#allocation5 + $0x570] sm:$0xff]
    %v396 = vld [vmem:[#allocation5 + $0x578] sm:$0xff]
    %v397 = vld [vmem:[#allocation5 + $0x580] sm:$0xff]
    %v398 = vld [vmem:[#allocation5 + $0x588] sm:$0xff]
    %v399 = vld [vmem:[#allocation5 + $0x590] sm:$0xff]
    %v400 = vld [vmem:[#allocation5 + $0x598] sm:$0xff]
    %v401 = vld [vmem:[#allocation5 + $0x5a0] sm:$0xff]
    %v402 = vld [vmem:[#allocation5 + $0x5a8] sm:$0xff]
    %v403 = vld [vmem:[#allocation5 + $0x5b0] sm:$0xff]
    %v404 = vld [vmem:[#allocation5 + $0x5b8] sm:$0xff]
    %v405 = vld [vmem:[#allocation5 + $0x5c0] sm:$0xff]
    %v406 = vld [vmem:[#allocation5 + $0x5c8] sm:$0xff]
    %v407 = vld [vmem:[#allocation5 + $0x5d0] sm:$0xff]
    %v408 = vld [vmem:[#allocation5 + $0x5d8] sm:$0xff]
    %v409 = vld [vmem:[#allocation5 + $0x5e0] sm:$0xff]
    %v410 = vld [vmem:[#allocation5 + $0x5e8] sm:$0xff]
    %v411 = vld [vmem:[#allocation5 + $0x5f0] sm:$0xff]
    %v412 = vld [vmem:[#allocation5 + $0x5f8] sm:$0xff]
    %v413 = vld [vmem:[#allocation5 + $0x600] sm:$0xff]
    %v414 = vld [vmem:[#allocation5 + $0x608] sm:$0xff]
    %v415 = vld [vmem:[#allocation5 + $0x610] sm:$0xff]
    %v416 = vld [vmem:[#allocation5 + $0x618] sm:$0xff]
    %v417 = vld [vmem:[#allocation5 + $0x620] sm:$0xff]
    %v418 = vld [vmem:[#allocation5 + $0x628] sm:$0xff]
    %v419 = vld [vmem:[#allocation5 + $0x630] sm:$0xff]
    %v420 = vld [vmem:[#allocation5 + $0x638] sm:$0xff]
    %v421 = vld [vmem:[#allocation5 + $0x640] sm:$0xff]
    %v422 = vld [vmem:[#allocation5 + $0x648] sm:$0xff]
    %v423 = vld [vmem:[#allocation5 + $0x650] sm:$0xff]
    %v424 = vld [vmem:[#allocation5 + $0x658] sm:$0xff]
    %v425 = vld [vmem:[#allocation5 + $0x660] sm:$0xff]
    %v426 = vld [vmem:[#allocation5 + $0x668] sm:$0xff]
    %v427 = vld [vmem:[#allocation5 + $0x670] sm:$0xff]
    %v428 = vld [vmem:[#allocation5 + $0x678] sm:$0xff]
    %v429 = vld [vmem:[#allocation5 + $0x680] sm:$0xff]
    %v430 = vld [vmem:[#allocation5 + $0x688] sm:$0xff]
    %v431 = vld [vmem:[#allocation5 + $0x690] sm:$0xff]
    %v432 = vld [vmem:[#allocation5 + $0x698] sm:$0xff]
    %v433 = vld [vmem:[#allocation5 + $0x6a0] sm:$0xff]
    %v434 = vld [vmem:[#allocation5 + $0x6a8] sm:$0xff]
    %v435 = vld [vmem:[#allocation5 + $0x6b0] sm:$0xff]
    %v436 = vld [vmem:[#allocation5 + $0x6b8] sm:$0xff]
    %v437 = vld [vmem:[#allocation5 + $0x6c0] sm:$0xff]
    %v438 = vld [vmem:[#allocation5 + $0x6c8] sm:$0xff]
    %v439 = vld [vmem:[#allocation5 + $0x6d0] sm:$0xff]
    %v440 = vld [vmem:[#allocation5 + $0x6d8] sm:$0xff]
    %v441 = vld [vmem:[#allocation5 + $0x6e0] sm:$0xff]
    %v442 = vld [vmem:[#allocation5 + $0x6e8] sm:$0xff]
    %v443 = vld [vmem:[#allocation5 + $0x6f0] sm:$0xff]
    %v444 = vld [vmem:[#allocation5 + $0x6f8] sm:$0xff]
    %v445 = vld [vmem:[#allocation5 + $0x700] sm:$0xff]
    %v446 = vld [vmem:[#allocation5 + $0x708] sm:$0xff]
    %v447 = vld [vmem:[#allocation5 + $0x710] sm:$0xff]
    %v448 = vld [vmem:[#allocation5 + $0x718] sm:$0xff]
    %v449 = vld [vmem:[#allocation5 + $0x720] sm:$0xff]
    %v450 = vld [vmem:[#allocation5 + $0x728] sm:$0xff]
    %v451 = vld [vmem:[#allocation5 + $0x730] sm:$0xff]
    %v452 = vld [vmem:[#allocation5 + $0x738] sm:$0xff]
    %v453 = vld [vmem:[#allocation5 + $0x740] sm:$0xff]
    %v454 = vld [vmem:[#allocation5 + $0x748] sm:$0xff]
    %v455 = vld [vmem:[#allocation5 + $0x750] sm:$0xff]
    %v456 = vld [vmem:[#allocation5 + $0x758] sm:$0xff]
    %v457 = vld [vmem:[#allocation5 + $0x760] sm:$0xff]
    %v458 = vld [vmem:[#allocation5 + $0x768] sm:$0xff]
    %v459 = vld [vmem:[#allocation5 + $0x770] sm:$0xff]
    %v460 = vld [vmem:[#allocation5 + $0x778] sm:$0xff]
    %v461 = vld [vmem:[#allocation5 + $0x780] sm:$0xff]
    %v462 = vld [vmem:[#allocation5 + $0x788] sm:$0xff]
    %v463 = vld [vmem:[#allocation5 + $0x790] sm:$0xff]
    %v464 = vld [vmem:[#allocation5 + $0x798] sm:$0xff]
    %v465 = vld [vmem:[#allocation5 + $0x7a0] sm:$0xff]
    %v466 = vld [vmem:[#allocation5 + $0x7a8] sm:$0xff]
    %v467 = vld [vmem:[#allocation5 + $0x7b0] sm:$0xff]
    %v468 = vld [vmem:[#allocation5 + $0x7b8] sm:$0xff]
    %v469 = vld [vmem:[#allocation5 + $0x7c0] sm:$0xff]
    %v470 = vld [vmem:[#allocation5 + $0x7c8] sm:$0xff]
    %v471 = vld [vmem:[#allocation5 + $0x7d0] sm:$0xff]
    %v472 = vld [vmem:[#allocation5 + $0x7d8] sm:$0xff]
    %v473 = vld [vmem:[#allocation5 + $0x7e0] sm:$0xff]
    %v474 = vld [vmem:[#allocation5 + $0x7e8] sm:$0xff]
    %v475 = vld [vmem:[#allocation5 + $0x7f0] sm:$0xff]
    %v476 = vld [vmem:[#allocation5 + $0x7f8] sm:$0xff]
    %v477 = vld [vmem:[#allocation5 + $0x800] sm:$0xff]
    %v478 = vld [vmem:[#allocation5 + $0x808] sm:$0xff]
    %v479 = vld [vmem:[#allocation5 + $0x810] sm:$0xff]
    %v480 = vld [vmem:[#allocation5 + $0x818] sm:$0xff]
    %v481 = vld [vmem:[#allocation5 + $0x820] sm:$0xff]
    %v482 = vld [vmem:[#allocation5 + $0x828] sm:$0xff]
    %v483 = vld [vmem:[#allocation5 + $0x830] sm:$0xff]
    %v484 = vld [vmem:[#allocation5 + $0x838] sm:$0xff]
    %v485 = vld [vmem:[#allocation5 + $0x840] sm:$0xff]
    %v486 = vld [vmem:[#allocation5 + $0x848] sm:$0xff]
    %v487 = vld [vmem:[#allocation5 + $0x850] sm:$0xff]
    %v488 = vld [vmem:[#allocation5 + $0x858] sm:$0xff]
    %v489 = vld [vmem:[#allocation5 + $0x860] sm:$0xff]
    %v490 = vld [vmem:[#allocation5 + $0x868] sm:$0xff]
    %v491 = vld [vmem:[#allocation5 + $0x870] sm:$0xff]
    %v492 = vld [vmem:[#allocation5 + $0x878] sm:$0xff]
    %v493 = vld [vmem:[#allocation5 + $0x880] sm:$0xff]
    %v494 = vld [vmem:[#allocation5 + $0x888] sm:$0xff]
    %v495 = vld [vmem:[#allocation5 + $0x890] sm:$0xff]
    %v496 = vld [vmem:[#allocation5 + $0x898] sm:$0xff]
    %v497 = vld [vmem:[#allocation5 + $0x8a0] sm:$0xff]
    %v498 = vld [vmem:[#allocation5 + $0x8a8] sm:$0xff]
    %v499 = vld [vmem:[#allocation5 + $0x8b0] sm:$0xff]
    %v500 = vld [vmem:[#allocation5 + $0x8b8] sm:$0xff]
    %v501 = vld [vmem:[#allocation5 + $0x8c0] sm:$0xff]
    %v502 = vld [vmem:[#allocation5 + $0x8c8] sm:$0xff]
    %v503 = vld [vmem:[#allocation5 + $0x8d0] sm:$0xff]
    %v504 = vld [vmem:[#allocation5 + $0x8d8] sm:$0xff]
    %v505 = vld [vmem:[#allocation5 + $0x8e0] sm:$0xff]
    %v506 = vld [vmem:[#allocation5 + $0x8e8] sm:$0xff]
    %v507 = vld [vmem:[#allocation5 + $0x8f0] sm:$0xff]
    %v508 = vld [vmem:[#allocation5 + $0x8f8] sm:$0xff]
    %v509 = vld [vmem:[#allocation5 + $0x900] sm:$0xff]
    %v510 = vld [vmem:[#allocation5 + $0x908] sm:$0xff]
    %v511 = vld [vmem:[#allocation5 + $0x910] sm:$0xff]
    %v512 = vld [vmem:[#allocation5 + $0x918] sm:$0xff]
    %v513 = vld [vmem:[#allocation5 + $0x920] sm:$0xff]
    %v514 = vld [vmem:[#allocation5 + $0x928] sm:$0xff]
    %v515 = vld [vmem:[#allocation5 + $0x930] sm:$0xff]
    %v516 = vld [vmem:[#allocation5 + $0x938] sm:$0xff]
    %v517 = vld [vmem:[#allocation5 + $0x940] sm:$0xff]
    %v518 = vld [vmem:[#allocation5 + $0x948] sm:$0xff]
    %v519 = vld [vmem:[#allocation5 + $0x950] sm:$0xff]
    %v520 = vld [vmem:[#allocation5 + $0x958] sm:$0xff]
    %v521 = vld [vmem:[#allocation5 + $0x960] sm:$0xff]
    %v522 = vld [vmem:[#allocation5 + $0x968] sm:$0xff]
    %v523 = vld [vmem:[#allocation5 + $0x970] sm:$0xff]
    %v524 = vld [vmem:[#allocation5 + $0x978] sm:$0xff]
    %v525 = vld [vmem:[#allocation5 + $0x980] sm:$0xff]
    %v526 = vld [vmem:[#allocation5 + $0x988] sm:$0xff]
    %v527 = vld [vmem:[#allocation5 + $0x990] sm:$0xff]
    %v528 = vld [vmem:[#allocation5 + $0x998] sm:$0xff]
    %v529 = vld [vmem:[#allocation5 + $0x9a0] sm:$0xff]
    %v530 = vld [vmem:[#allocation5 + $0x9a8] sm:$0xff]
    %v531 = vld [vmem:[#allocation5 + $0x9b0] sm:$0xff]
    %v532 = vld [vmem:[#allocation5 + $0x9b8] sm:$0xff]
    %v533 = vld [vmem:[#allocation5 + $0x9c0] sm:$0xff]
    %v534 = vld [vmem:[#allocation5 + $0x9c8] sm:$0xff]
    %v535 = vld [vmem:[#allocation5 + $0x9d0] sm:$0xff]
    %v536 = vld [vmem:[#allocation5 + $0x9d8] sm:$0xff]
    %v537 = vld [vmem:[#allocation5 + $0x9e0] sm:$0xff]
    %v538 = vld [vmem:[#allocation5 + $0x9e8] sm:$0xff]
    %v539 = vld [vmem:[#allocation5 + $0x9f0] sm:$0xff]
    %v540 = vld [vmem:[#allocation5 + $0x9f8] sm:$0xff]
    %v541 = vld [vmem:[#allocation5 + $0xa00] sm:$0xff]
    %v542 = vld [vmem:[#allocation5 + $0xa08] sm:$0xff]
    %v543 = vld [vmem:[#allocation5 + $0xa10] sm:$0xff]
    %v544 = vld [vmem:[#allocation5 + $0xa18] sm:$0xff]
    %v545 = vld [vmem:[#allocation5 + $0xa20] sm:$0xff]
    %v546 = vld [vmem:[#allocation5 + $0xa28] sm:$0xff]
    %v547 = vld [vmem:[#allocation5 + $0xa30] sm:$0xff]
    %v548 = vld [vmem:[#allocation5 + $0xa38] sm:$0xff]
    %v549 = vld [vmem:[#allocation5 + $0xa40] sm:$0xff]
    %v550 = vld [vmem:[#allocation5 + $0xa48] sm:$0xff]
    %v551 = vld [vmem:[#allocation5 + $0xa50] sm:$0xff]
    %v552 = vld [vmem:[#allocation5 + $0xa58] sm:$0xff]
    %v553 = vld [vmem:[#allocation5 + $0xa60] sm:$0xff]
    %v554 = vld [vmem:[#allocation5 + $0xa68] sm:$0xff]
    %v555 = vld [vmem:[#allocation5 + $0xa70] sm:$0xff]
    %v556 = vld [vmem:[#allocation5 + $0xa78] sm:$0xff]
    %v557 = vld [vmem:[#allocation5 + $0xa80] sm:$0xff]
    %v558 = vld [vmem:[#allocation5 + $0xa88] sm:$0xff]
    %v559 = vld [vmem:[#allocation5 + $0xa90] sm:$0xff]
    %v560 = vld [vmem:[#allocation5 + $0xa98] sm:$0xff]
    %v561 = vld [vmem:[#allocation5 + $0xaa0] sm:$0xff]
    %v562 = vld [vmem:[#allocation5 + $0xaa8] sm:$0xff]
    %v563 = vld [vmem:[#allocation5 + $0xab0] sm:$0xff]
    %v564 = vld [vmem:[#allocation5 + $0xab8] sm:$0xff]
    %v565 = vld [vmem:[#allocation5 + $0xac0] sm:$0xff]
    %v566 = vld [vmem:[#allocation5 + $0xac8] sm:$0xff]
    %v567 = vld [vmem:[#allocation5 + $0xad0] sm:$0xff]
    %v568 = vld [vmem:[#allocation5 + $0xad8] sm:$0xff]
    %v569 = vld [vmem:[#allocation5 + $0xae0] sm:$0xff]
    %v570 = vld [vmem:[#allocation5 + $0xae8] sm:$0xff]
    %v571 = vld [vmem:[#allocation5 + $0xaf0] sm:$0xff]
    %v572 = vld [vmem:[#allocation5 + $0xaf8] sm:$0xff]
    %v573 = vld [vmem:[#allocation5 + $0xb00] sm:$0xff]
    %v574 = vld [vmem:[#allocation5 + $0xb08] sm:$0xff]
    %v575 = vld [vmem:[#allocation5 + $0xb10] sm:$0xff]
    %v576 = vld [vmem:[#allocation5 + $0xb18] sm:$0xff]
    %v577 = vld [vmem:[#allocation5 + $0xb20] sm:$0xff]
    %v578 = vld [vmem:[#allocation5 + $0xb28] sm:$0xff]
    %v579 = vld [vmem:[#allocation5 + $0xb30] sm:$0xff]
    %v580 = vld [vmem:[#allocation5 + $0xb38] sm:$0xff]
    %v581 = vld [vmem:[#allocation5 + $0xb40] sm:$0xff]
    %v582 = vld [vmem:[#allocation5 + $0xb48] sm:$0xff]
    %v583 = vld [vmem:[#allocation5 + $0xb50] sm:$0xff]
    %v584 = vld [vmem:[#allocation5 + $0xb58] sm:$0xff]
    %v585 = vld [vmem:[#allocation5 + $0xb60] sm:$0xff]
    %v586 = vld [vmem:[#allocation5 + $0xb68] sm:$0xff]
    %v587 = vld [vmem:[#allocation5 + $0xb70] sm:$0xff]
    %v588 = vld [vmem:[#allocation5 + $0xb78] sm:$0xff]
    %v589 = vld [vmem:[#allocation5 + $0xb80] sm:$0xff]
    %v590 = vld [vmem:[#allocation5 + $0xb88] sm:$0xff]
    %v591 = vld [vmem:[#allocation5 + $0xb90] sm:$0xff]
    %v592 = vld [vmem:[#allocation5 + $0xb98] sm:$0xff]
    %v593 = vld [vmem:[#allocation5 + $0xba0] sm:$0xff]
    %v594 = vld [vmem:[#allocation5 + $0xba8] sm:$0xff]
    %v595 = vld [vmem:[#allocation5 + $0xbb0] sm:$0xff]
    %v596 = vld [vmem:[#allocation5 + $0xbb8] sm:$0xff]
    %v597 = vld [vmem:[#allocation5 + $0xbc0] sm:$0xff]
    %v598 = vld [vmem:[#allocation5 + $0xbc8] sm:$0xff]
    %v599 = vld [vmem:[#allocation5 + $0xbd0] sm:$0xff]
    %v600 = vld [vmem:[#allocation5 + $0xbd8] sm:$0xff]
    %v601 = vld [vmem:[#allocation5 + $0xbe0] sm:$0xff]
    %v602 = vld [vmem:[#allocation5 + $0xbe8] sm:$0xff]
    %v603 = vld [vmem:[#allocation5 + $0xbf0] sm:$0xff]
    %v604 = vld [vmem:[#allocation5 + $0xbf8] sm:$0xff]
    %v605 = vld [vmem:[#allocation5 + $0xc00] sm:$0xff]
    %v606 = vld [vmem:[#allocation5 + $0xc08] sm:$0xff]
    %v607 = vld [vmem:[#allocation5 + $0xc10] sm:$0xff]
    %v608 = vld [vmem:[#allocation5 + $0xc18] sm:$0xff]
    %v609 = vld [vmem:[#allocation5 + $0xc20] sm:$0xff]
    %v610 = vld [vmem:[#allocation5 + $0xc28] sm:$0xff]
    %v611 = vld [vmem:[#allocation5 + $0xc30] sm:$0xff]
    %v612 = vld [vmem:[#allocation5 + $0xc38] sm:$0xff]
    %v613 = vld [vmem:[#allocation5 + $0xc40] sm:$0xff]
    %v614 = vld [vmem:[#allocation5 + $0xc48] sm:$0xff]
    %v615 = vld [vmem:[#allocation5 + $0xc50] sm:$0xff]
    %v616 = vld [vmem:[#allocation5 + $0xc58] sm:$0xff]
    %v617 = vld [vmem:[#allocation5 + $0xc60] sm:$0xff]
    %v618 = vld [vmem:[#allocation5 + $0xc68] sm:$0xff]
    %v619 = vld [vmem:[#allocation5 + $0xc70] sm:$0xff]
    %v620 = vld [vmem:[#allocation5 + $0xc78] sm:$0xff]
    %v621 = vld [vmem:[#allocation5 + $0xc80] sm:$0xff]
    %v622 = vld [vmem:[#allocation5 + $0xc88] sm:$0xff]
    %v623 = vld [vmem:[#allocation5 + $0xc90] sm:$0xff]
    %v624 = vld [vmem:[#allocation5 + $0xc98] sm:$0xff]
    %v625 = vld [vmem:[#allocation5 + $0xca0] sm:$0xff]
    %v626 = vld [vmem:[#allocation5 + $0xca8] sm:$0xff]
    %v627 = vld [vmem:[#allocation5 + $0xcb0] sm:$0xff]
    %v628 = vld [vmem:[#allocation5 + $0xcb8] sm:$0xff]
    %v629 = vld [vmem:[#allocation5 + $0xcc0] sm:$0xff]
    %v630 = vld [vmem:[#allocation5 + $0xcc8] sm:$0xff]
    %v631 = vld [vmem:[#allocation5 + $0xcd0] sm:$0xff]
    %v632 = vld [vmem:[#allocation5 + $0xcd8] sm:$0xff]
    %v633 = vld [vmem:[#allocation5 + $0xce0] sm:$0xff]
    %v634 = vld [vmem:[#allocation5 + $0xce8] sm:$0xff]
    %v635 = vld [vmem:[#allocation5 + $0xcf0] sm:$0xff]
    %v636 = vld [vmem:[#allocation5 + $0xcf8] sm:$0xff]
    %v637 = vld [vmem:[#allocation5 + $0xd00] sm:$0xff]
    %v638 = vld [vmem:[#allocation5 + $0xd08] sm:$0xff]
    %v639 = vld [vmem:[#allocation5 + $0xd10] sm:$0xff]
    %v640 = vld [vmem:[#allocation5 + $0xd18] sm:$0xff]
    %v641 = vld [vmem:[#allocation5 + $0xd20] sm:$0xff]
    %v642 = vld [vmem:[#allocation5 + $0xd28] sm:$0xff]
    %v643 = vld [vmem:[#allocation5 + $0xd30] sm:$0xff]
    %v644 = vld [vmem:[#allocation5 + $0xd38] sm:$0xff]
    %v645 = vld [vmem:[#allocation5 + $0xd40] sm:$0xff]
    %v646 = vld [vmem:[#allocation5 + $0xd48] sm:$0xff]
    %v647 = vld [vmem:[#allocation5 + $0xd50] sm:$0xff]
    %v648 = vld [vmem:[#allocation5 + $0xd58] sm:$0xff]
    %v649 = vld [vmem:[#allocation5 + $0xd60] sm:$0xff]
    %v650 = vld [vmem:[#allocation5 + $0xd68] sm:$0xff]
    %v651 = vld [vmem:[#allocation5 + $0xd70] sm:$0xff]
    %v652 = vld [vmem:[#allocation5 + $0xd78] sm:$0xff]
    %v653 = vld [vmem:[#allocation5 + $0xd80] sm:$0xff]
    %v654 = vld [vmem:[#allocation5 + $0xd88] sm:$0xff]
    %v655 = vld [vmem:[#allocation5 + $0xd90] sm:$0xff]
    %v656 = vld [vmem:[#allocation5 + $0xd98] sm:$0xff]
    %v657 = vld [vmem:[#allocation5 + $0xda0] sm:$0xff]
    %v658 = vld [vmem:[#allocation5 + $0xda8] sm:$0xff]
    %v659 = vld [vmem:[#allocation5 + $0xdb0] sm:$0xff]
    %v660 = vld [vmem:[#allocation5 + $0xdb8] sm:$0xff]
    %v661 = vld [vmem:[#allocation5 + $0xdc0] sm:$0xff]
    %v662 = vld [vmem:[#allocation5 + $0xdc8] sm:$0xff]
    %v663 = vld [vmem:[#allocation5 + $0xdd0] sm:$0xff]
    %v664 = vld [vmem:[#allocation5 + $0xdd8] sm:$0xff]
    %v665 = vld [vmem:[#allocation5 + $0xde0] sm:$0xff]
    %v666 = vld [vmem:[#allocation5 + $0xde8] sm:$0xff]
    %v667 = vld [vmem:[#allocation5 + $0xdf0] sm:$0xff]
    %v668 = vld [vmem:[#allocation5 + $0xdf8] sm:$0xff]
    %v669 = vld [vmem:[#allocation5 + $0xe00] sm:$0xff]
    %v670 = vld [vmem:[#allocation5 + $0xe08] sm:$0xff]
    %v671 = vld [vmem:[#allocation5 + $0xe10] sm:$0xff]
    %v672 = vld [vmem:[#allocation5 + $0xe18] sm:$0xff]
    %v673 = vld [vmem:[#allocation5 + $0xe20] sm:$0xff]
    %v674 = vld [vmem:[#allocation5 + $0xe28] sm:$0xff]
    %v675 = vld [vmem:[#allocation5 + $0xe30] sm:$0xff]
    %v676 = vld [vmem:[#allocation5 + $0xe38] sm:$0xff]
    %v677 = vld [vmem:[#allocation5 + $0xe40] sm:$0xff]
    %v678 = vld [vmem:[#allocation5 + $0xe48] sm:$0xff]
    %v679 = vld [vmem:[#allocation5 + $0xe50] sm:$0xff]
    %v680 = vld [vmem:[#allocation5 + $0xe58] sm:$0xff]
    %v681 = vld [vmem:[#allocation5 + $0xe60] sm:$0xff]
    %v682 = vld [vmem:[#allocation5 + $0xe68] sm:$0xff]
    %v683 = vld [vmem:[#allocation5 + $0xe70] sm:$0xff]
    %v684 = vld [vmem:[#allocation5 + $0xe78] sm:$0xff]
    %v685 = vld [vmem:[#allocation5 + $0xe80] sm:$0xff]
    %v686 = vld [vmem:[#allocation5 + $0xe88] sm:$0xff]
    %v687 = vld [vmem:[#allocation5 + $0xe90] sm:$0xff]
    %v688 = vld [vmem:[#allocation5 + $0xe98] sm:$0xff]
    %v689 = vld [vmem:[#allocation5 + $0xea0] sm:$0xff]
    %v690 = vld [vmem:[#allocation5 + $0xea8] sm:$0xff]
    %v691 = vld [vmem:[#allocation5 + $0xeb0] sm:$0xff]
    %v692 = vld [vmem:[#allocation5 + $0xeb8] sm:$0xff]
    %v693 = vld [vmem:[#allocation5 + $0xec0] sm:$0xff]
    %v694 = vld [vmem:[#allocation5 + $0xec8] sm:$0xff]
    %v695 = vld [vmem:[#allocation5 + $0xed0] sm:$0xff]
    %v696 = vld [vmem:[#allocation5 + $0xed8] sm:$0xff]
    %v697 = vld [vmem:[#allocation5 + $0xee0] sm:$0xff]
    %v698 = vld [vmem:[#allocation5 + $0xee8] sm:$0xff]
    %v699 = vld [vmem:[#allocation5 + $0xef0] sm:$0xff]
    %v700 = vld [vmem:[#allocation5 + $0xef8] sm:$0xff]
    %v701 = vld [vmem:[#allocation5 + $0xf00] sm:$0xff]
    %v702 = vld [vmem:[#allocation5 + $0xf08] sm:$0xff]
    %v703 = vld [vmem:[#allocation5 + $0xf10] sm:$0xff]
    %v704 = vld [vmem:[#allocation5 + $0xf18] sm:$0xff]
    %v705 = vld [vmem:[#allocation5 + $0xf20] sm:$0xff]
    %v706 = vld [vmem:[#allocation5 + $0xf28] sm:$0xff]
    %v707 = vld [vmem:[#allocation5 + $0xf30] sm:$0xff]
    %v708 = vld [vmem:[#allocation5 + $0xf38] sm:$0xff]
    %v709 = vld [vmem:[#allocation5 + $0xf40] sm:$0xff]
    %v710 = vld [vmem:[#allocation5 + $0xf48] sm:$0xff]
    %v711 = vld [vmem:[#allocation5 + $0xf50] sm:$0xff]
    %v712 = vld [vmem:[#allocation5 + $0xf58] sm:$0xff]
    %v713 = vld [vmem:[#allocation5 + $0xf60] sm:$0xff]
    %v714 = vld [vmem:[#allocation5 + $0xf68] sm:$0xff]
    %v715 = vld [vmem:[#allocation5 + $0xf70] sm:$0xff]
    %v716 = vld [vmem:[#allocation5 + $0xf78] sm:$0xff]
    %v717 = vld [vmem:[#allocation5 + $0xf80] sm:$0xff]
    %v718 = vld [vmem:[#allocation5 + $0xf88] sm:$0xff]
    %v719 = vld [vmem:[#allocation5 + $0xf90] sm:$0xff]
    %v720 = vld [vmem:[#allocation5 + $0xf98] sm:$0xff]
    %v721 = vld [vmem:[#allocation5 + $0xfa0] sm:$0xff]
    %v722 = vld [vmem:[#allocation5 + $0xfa8] sm:$0xff]
    %v723 = vld [vmem:[#allocation5 + $0xfb0] sm:$0xff]
    %v724 = vld [vmem:[#allocation5 + $0xfb8] sm:$0xff]
    %v725 = vld [vmem:[#allocation5 + $0xfc0] sm:$0xff]
    %v726 = vld [vmem:[#allocation5 + $0xfc8] sm:$0xff]
    %v727 = vld [vmem:[#allocation5 + $0xfd0] sm:$0xff]
    %v728 = vld [vmem:[#allocation5 + $0xfd8] sm:$0xff]
    %v729 = vld [vmem:[#allocation5 + $0xfe0] sm:$0xff]
    %v730 = vld [vmem:[#allocation5 + $0xfe8] sm:$0xff]
    %v731 = vld [vmem:[#allocation5 + $0xff0] sm:$0xff]
    %v732 = vld [vmem:[#allocation5 + $0xff8] sm:$0xff]
    %v733 = vld [vmem:[#allocation5 + $0x1000] sm:$0xff]
    %v734 = vld [vmem:[#allocation5 + $0x1008] sm:$0xff]
    %v735 = vld [vmem:[#allocation5 + $0x1010] sm:$0xff]
    %v736 = vld [vmem:[#allocation5 + $0x1018] sm:$0xff]
    %v737 = vld [vmem:[#allocation5 + $0x1020] sm:$0xff]
    %v738 = vld [vmem:[#allocation5 + $0x1028] sm:$0xff]
    %v739 = vld [vmem:[#allocation5 + $0x1030] sm:$0xff]
    %v740 = vld [vmem:[#allocation5 + $0x1038] sm:$0xff]
    %v741 = vld [vmem:[#allocation5 + $0x1040] sm:$0xff]
    %v742 = vld [vmem:[#allocation5 + $0x1048] sm:$0xff]
    %v743 = vld [vmem:[#allocation5 + $0x1050] sm:$0xff]
    %v744 = vld [vmem:[#allocation5 + $0x1058] sm:$0xff]
    %v745 = vld [vmem:[#allocation5 + $0x1060] sm:$0xff]
    %v746 = vld [vmem:[#allocation5 + $0x1068] sm:$0xff]
    %v747 = vld [vmem:[#allocation5 + $0x1070] sm:$0xff]
    %v748 = vld [vmem:[#allocation5 + $0x1078] sm:$0xff]
    %v749 = vld [vmem:[#allocation5 + $0x1080] sm:$0xff]
    %v750 = vld [vmem:[#allocation5 + $0x1088] sm:$0xff]
    %v751 = vld [vmem:[#allocation5 + $0x1090] sm:$0xff]
    %v752 = vld [vmem:[#allocation5 + $0x1098] sm:$0xff]
    %v753 = vld [vmem:[#allocation5 + $0x10a0] sm:$0xff]
    %v754 = vld [vmem:[#allocation5 + $0x10a8] sm:$0xff]
    %v755 = vld [vmem:[#allocation5 + $0x10b0] sm:$0xff]
    %v756 = vld [vmem:[#allocation5 + $0x10b8] sm:$0xff]
    %v757 = vld [vmem:[#allocation5 + $0x10c0] sm:$0xff]
    %v758 = vld [vmem:[#allocation5 + $0x10c8] sm:$0xff]
    %v759 = vld [vmem:[#allocation5 + $0x10d0] sm:$0xff]
    %v760 = vld [vmem:[#allocation5 + $0x10d8] sm:$0xff]
    %v761 = vld [vmem:[#allocation5 + $0x10e0] sm:$0xff]
    %v762 = vld [vmem:[#allocation5 + $0x10e8] sm:$0xff]
    %v763 = vld [vmem:[#allocation5 + $0x10f0] sm:$0xff]
    %v764 = vld [vmem:[#allocation5 + $0x10f8] sm:$0xff]
    %v765 = vld [vmem:[#allocation5 + $0x1100] sm:$0xff]
    %v766 = vld [vmem:[#allocation5 + $0x1108] sm:$0xff]
    %v767 = vld [vmem:[#allocation5 + $0x1110] sm:$0xff]
    %v768 = vld [vmem:[#allocation5 + $0x1118] sm:$0xff]
    %v769 = vld [vmem:[#allocation5 + $0x1120] sm:$0xff]
    %v770 = vld [vmem:[#allocation5 + $0x1128] sm:$0xff]
    %v771 = vld [vmem:[#allocation5 + $0x1130] sm:$0xff]
    %v772 = vld [vmem:[#allocation5 + $0x1138] sm:$0xff]
    %v773 = vld [vmem:[#allocation5 + $0x1140] sm:$0xff]
    %v774 = vld [vmem:[#allocation5 + $0x1148] sm:$0xff]
    %v775 = vld [vmem:[#allocation5 + $0x1150] sm:$0xff]
    %v776 = vld [vmem:[#allocation5 + $0x1158] sm:$0xff]
    %v777 = vld [vmem:[#allocation5 + $0x1160] sm:$0xff]
    %v778 = vld [vmem:[#allocation5 + $0x1168] sm:$0xff]
    %v779 = vld [vmem:[#allocation5 + $0x1170] sm:$0xff]
    %v780 = vld [vmem:[#allocation5 + $0x1178] sm:$0xff]
    %v781 = vld [vmem:[#allocation5 + $0x1180] sm:$0xff]
    %v782 = vld [vmem:[#allocation5 + $0x1188] sm:$0xff]
    %v783 = vld [vmem:[#allocation5 + $0x1190] sm:$0xff]
    %v784 = vld [vmem:[#allocation5 + $0x1198] sm:$0xff]
    %v785 = vld [vmem:[#allocation5 + $0x11a0] sm:$0xff]
    %v786 = vld [vmem:[#allocation5 + $0x11a8] sm:$0xff]
    %v787 = vld [vmem:[#allocation5 + $0x11b0] sm:$0xff]
    %v788 = vld [vmem:[#allocation5 + $0x11b8] sm:$0xff]
    %v789 = vld [vmem:[#allocation5 + $0x11c0] sm:$0xff]
    %v790 = vld [vmem:[#allocation5 + $0x11c8] sm:$0xff]
    %v791 = vld [vmem:[#allocation5 + $0x11d0] sm:$0xff]
    %v792 = vld [vmem:[#allocation5 + $0x11d8] sm:$0xff]
    %v793 = vld [vmem:[#allocation5 + $0x11e0] sm:$0xff]
    %v794 = vld [vmem:[#allocation5 + $0x11e8] sm:$0xff]
    %v795 = vld [vmem:[#allocation5 + $0x11f0] sm:$0xff]
    %v796 = vld [vmem:[#allocation5 + $0x11f8] sm:$0xff]
    %v797 = vld [vmem:[#allocation5 + $0x1200] sm:$0xff]
    %v798 = vld [vmem:[#allocation5 + $0x1208] sm:$0xff]
    %v799 = vld [vmem:[#allocation5 + $0x1210] sm:$0xff]
    %v800 = vld [vmem:[#allocation5 + $0x1218] sm:$0xff]
    %v801 = vld [vmem:[#allocation5 + $0x1220] sm:$0xff]
    %v802 = vld [vmem:[#allocation5 + $0x1228] sm:$0xff]
    %v803 = vld [vmem:[#allocation5 + $0x1230] sm:$0xff]
    %v804 = vld [vmem:[#allocation5 + $0x1238] sm:$0xff]
    %v805 = vld [vmem:[#allocation5 + $0x1240] sm:$0xff]
    %v806 = vld [vmem:[#allocation5 + $0x1248] sm:$0xff]
    %v807 = vld [vmem:[#allocation5 + $0x1250] sm:$0xff]
    %v808 = vld [vmem:[#allocation5 + $0x1258] sm:$0xff]
    %v809 = vld [vmem:[#allocation5 + $0x1260] sm:$0xff]
    %v810 = vld [vmem:[#allocation5 + $0x1268] sm:$0xff]
    %v811 = vld [vmem:[#allocation5 + $0x1270] sm:$0xff]
    %v812 = vld [vmem:[#allocation5 + $0x1278] sm:$0xff]
    %v813 = vld [vmem:[#allocation5 + $0x1280] sm:$0xff]
    %v814 = vld [vmem:[#allocation5 + $0x1288] sm:$0xff]
    %v815 = vld [vmem:[#allocation5 + $0x1290] sm:$0xff]
    %v816 = vld [vmem:[#allocation5 + $0x1298] sm:$0xff]
    %v817 = vld [vmem:[#allocation5 + $0x12a0] sm:$0xff]
    %v818 = vld [vmem:[#allocation5 + $0x12a8] sm:$0xff]
    %v819 = vld [vmem:[#allocation5 + $0x12b0] sm:$0xff]
    %v820 = vld [vmem:[#allocation5 + $0x12b8] sm:$0xff]
    %v821 = vld [vmem:[#allocation5 + $0x12c0] sm:$0xff]
    %v822 = vld [vmem:[#allocation5 + $0x12c8] sm:$0xff]
    %v823 = vld [vmem:[#allocation5 + $0x12d0] sm:$0xff]
    %v824 = vld [vmem:[#allocation5 + $0x12d8] sm:$0xff]
    %v825 = vld [vmem:[#allocation5 + $0x12e0] sm:$0xff]
    %v826 = vld [vmem:[#allocation5 + $0x12e8] sm:$0xff]
    %v827 = vld [vmem:[#allocation5 + $0x12f0] sm:$0xff]
    %v828 = vld [vmem:[#allocation5 + $0x12f8] sm:$0xff]
    %v829 = vld [vmem:[#allocation5 + $0x1300] sm:$0xff]
    %v830 = vld [vmem:[#allocation5 + $0x1308] sm:$0xff]
    %v831 = vld [vmem:[#allocation5 + $0x1310] sm:$0xff]
    %v832 = vld [vmem:[#allocation5 + $0x1318] sm:$0xff]
    %v833 = vld [vmem:[#allocation5 + $0x1320] sm:$0xff]
    %v834 = vld [vmem:[#allocation5 + $0x1328] sm:$0xff]
    %v835 = vld [vmem:[#allocation5 + $0x1330] sm:$0xff]
    %v836 = vld [vmem:[#allocation5 + $0x1338] sm:$0xff]
    %v837 = vld [vmem:[#allocation5 + $0x1340] sm:$0xff]
    %v838 = vld [vmem:[#allocation5 + $0x1348] sm:$0xff]
    %v839 = vld [vmem:[#allocation5 + $0x1350] sm:$0xff]
    %v840 = vld [vmem:[#allocation5 + $0x1358] sm:$0xff]
    %v841 = vld [vmem:[#allocation5 + $0x1360] sm:$0xff]
    %v842 = vld [vmem:[#allocation5 + $0x1368] sm:$0xff]
    %v843 = vld [vmem:[#allocation5 + $0x1370] sm:$0xff]
    %v844 = vld [vmem:[#allocation5 + $0x1378] sm:$0xff]
    %v845 = vld [vmem:[#allocation5 + $0x1380] sm:$0xff]
    %v846 = vld [vmem:[#allocation5 + $0x1388] sm:$0xff]
    %v847 = vld [vmem:[#allocation5 + $0x1390] sm:$0xff]
    %v848 = vld [vmem:[#allocation5 + $0x1398] sm:$0xff]
    %v849 = vld [vmem:[#allocation5 + $0x13a0] sm:$0xff]
    %v850 = vld [vmem:[#allocation5 + $0x13a8] sm:$0xff]
    %v851 = vld [vmem:[#allocation5 + $0x13b0] sm:$0xff]
    %v852 = vld [vmem:[#allocation5 + $0x13b8] sm:$0xff]
    %v853 = vld [vmem:[#allocation5 + $0x13c0] sm:$0xff]
    %v854 = vld [vmem:[#allocation5 + $0x13c8] sm:$0xff]
    %v855 = vld [vmem:[#allocation5 + $0x13d0] sm:$0xff]
    %v856 = vld [vmem:[#allocation5 + $0x13d8] sm:$0xff]
    %v857 = vld [vmem:[#allocation5 + $0x13e0] sm:$0xff]
    %v858 = vld [vmem:[#allocation5 + $0x13e8] sm:$0xff]
    %v859 = vld [vmem:[#allocation5 + $0x13f0] sm:$0xff]
    %v860 = vld [vmem:[#allocation5 + $0x13f8] sm:$0xff]
    %v861 = vld [vmem:[#allocation5 + $0x1400] sm:$0xff]
    %v862 = vld [vmem:[#allocation5 + $0x1408] sm:$0xff]
    %v863 = vld [vmem:[#allocation5 + $0x1410] sm:$0xff]
    %v864 = vld [vmem:[#allocation5 + $0x1418] sm:$0xff]
    %v865 = vld [vmem:[#allocation5 + $0x1420] sm:$0xff]
    %v866 = vld [vmem:[#allocation5 + $0x1428] sm:$0xff]
    %v867 = vld [vmem:[#allocation5 + $0x1430] sm:$0xff]
    %v868 = vld [vmem:[#allocation5 + $0x1438] sm:$0xff]
    %v869 = vld [vmem:[#allocation5 + $0x1440] sm:$0xff]
    %v870 = vld [vmem:[#allocation5 + $0x1448] sm:$0xff]
    %v871 = vld [vmem:[#allocation5 + $0x1450] sm:$0xff]
    %v872 = vld [vmem:[#allocation5 + $0x1458] sm:$0xff]
    %v873 = vld [vmem:[#allocation5 + $0x1460] sm:$0xff]
    %v874 = vld [vmem:[#allocation5 + $0x1468] sm:$0xff]
    %v875 = vld [vmem:[#allocation5 + $0x1470] sm:$0xff]
    %v876 = vld [vmem:[#allocation5 + $0x1478] sm:$0xff]
    %v877 = vld [vmem:[#allocation5 + $0x1480] sm:$0xff]
    %v878 = vld [vmem:[#allocation5 + $0x1488] sm:$0xff]
    %v879 = vld [vmem:[#allocation5 + $0x1490] sm:$0xff]
    %v880 = vld [vmem:[#allocation5 + $0x1498] sm:$0xff]
    %v881 = vld [vmem:[#allocation5 + $0x14a0] sm:$0xff]
    %v882 = vld [vmem:[#allocation5 + $0x14a8] sm:$0xff]
    %v883 = vld [vmem:[#allocation5 + $0x14b0] sm:$0xff]
    %v884 = vld [vmem:[#allocation5 + $0x14b8] sm:$0xff]
    %v885 = vld [vmem:[#allocation5 + $0x14c0] sm:$0xff]
    %v886 = vld [vmem:[#allocation5 + $0x14c8] sm:$0xff]
    %v887 = vld [vmem:[#allocation5 + $0x14d0] sm:$0xff]
    %v888 = vld [vmem:[#allocation5 + $0x14d8] sm:$0xff]
    %v889 = vld [vmem:[#allocation5 + $0x14e0] sm:$0xff]
    %v890 = vld [vmem:[#allocation5 + $0x14e8] sm:$0xff]
    %v891 = vld [vmem:[#allocation5 + $0x14f0] sm:$0xff]
    %v892 = vld [vmem:[#allocation5 + $0x14f8] sm:$0xff]
    %v893 = vld [vmem:[#allocation5 + $0x1500] sm:$0xff]
    %v894 = vld [vmem:[#allocation5 + $0x1508] sm:$0xff]
    %v895 = vld [vmem:[#allocation5 + $0x1510] sm:$0xff]
    %v896 = vld [vmem:[#allocation5 + $0x1518] sm:$0xff]
    %v897 = vld [vmem:[#allocation5 + $0x1520] sm:$0xff]
    %v898 = vld [vmem:[#allocation5 + $0x1528] sm:$0xff]
    %v899 = vld [vmem:[#allocation5 + $0x1530] sm:$0xff]
    %v900 = vld [vmem:[#allocation5 + $0x1538] sm:$0xff]
    %v901 = vld [vmem:[#allocation5 + $0x1540] sm:$0xff]
    %v902 = vld [vmem:[#allocation5 + $0x1548] sm:$0xff]
    %v903 = vld [vmem:[#allocation5 + $0x1550] sm:$0xff]
    %v904 = vld [vmem:[#allocation5 + $0x1558] sm:$0xff]
    %v905 = vld [vmem:[#allocation5 + $0x1560] sm:$0xff]
    %v906 = vld [vmem:[#allocation5 + $0x1568] sm:$0xff]
    %v907 = vld [vmem:[#allocation5 + $0x1570] sm:$0xff]
    %v908 = vld [vmem:[#allocation5 + $0x1578] sm:$0xff]
    %v909 = vld [vmem:[#allocation5 + $0x1580] sm:$0xff]
    %v910 = vld [vmem:[#allocation5 + $0x1588] sm:$0xff]
    %v911 = vld [vmem:[#allocation5 + $0x1590] sm:$0xff]
    %v912 = vld [vmem:[#allocation5 + $0x1598] sm:$0xff]
    %v913 = vld [vmem:[#allocation5 + $0x15a0] sm:$0xff]
    %v914 = vld [vmem:[#allocation5 + $0x15a8] sm:$0xff]
    %v915 = vld [vmem:[#allocation5 + $0x15b0] sm:$0xff]
    %v916 = vld [vmem:[#allocation5 + $0x15b8] sm:$0xff]
    %v917 = vld [vmem:[#allocation5 + $0x15c0] sm:$0xff]
    %v918 = vld [vmem:[#allocation5 + $0x15c8] sm:$0xff]
    %v919 = vld [vmem:[#allocation5 + $0x15d0] sm:$0xff]
    %v920 = vld [vmem:[#allocation5 + $0x15d8] sm:$0xff]
    %v921 = vld [vmem:[#allocation5 + $0x15e0] sm:$0xff]
    %v922 = vld [vmem:[#allocation5 + $0x15e8] sm:$0xff]
    %v923 = vld [vmem:[#allocation5 + $0x15f0] sm:$0xff]
    %v924 = vld [vmem:[#allocation5 + $0x15f8] sm:$0xff]
    %v925 = vld [vmem:[#allocation5 + $0x1600] sm:$0xff]
    %v926 = vld [vmem:[#allocation5 + $0x1608] sm:$0xff]
    %v927 = vld [vmem:[#allocation5 + $0x1610] sm:$0xff]
    %v928 = vld [vmem:[#allocation5 + $0x1618] sm:$0xff]
    %v929 = vld [vmem:[#allocation5 + $0x1620] sm:$0xff]
    %v930 = vld [vmem:[#allocation5 + $0x1628] sm:$0xff]
    %v931 = vld [vmem:[#allocation5 + $0x1630] sm:$0xff]
    %v932 = vld [vmem:[#allocation5 + $0x1638] sm:$0xff]
    %v933 = vld [vmem:[#allocation5 + $0x1640] sm:$0xff]
    %v934 = vld [vmem:[#allocation5 + $0x1648] sm:$0xff]
    %v935 = vld [vmem:[#allocation5 + $0x1650] sm:$0xff]
    %v936 = vld [vmem:[#allocation5 + $0x1658] sm:$0xff]
    %v937 = vld [vmem:[#allocation5 + $0x1660] sm:$0xff]
    %v938 = vld [vmem:[#allocation5 + $0x1668] sm:$0xff]
    %v939 = vld [vmem:[#allocation5 + $0x1670] sm:$0xff]
    %v940 = vld [vmem:[#allocation5 + $0x1678] sm:$0xff]
    %v941 = vld [vmem:[#allocation5 + $0x1680] sm:$0xff]
    %v942 = vld [vmem:[#allocation5 + $0x1688] sm:$0xff]
    %v943 = vld [vmem:[#allocation5 + $0x1690] sm:$0xff]
    %v944 = vld [vmem:[#allocation5 + $0x1698] sm:$0xff]
    %v945 = vld [vmem:[#allocation5 + $0x16a0] sm:$0xff]
    %v946 = vld [vmem:[#allocation5 + $0x16a8] sm:$0xff]
    %v947 = vld [vmem:[#allocation5 + $0x16b0] sm:$0xff]
    %v948 = vld [vmem:[#allocation5 + $0x16b8] sm:$0xff]
    %v949 = vld [vmem:[#allocation5 + $0x16c0] sm:$0xff]
    %v950 = vld [vmem:[#allocation5 + $0x16c8] sm:$0xff]
    %v951 = vld [vmem:[#allocation5 + $0x16d0] sm:$0xff]
    %v952 = vld [vmem:[#allocation5 + $0x16d8] sm:$0xff]
    %v953 = vld [vmem:[#allocation5 + $0x16e0] sm:$0xff]
    %v954 = vld [vmem:[#allocation5 + $0x16e8] sm:$0xff]
    %v955 = vld [vmem:[#allocation5 + $0x16f0] sm:$0xff]
    %v956 = vld [vmem:[#allocation5 + $0x16f8] sm:$0xff]
    %v957 = vld [vmem:[#allocation5 + $0x1700] sm:$0xff]
    %v958 = vld [vmem:[#allocation5 + $0x1708] sm:$0xff]
    %v959 = vld [vmem:[#allocation5 + $0x1710] sm:$0xff]
    %v960 = vld [vmem:[#allocation5 + $0x1718] sm:$0xff]
    %v961 = vld [vmem:[#allocation5 + $0x1720] sm:$0xff]
    %v962 = vld [vmem:[#allocation5 + $0x1728] sm:$0xff]
    %v963 = vld [vmem:[#allocation5 + $0x1730] sm:$0xff]
    %v964 = vld [vmem:[#allocation5 + $0x1738] sm:$0xff]
    %v965 = vld [vmem:[#allocation5 + $0x1740] sm:$0xff]
    %v966 = vld [vmem:[#allocation5 + $0x1748] sm:$0xff]
    %v967 = vld [vmem:[#allocation5 + $0x1750] sm:$0xff]
    %v968 = vld [vmem:[#allocation5 + $0x1758] sm:$0xff]
    %v969 = vld [vmem:[#allocation5 + $0x1760] sm:$0xff]
    %v970 = vld [vmem:[#allocation5 + $0x1768] sm:$0xff]
    %v971 = vld [vmem:[#allocation5 + $0x1770] sm:$0xff]
    %v972 = vld [vmem:[#allocation5 + $0x1778] sm:$0xff]
    %v973 = vld [vmem:[#allocation5 + $0x1780] sm:$0xff]
    %v974 = vld [vmem:[#allocation5 + $0x1788] sm:$0xff]
    %v975 = vld [vmem:[#allocation5 + $0x1790] sm:$0xff]
    %v976 = vld [vmem:[#allocation5 + $0x1798] sm:$0xff]
    %v977 = vld [vmem:[#allocation5 + $0x17a0] sm:$0xff]
    %v978 = vld [vmem:[#allocation5 + $0x17a8] sm:$0xff]
    %v979 = vld [vmem:[#allocation5 + $0x17b0] sm:$0xff]
    %v980 = vld [vmem:[#allocation5 + $0x17b8] sm:$0xff]
    %v981 = vld [vmem:[#allocation5 + $0x17c0] sm:$0xff]
    %v982 = vld [vmem:[#allocation5 + $0x17c8] sm:$0xff]
    %v983 = vld [vmem:[#allocation5 + $0x17d0] sm:$0xff]
    %v984 = vld [vmem:[#allocation5 + $0x17d8] sm:$0xff]
    %v985 = vld [vmem:[#allocation5 + $0x17e0] sm:$0xff]
    %v986 = vld [vmem:[#allocation5 + $0x17e8] sm:$0xff]
    %v987 = vld [vmem:[#allocation5 + $0x17f0] sm:$0xff]
    %v988 = vld [vmem:[#allocation5 + $0x17f8] sm:$0xff]
    %v989 = vld [vmem:[#allocation5 + $0x1800] sm:$0xff]
    %v990 = vld [vmem:[#allocation5 + $0x1808] sm:$0xff]
    %v991 = vld [vmem:[#allocation5 + $0x1810] sm:$0xff]
    %v992 = vld [vmem:[#allocation5 + $0x1818] sm:$0xff]
    %v993 = vld [vmem:[#allocation5 + $0x1820] sm:$0xff]
    %v994 = vld [vmem:[#allocation5 + $0x1828] sm:$0xff]
    %v995 = vld [vmem:[#allocation5 + $0x1830] sm:$0xff]
    %v996 = vld [vmem:[#allocation5 + $0x1838] sm:$0xff]
    %v997 = vld [vmem:[#allocation5 + $0x1840] sm:$0xff]
    %v998 = vld [vmem:[#allocation5 + $0x1848] sm:$0xff]
    %v999 = vld [vmem:[#allocation5 + $0x1850] sm:$0xff]
    %v1000 = vld [vmem:[#allocation5 + $0x1858] sm:$0xff]
    %v1001 = vld [vmem:[#allocation5 + $0x1860] sm:$0xff]
    %v1002 = vld [vmem:[#allocation5 + $0x1868] sm:$0xff]
    %v1003 = vld [vmem:[#allocation5 + $0x1870] sm:$0xff]
    %v1004 = vld [vmem:[#allocation5 + $0x1878] sm:$0xff]
    %v1005 = vld [vmem:[#allocation5 + $0x1880] sm:$0xff]
    %v1006 = vld [vmem:[#allocation5 + $0x1888] sm:$0xff]
    %v1007 = vld [vmem:[#allocation5 + $0x1890] sm:$0xff]
    %v1008 = vld [vmem:[#allocation5 + $0x1898] sm:$0xff]
    %v1009 = vld [vmem:[#allocation5 + $0x18a0] sm:$0xff]
    %v1010 = vld [vmem:[#allocation5 + $0x18a8] sm:$0xff]
    %v1011 = vld [vmem:[#allocation5 + $0x18b0] sm:$0xff]
    %v1012 = vld [vmem:[#allocation5 + $0x18b8] sm:$0xff]
    %v1013 = vld [vmem:[#allocation5 + $0x18c0] sm:$0xff]
    %v1014 = vld [vmem:[#allocation5 + $0x18c8] sm:$0xff]
    %v1015 = vld [vmem:[#allocation5 + $0x18d0] sm:$0xff]
    %v1016 = vld [vmem:[#allocation5 + $0x18d8] sm:$0xff]
    %v1017 = vld [vmem:[#allocation5 + $0x18e0] sm:$0xff]
    %v1018 = vld [vmem:[#allocation5 + $0x18e8] sm:$0xff]
    %v1019 = vld [vmem:[#allocation5 + $0x18f0] sm:$0xff]
    %v1020 = vld [vmem:[#allocation5 + $0x18f8] sm:$0xff]
    %v1021 = vld [vmem:[#allocation5 + $0x1900] sm:$0xff]
    %v1022 = vld [vmem:[#allocation5 + $0x1908] sm:$0xff]
    %v1023 = vld [vmem:[#allocation5 + $0x1910] sm:$0xff]
    %v1024 = vld [vmem:[#allocation5 + $0x1918] sm:$0xff]
    %v1025 = vld [vmem:[#allocation5 + $0x1920] sm:$0xff]
    %v1026 = vld [vmem:[#allocation5 + $0x1928] sm:$0xff]
    %v1027 = vld [vmem:[#allocation5 + $0x1930] sm:$0xff]
    %v1028 = vld [vmem:[#allocation5 + $0x1938] sm:$0xff]
    %v1029 = vld [vmem:[#allocation5 + $0x1940] sm:$0xff]
    %v1030 = vld [vmem:[#allocation5 + $0x1948] sm:$0xff]
    %v1031 = vld [vmem:[#allocation5 + $0x1950] sm:$0xff]
    %v1032 = vld [vmem:[#allocation5 + $0x1958] sm:$0xff]
    %v1033 = vld [vmem:[#allocation5 + $0x1960] sm:$0xff]
    %v1034 = vld [vmem:[#allocation5 + $0x1968] sm:$0xff]
    %v1035 = vld [vmem:[#allocation5 + $0x1970] sm:$0xff]
    %v1036 = vld [vmem:[#allocation5 + $0x1978] sm:$0xff]
    %v1037 = vld [vmem:[#allocation5 + $0x1980] sm:$0xff]
    %v1038 = vld [vmem:[#allocation5 + $0x1988] sm:$0xff]
    %v1039 = vld [vmem:[#allocation5 + $0x1990] sm:$0xff]
    %v1040 = vld [vmem:[#allocation5 + $0x1998] sm:$0xff]
    %v1041 = vld [vmem:[#allocation5 + $0x19a0] sm:$0xff]
    %v1042 = vld [vmem:[#allocation5 + $0x19a8] sm:$0xff]
    %v1043 = vld [vmem:[#allocation5 + $0x19b0] sm:$0xff]
    %v1044 = vld [vmem:[#allocation5 + $0x19b8] sm:$0xff]
    %v1045 = vld [vmem:[#allocation5 + $0x19c0] sm:$0xff]
    %v1046 = vld [vmem:[#allocation5 + $0x19c8] sm:$0xff]
    %v1047 = vld [vmem:[#allocation5 + $0x19d0] sm:$0xff]
    %v1048 = vld [vmem:[#allocation5 + $0x19d8] sm:$0xff]
    %v1049 = vld [vmem:[#allocation5 + $0x19e0] sm:$0xff]
    %v1050 = vld [vmem:[#allocation5 + $0x19e8] sm:$0xff]
    %v1051 = vld [vmem:[#allocation5 + $0x19f0] sm:$0xff]
    %v1052 = vld [vmem:[#allocation5 + $0x19f8] sm:$0xff]
    %v1053 = vld [vmem:[#allocation5 + $0x1a00] sm:$0xff]
    %v1054 = vld [vmem:[#allocation5 + $0x1a08] sm:$0xff]
    %v1055 = vld [vmem:[#allocation5 + $0x1a10] sm:$0xff]
    %v1056 = vld [vmem:[#allocation5 + $0x1a18] sm:$0xff]
    %v1057 = vld [vmem:[#allocation5 + $0x1a20] sm:$0xff]
    %v1058 = vld [vmem:[#allocation5 + $0x1a28] sm:$0xff]
    %v1059 = vld [vmem:[#allocation5 + $0x1a30] sm:$0xff]
    %v1060 = vld [vmem:[#allocation5 + $0x1a38] sm:$0xff]
    %v1061 = vld [vmem:[#allocation5 + $0x1a40] sm:$0xff]
    %v1062 = vld [vmem:[#allocation5 + $0x1a48] sm:$0xff]
    %v1063 = vld [vmem:[#allocation5 + $0x1a50] sm:$0xff]
    %v1064 = vld [vmem:[#allocation5 + $0x1a58] sm:$0xff]
    %v1065 = vld [vmem:[#allocation5 + $0x1a60] sm:$0xff]
    %v1066 = vld [vmem:[#allocation5 + $0x1a68] sm:$0xff]
    %v1067 = vld [vmem:[#allocation5 + $0x1a70] sm:$0xff]
    %v1068 = vld [vmem:[#allocation5 + $0x1a78] sm:$0xff]
    %v1069 = vld [vmem:[#allocation5 + $0x1a80] sm:$0xff]
    %v1070 = vld [vmem:[#allocation5 + $0x1a88] sm:$0xff]
    %v1071 = vld [vmem:[#allocation5 + $0x1a90] sm:$0xff]
    %v1072 = vld [vmem:[#allocation5 + $0x1a98] sm:$0xff]
    %v1073 = vld [vmem:[#allocation5 + $0x1aa0] sm:$0xff]
    %v1074 = vld [vmem:[#allocation5 + $0x1aa8] sm:$0xff]
    %v1075 = vld [vmem:[#allocation5 + $0x1ab0] sm:$0xff]
    %v1076 = vld [vmem:[#allocation5 + $0x1ab8] sm:$0xff]
    %v1077 = vld [vmem:[#allocation5 + $0x1ac0] sm:$0xff]
    %v1078 = vld [vmem:[#allocation5 + $0x1ac8] sm:$0xff]
    %v1079 = vld [vmem:[#allocation5 + $0x1ad0] sm:$0xff]
    %v1080 = vld [vmem:[#allocation5 + $0x1ad8] sm:$0xff]
    %v1081 = vld [vmem:[#allocation5 + $0x1ae0] sm:$0xff]
    %v1082 = vld [vmem:[#allocation5 + $0x1ae8] sm:$0xff]
    %v1083 = vld [vmem:[#allocation5 + $0x1af0] sm:$0xff]
    %v1084 = vld [vmem:[#allocation5 + $0x1af8] sm:$0xff]
    %v1085 = vld [vmem:[#allocation5 + $0x1b00] sm:$0xff]
    %v1086 = vld [vmem:[#allocation5 + $0x1b08] sm:$0xff]
    %v1087 = vld [vmem:[#allocation5 + $0x1b10] sm:$0xff]
    %v1088 = vld [vmem:[#allocation5 + $0x1b18] sm:$0xff]
    %v1089 = vld [vmem:[#allocation5 + $0x1b20] sm:$0xff]
    %v1090 = vld [vmem:[#allocation5 + $0x1b28] sm:$0xff]
    %v1091 = vld [vmem:[#allocation5 + $0x1b30] sm:$0xff]
    %v1092 = vld [vmem:[#allocation5 + $0x1b38] sm:$0xff]
    %v1093 = vld [vmem:[#allocation5 + $0x1b40] sm:$0xff]
    %v1094 = vld [vmem:[#allocation5 + $0x1b48] sm:$0xff]
    %v1095 = vld [vmem:[#allocation5 + $0x1b50] sm:$0xff]
    %v1096 = vld [vmem:[#allocation5 + $0x1b58] sm:$0xff]
    %v1097 = vld [vmem:[#allocation5 + $0x1b60] sm:$0xff]
    %v1098 = vld [vmem:[#allocation5 + $0x1b68] sm:$0xff]
    %v1099 = vld [vmem:[#allocation5 + $0x1b70] sm:$0xff]
    %v1100 = vld [vmem:[#allocation5 + $0x1b78] sm:$0xff]
    %v1101 = vld [vmem:[#allocation5 + $0x1b80] sm:$0xff]
    %v1102 = vld [vmem:[#allocation5 + $0x1b88] sm:$0xff]
    %v1103 = vld [vmem:[#allocation5 + $0x1b90] sm:$0xff]
    %v1104 = vld [vmem:[#allocation5 + $0x1b98] sm:$0xff]
    %v1105 = vld [vmem:[#allocation5 + $0x1ba0] sm:$0xff]
    %v1106 = vld [vmem:[#allocation5 + $0x1ba8] sm:$0xff]
    %v1107 = vld [vmem:[#allocation5 + $0x1bb0] sm:$0xff]
    %v1108 = vld [vmem:[#allocation5 + $0x1bb8] sm:$0xff]
    %v1109 = vld [vmem:[#allocation5 + $0x1bc0] sm:$0xff]
    %v1110 = vld [vmem:[#allocation5 + $0x1bc8] sm:$0xff]
    %v1111 = vld [vmem:[#allocation5 + $0x1bd0] sm:$0xff]
    %v1112 = vld [vmem:[#allocation5 + $0x1bd8] sm:$0xff]
    %v1113 = vld [vmem:[#allocation5 + $0x1be0] sm:$0xff]
    %v1114 = vld [vmem:[#allocation5 + $0x1be8] sm:$0xff]
    %v1115 = vld [vmem:[#allocation5 + $0x1bf0] sm:$0xff]
    %v1116 = vld [vmem:[#allocation5 + $0x1bf8] sm:$0xff]
    %v1117 = vld [vmem:[#allocation5 + $0x1c00] sm:$0xff]
    %v1118 = vld [vmem:[#allocation5 + $0x1c08] sm:$0xff]
    %v1119 = vld [vmem:[#allocation5 + $0x1c10] sm:$0xff]
    %v1120 = vld [vmem:[#allocation5 + $0x1c18] sm:$0xff]
    %v1121 = vld [vmem:[#allocation5 + $0x1c20] sm:$0xff]
    %v1122 = vld [vmem:[#allocation5 + $0x1c28] sm:$0xff]
    %v1123 = vld [vmem:[#allocation5 + $0x1c30] sm:$0xff]
    %v1124 = vld [vmem:[#allocation5 + $0x1c38] sm:$0xff]
    %v1125 = vld [vmem:[#allocation5 + $0x1c40] sm:$0xff]
    %v1126 = vld [vmem:[#allocation5 + $0x1c48] sm:$0xff]
    %v1127 = vld [vmem:[#allocation5 + $0x1c50] sm:$0xff]
    %v1128 = vld [vmem:[#allocation5 + $0x1c58] sm:$0xff]
    %v1129 = vld [vmem:[#allocation5 + $0x1c60] sm:$0xff]
    %v1130 = vld [vmem:[#allocation5 + $0x1c68] sm:$0xff]
    %v1131 = vld [vmem:[#allocation5 + $0x1c70] sm:$0xff]
    %v1132 = vld [vmem:[#allocation5 + $0x1c78] sm:$0xff]
    %v1133 = vld [vmem:[#allocation5 + $0x1c80] sm:$0xff]
    %v1134 = vld [vmem:[#allocation5 + $0x1c88] sm:$0xff]
    %v1135 = vld [vmem:[#allocation5 + $0x1c90] sm:$0xff]
    %v1136 = vld [vmem:[#allocation5 + $0x1c98] sm:$0xff]
    %v1137 = vld [vmem:[#allocation5 + $0x1ca0] sm:$0xff]
    %v1138 = vld [vmem:[#allocation5 + $0x1ca8] sm:$0xff]
    %v1139 = vld [vmem:[#allocation5 + $0x1cb0] sm:$0xff]
    %v1140 = vld [vmem:[#allocation5 + $0x1cb8] sm:$0xff]
    %v1141 = vld [vmem:[#allocation5 + $0x1cc0] sm:$0xff]
    %v1142 = vld [vmem:[#allocation5 + $0x1cc8] sm:$0xff]
    %v1143 = vld [vmem:[#allocation5 + $0x1cd0] sm:$0xff]
    %v1144 = vld [vmem:[#allocation5 + $0x1cd8] sm:$0xff]
    %v1145 = vld [vmem:[#allocation5 + $0x1ce0] sm:$0xff]
    %v1146 = vld [vmem:[#allocation5 + $0x1ce8] sm:$0xff]
    %v1147 = vld [vmem:[#allocation5 + $0x1cf0] sm:$0xff]
    %v1148 = vld [vmem:[#allocation5 + $0x1cf8] sm:$0xff]
    %v1149 = vld [vmem:[#allocation5 + $0x1d00] sm:$0xff]
    %v1150 = vld [vmem:[#allocation5 + $0x1d08] sm:$0xff]
    %v1151 = vld [vmem:[#allocation5 + $0x1d10] sm:$0xff]
    %v1152 = vld [vmem:[#allocation5 + $0x1d18] sm:$0xff]
    %v1153 = vld [vmem:[#allocation5 + $0x1d20] sm:$0xff]
    %v1154 = vld [vmem:[#allocation5 + $0x1d28] sm:$0xff]
    %v1155 = vld [vmem:[#allocation5 + $0x1d30] sm:$0xff]
    %v1156 = vld [vmem:[#allocation5 + $0x1d38] sm:$0xff]
    %v1157 = vld [vmem:[#allocation5 + $0x1d40] sm:$0xff]
    %v1158 = vld [vmem:[#allocation5 + $0x1d48] sm:$0xff]
    %v1159 = vld [vmem:[#allocation5 + $0x1d50] sm:$0xff]
    %v1160 = vld [vmem:[#allocation5 + $0x1d58] sm:$0xff]
    %v1161 = vld [vmem:[#allocation5 + $0x1d60] sm:$0xff]
    %v1162 = vld [vmem:[#allocation5 + $0x1d68] sm:$0xff]
    %v1163 = vld [vmem:[#allocation5 + $0x1d70] sm:$0xff]
    %v1164 = vld [vmem:[#allocation5 + $0x1d78] sm:$0xff]
    %v1165 = vld [vmem:[#allocation5 + $0x1d80] sm:$0xff]
    %v1166 = vld [vmem:[#allocation5 + $0x1d88] sm:$0xff]
    %v1167 = vld [vmem:[#allocation5 + $0x1d90] sm:$0xff]
    %v1168 = vld [vmem:[#allocation5 + $0x1d98] sm:$0xff]
    %v1169 = vld [vmem:[#allocation5 + $0x1da0] sm:$0xff]
    %v1170 = vld [vmem:[#allocation5 + $0x1da8] sm:$0xff]
    %v1171 = vld [vmem:[#allocation5 + $0x1db0] sm:$0xff]
    %v1172 = vld [vmem:[#allocation5 + $0x1db8] sm:$0xff]
    %v1173 = vld [vmem:[#allocation5 + $0x1dc0] sm:$0xff]
    %v1174 = vld [vmem:[#allocation5 + $0x1dc8] sm:$0xff]
    %v1175 = vld [vmem:[#allocation5 + $0x1dd0] sm:$0xff]
    %v1176 = vld [vmem:[#allocation5 + $0x1dd8] sm:$0xff]
    %v1177 = vld [vmem:[#allocation5 + $0x1de0] sm:$0xff]
    %v1178 = vld [vmem:[#allocation5 + $0x1de8] sm:$0xff]
    %v1179 = vld [vmem:[#allocation5 + $0x1df0] sm:$0xff]
    %v1180 = vld [vmem:[#allocation5 + $0x1df8] sm:$0xff]
    %v1181 = vld [vmem:[#allocation5 + $0x1e00] sm:$0xff]
    %v1182 = vld [vmem:[#allocation5 + $0x1e08] sm:$0xff]
    %v1183 = vld [vmem:[#allocation5 + $0x1e10] sm:$0xff]
    %v1184 = vld [vmem:[#allocation5 + $0x1e18] sm:$0xff]
    %v1185 = vld [vmem:[#allocation5 + $0x1e20] sm:$0xff]
    %v1186 = vld [vmem:[#allocation5 + $0x1e28] sm:$0xff]
    %v1187 = vld [vmem:[#allocation5 + $0x1e30] sm:$0xff]
    %v1188 = vld [vmem:[#allocation5 + $0x1e38] sm:$0xff]
    %v1189 = vld [vmem:[#allocation5 + $0x1e40] sm:$0xff]
    %v1190 = vld [vmem:[#allocation5 + $0x1e48] sm:$0xff]
    %v1191 = vld [vmem:[#allocation5 + $0x1e50] sm:$0xff]
    %v1192 = vld [vmem:[#allocation5 + $0x1e58] sm:$0xff]
    %v1193 = vld [vmem:[#allocation5 + $0x1e60] sm:$0xff]
    %v1194 = vld [vmem:[#allocation5 + $0x1e68] sm:$0xff]
    %v1195 = vld [vmem:[#allocation5 + $0x1e70] sm:$0xff]
    %v1196 = vld [vmem:[#allocation5 + $0x1e78] sm:$0xff]
    %v1197 = vld [vmem:[#allocation5 + $0x1e80] sm:$0xff]
    %v1198 = vld [vmem:[#allocation5 + $0x1e88] sm:$0xff]
    %v1199 = vld [vmem:[#allocation5 + $0x1e90] sm:$0xff]
    %v1200 = vld [vmem:[#allocation5 + $0x1e98] sm:$0xff]
    %v1201 = vld [vmem:[#allocation5 + $0x1ea0] sm:$0xff]
    %v1202 = vld [vmem:[#allocation5 + $0x1ea8] sm:$0xff]
    %v1203 = vld [vmem:[#allocation5 + $0x1eb0] sm:$0xff]
    %v1204 = vld [vmem:[#allocation5 + $0x1eb8] sm:$0xff]
    %v1205 = vld [vmem:[#allocation5 + $0x1ec0] sm:$0xff]
    %v1206 = vld [vmem:[#allocation5 + $0x1ec8] sm:$0xff]
    %v1207 = vld [vmem:[#allocation5 + $0x1ed0] sm:$0xff]
    %v1208 = vld [vmem:[#allocation5 + $0x1ed8] sm:$0xff]
    %v1209 = vld [vmem:[#allocation5 + $0x1ee0] sm:$0xff]
    %v1210 = vld [vmem:[#allocation5 + $0x1ee8] sm:$0xff]
    %v1211 = vld [vmem:[#allocation5 + $0x1ef0] sm:$0xff]
    %v1212 = vld [vmem:[#allocation5 + $0x1ef8] sm:$0xff]
    %v1213 = vld [vmem:[#allocation5 + $0x1f00] sm:$0xff]
    %v1214 = vld [vmem:[#allocation5 + $0x1f08] sm:$0xff]
    %v1215 = vld [vmem:[#allocation5 + $0x1f10] sm:$0xff]
    %v1216 = vld [vmem:[#allocation5 + $0x1f18] sm:$0xff]
    %v1217 = vld [vmem:[#allocation5 + $0x1f20] sm:$0xff]
    %v1218 = vld [vmem:[#allocation5 + $0x1f28] sm:$0xff]
    %v1219 = vld [vmem:[#allocation5 + $0x1f30] sm:$0xff]
    %v1220 = vld [vmem:[#allocation5 + $0x1f38] sm:$0xff]
    %v1221 = vld [vmem:[#allocation5 + $0x1f40] sm:$0xff]
    %v1222 = vld [vmem:[#allocation5 + $0x1f48] sm:$0xff]
    %v1223 = vld [vmem:[#allocation5 + $0x1f50] sm:$0xff]
    %v1224 = vld [vmem:[#allocation5 + $0x1f58] sm:$0xff]
    %v1225 = vld [vmem:[#allocation5 + $0x1f60] sm:$0xff]
    %v1226 = vld [vmem:[#allocation5 + $0x1f68] sm:$0xff]
    %v1227 = vld [vmem:[#allocation5 + $0x1f70] sm:$0xff]
    %v1228 = vld [vmem:[#allocation5 + $0x1f78] sm:$0xff]
    %v1229 = vld [vmem:[#allocation5 + $0x1f80] sm:$0xff]
    %v1230 = vld [vmem:[#allocation5 + $0x1f88] sm:$0xff]
    %v1231 = vld [vmem:[#allocation5 + $0x1f90] sm:$0xff]
    %v1232 = vld [vmem:[#allocation5 + $0x1f98] sm:$0xff]
    %v1233 = vld [vmem:[#allocation5 + $0x1fa0] sm:$0xff]
    %v1234 = vld [vmem:[#allocation5 + $0x1fa8] sm:$0xff]
    %v1235 = vld [vmem:[#allocation5 + $0x1fb0] sm:$0xff]
    %v1236 = vld [vmem:[#allocation5 + $0x1fb8] sm:$0xff]
    %v1237 = vld [vmem:[#allocation5 + $0x1fc0] sm:$0xff]
    %v1238 = vld [vmem:[#allocation5 + $0x1fc8] sm:$0xff]
    %v1239 = vld [vmem:[#allocation5 + $0x1fd0] sm:$0xff]
    %v1240 = vld [vmem:[#allocation5 + $0x1fd8] sm:$0xff]
    %v1241 = vld [vmem:[#allocation5 + $0x1fe0] sm:$0xff]
    %v1242 = vld [vmem:[#allocation5 + $0x1fe8] sm:$0xff]
    %v1243 = vld [vmem:[#allocation5 + $0x1ff0] sm:$0xff]
    %v1244 = vld [vmem:[#allocation5 + $0x1ff8] sm:$0xff]
    %v1245 = vld [vmem:[#allocation5 + $0x2000] sm:$0xff]
    %v1246 = vld [vmem:[#allocation5 + $0x2008] sm:$0xff]
    %v1247 = vld [vmem:[#allocation5 + $0x2010] sm:$0xff]
    %v1248 = vld [vmem:[#allocation5 + $0x2018] sm:$0xff]
    %v1249 = vld [vmem:[#allocation5 + $0x2020] sm:$0xff]
    %v1250 = vld [vmem:[#allocation5 + $0x2028] sm:$0xff]
    %v1251 = vld [vmem:[#allocation5 + $0x2030] sm:$0xff]
    %v1252 = vld [vmem:[#allocation5 + $0x2038] sm:$0xff]
    %v1253 = vld [vmem:[#allocation5 + $0x2040] sm:$0xff]
    %v1254 = vld [vmem:[#allocation5 + $0x2048] sm:$0xff]
    %v1255 = vld [vmem:[#allocation5 + $0x2050] sm:$0xff]
    %v1256 = vld [vmem:[#allocation5 + $0x2058] sm:$0xff]
    %v1257 = vld [vmem:[#allocation5 + $0x2060] sm:$0xff]
    %v1258 = vld [vmem:[#allocation5 + $0x2068] sm:$0xff]
    %v1259 = vld [vmem:[#allocation5 + $0x2070] sm:$0xff]
    %v1260 = vld [vmem:[#allocation5 + $0x2078] sm:$0xff]
    %v1261 = vld [vmem:[#allocation5 + $0x2080] sm:$0xff]
    %v1262 = vld [vmem:[#allocation5 + $0x2088] sm:$0xff]
    %v1263 = vld [vmem:[#allocation5 + $0x2090] sm:$0xff]
    %v1264 = vld [vmem:[#allocation5 + $0x2098] sm:$0xff]
    %v1265 = vld [vmem:[#allocation5 + $0x20a0] sm:$0xff]
    %v1266 = vld [vmem:[#allocation5 + $0x20a8] sm:$0xff]
    %v1267 = vld [vmem:[#allocation5 + $0x20b0] sm:$0xff]
    %v1268 = vld [vmem:[#allocation5 + $0x20b8] sm:$0xff]
    %v1269 = vld [vmem:[#allocation5 + $0x20c0] sm:$0xff]
    %v1270 = vld [vmem:[#allocation5 + $0x20c8] sm:$0xff]
    %v1271 = vld [vmem:[#allocation5 + $0x20d0] sm:$0xff]
    %v1272 = vld [vmem:[#allocation5 + $0x20d8] sm:$0xff]
    %v1273 = vld [vmem:[#allocation5 + $0x20e0] sm:$0xff]
    %v1274 = vld [vmem:[#allocation5 + $0x20e8] sm:$0xff]
    %v1275 = vld [vmem:[#allocation5 + $0x20f0] sm:$0xff]
    %v1276 = vld [vmem:[#allocation5 + $0x20f8] sm:$0xff]
    %v1277 = vld [vmem:[#allocation5 + $0x2100] sm:$0xff]
    %v1278 = vld [vmem:[#allocation5 + $0x2108] sm:$0xff]
    %v1279 = vld [vmem:[#allocation5 + $0x2110] sm:$0xff]
    %v1280 = vld [vmem:[#allocation5 + $0x2118] sm:$0xff]
    %v1281 = vld [vmem:[#allocation5 + $0x2120] sm:$0xff]
    %v1282 = vld [vmem:[#allocation5 + $0x2128] sm:$0xff]
    %v1283 = vld [vmem:[#allocation5 + $0x2130] sm:$0xff]
    %v1284 = vld [vmem:[#allocation5 + $0x2138] sm:$0xff]
    %v1285 = vld [vmem:[#allocation5 + $0x2140] sm:$0xff]
    %v1286 = vld [vmem:[#allocation5 + $0x2148] sm:$0xff]
    %v1287 = vld [vmem:[#allocation5 + $0x2150] sm:$0xff]
    %v1288 = vld [vmem:[#allocation5 + $0x2158] sm:$0xff]
    %v1289 = vld [vmem:[#allocation5 + $0x2160] sm:$0xff]
    %v1290 = vld [vmem:[#allocation5 + $0x2168] sm:$0xff]
    %v1291 = vld [vmem:[#allocation5 + $0x2170] sm:$0xff]
    %v1292 = vld [vmem:[#allocation5 + $0x2178] sm:$0xff]
    %v1293 = vld [vmem:[#allocation5 + $0x2180] sm:$0xff]
    %v1294 = vld [vmem:[#allocation5 + $0x2188] sm:$0xff]
    %v1295 = vld [vmem:[#allocation5 + $0x2190] sm:$0xff]
    %v1296 = vld [vmem:[#allocation5 + $0x2198] sm:$0xff]
    %v1297 = vld [vmem:[#allocation5 + $0x21a0] sm:$0xff]
    %v1298 = vld [vmem:[#allocation5 + $0x21a8] sm:$0xff]
    %v1299 = vld [vmem:[#allocation5 + $0x21b0] sm:$0xff]
    %v1300 = vld [vmem:[#allocation5 + $0x21b8] sm:$0xff]
    %v1301 = vld [vmem:[#allocation5 + $0x21c0] sm:$0xff]
    %v1302 = vld [vmem:[#allocation5 + $0x21c8] sm:$0xff]
    %v1303 = vld [vmem:[#allocation5 + $0x21d0] sm:$0xff]
    %v1304 = vld [vmem:[#allocation5 + $0x21d8] sm:$0xff]
    %v1305 = vld [vmem:[#allocation5 + $0x21e0] sm:$0xff]
    %v1306 = vld [vmem:[#allocation5 + $0x21e8] sm:$0xff]
    %v1307 = vld [vmem:[#allocation5 + $0x21f0] sm:$0xff]
    %v1308 = vld [vmem:[#allocation5 + $0x21f8] sm:$0xff]
    %v1309 = vld [vmem:[#allocation5 + $0x2200] sm:$0xff]
    %v1310 = vld [vmem:[#allocation5 + $0x2208] sm:$0xff]
    %v1311 = vld [vmem:[#allocation5 + $0x2210] sm:$0xff]
    %v1312 = vld [vmem:[#allocation5 + $0x2218] sm:$0xff]
    %v1313 = vld [vmem:[#allocation5 + $0x2220] sm:$0xff]
    %v1314 = vld [vmem:[#allocation5 + $0x2228] sm:$0xff]
    %v1315 = vld [vmem:[#allocation5 + $0x2230] sm:$0xff]
    %v1316 = vld [vmem:[#allocation5 + $0x2238] sm:$0xff]
    %v1317 = vld [vmem:[#allocation5 + $0x2240] sm:$0xff]
    %v1318 = vld [vmem:[#allocation5 + $0x2248] sm:$0xff]
    %v1319 = vld [vmem:[#allocation5 + $0x2250] sm:$0xff]
    %v1320 = vld [vmem:[#allocation5 + $0x2258] sm:$0xff]
    %v1321 = vld [vmem:[#allocation5 + $0x2260] sm:$0xff]
    %v1322 = vld [vmem:[#allocation5 + $0x2268] sm:$0xff]
    %v1323 = vld [vmem:[#allocation5 + $0x2270] sm:$0xff]
    %v1324 = vld [vmem:[#allocation5 + $0x2278] sm:$0xff]
    %v1325 = vld [vmem:[#allocation5 + $0x2280] sm:$0xff]
    %v1326 = vld [vmem:[#allocation5 + $0x2288] sm:$0xff]
    %v1327 = vld [vmem:[#allocation5 + $0x2290] sm:$0xff]
    %v1328 = vld [vmem:[#allocation5 + $0x2298] sm:$0xff]
    %v1329 = vld [vmem:[#allocation5 + $0x22a0] sm:$0xff]
    %v1330 = vld [vmem:[#allocation5 + $0x22a8] sm:$0xff]
    %v1331 = vld [vmem:[#allocation5 + $0x22b0] sm:$0xff]
    %v1332 = vld [vmem:[#allocation5 + $0x22b8] sm:$0xff]
    %v1333 = vld [vmem:[#allocation5 + $0x22c0] sm:$0xff]
    %v1334 = vld [vmem:[#allocation5 + $0x22c8] sm:$0xff]
    %v1335 = vld [vmem:[#allocation5 + $0x22d0] sm:$0xff]
    %v1336 = vld [vmem:[#allocation5 + $0x22d8] sm:$0xff]
    %v1337 = vld [vmem:[#allocation5 + $0x22e0] sm:$0xff]
    %v1338 = vld [vmem:[#allocation5 + $0x22e8] sm:$0xff]
    %v1339 = vld [vmem:[#allocation5 + $0x22f0] sm:$0xff]
    %v1340 = vld [vmem:[#allocation5 + $0x22f8] sm:$0xff]
    %v1341 = vld [vmem:[#allocation5 + $0x2300] sm:$0xff]
    %v1342 = vld [vmem:[#allocation5 + $0x2308] sm:$0xff]
    %v1343 = vld [vmem:[#allocation5 + $0x2310] sm:$0xff]
    %v1344 = vld [vmem:[#allocation5 + $0x2318] sm:$0xff]
    %v1345 = vld [vmem:[#allocation5 + $0x2320] sm:$0xff]
    %v1346 = vld [vmem:[#allocation5 + $0x2328] sm:$0xff]
    %v1347 = vld [vmem:[#allocation5 + $0x2330] sm:$0xff]
    %v1348 = vld [vmem:[#allocation5 + $0x2338] sm:$0xff]
    %v1349 = vld [vmem:[#allocation5 + $0x2340] sm:$0xff]
    %v1350 = vld [vmem:[#allocation5 + $0x2348] sm:$0xff]
    %v1351 = vld [vmem:[#allocation5 + $0x2350] sm:$0xff]
    %v1352 = vld [vmem:[#allocation5 + $0x2358] sm:$0xff]
    %v1353 = vld [vmem:[#allocation5 + $0x2360] sm:$0xff]
    %v1354 = vld [vmem:[#allocation5 + $0x2368] sm:$0xff]
    %v1355 = vld [vmem:[#allocation5 + $0x2370] sm:$0xff]
    %v1356 = vld [vmem:[#allocation5 + $0x2378] sm:$0xff]
    %v1357 = vld [vmem:[#allocation5 + $0x2380] sm:$0xff]
    %v1358 = vld [vmem:[#allocation5 + $0x2388] sm:$0xff]
    %v1359 = vld [vmem:[#allocation5 + $0x2390] sm:$0xff]
    %v1360 = vld [vmem:[#allocation5 + $0x2398] sm:$0xff]
    %v1361 = vld [vmem:[#allocation5 + $0x23a0] sm:$0xff]
    %v1362 = vld [vmem:[#allocation5 + $0x23a8] sm:$0xff]
    %v1363 = vld [vmem:[#allocation5 + $0x23b0] sm:$0xff]
    %v1364 = vld [vmem:[#allocation5 + $0x23b8] sm:$0xff]
    %v1365 = vld [vmem:[#allocation5 + $0x23c0] sm:$0xff]
    %v1366 = vld [vmem:[#allocation5 + $0x23c8] sm:$0xff]
    %v1367 = vld [vmem:[#allocation5 + $0x23d0] sm:$0xff]
    %v1368 = vld [vmem:[#allocation5 + $0x23d8] sm:$0xff]
    %v1369 = vld [vmem:[#allocation5 + $0x23e0] sm:$0xff]
    %v1370 = vld [vmem:[#allocation5 + $0x23e8] sm:$0xff]
    %v1371 = vld [vmem:[#allocation5 + $0x23f0] sm:$0xff]
    %v1372 = vld [vmem:[#allocation5 + $0x23f8] sm:$0xff]
    %v1373 = vld [vmem:[#allocation5 + $0x2400] sm:$0xff]
    %v1374 = vld [vmem:[#allocation5 + $0x2408] sm:$0xff]
    %v1375 = vld [vmem:[#allocation5 + $0x2410] sm:$0xff]
    %v1376 = vld [vmem:[#allocation5 + $0x2418] sm:$0xff]
    %v1377 = vld [vmem:[#allocation5 + $0x2420] sm:$0xff]
    %v1378 = vld [vmem:[#allocation5 + $0x2428] sm:$0xff]
    %v1379 = vld [vmem:[#allocation5 + $0x2430] sm:$0xff]
    %v1380 = vld [vmem:[#allocation5 + $0x2438] sm:$0xff]
    %v1381 = vld [vmem:[#allocation5 + $0x2440] sm:$0xff]
    %v1382 = vld [vmem:[#allocation5 + $0x2448] sm:$0xff]
    %v1383 = vld [vmem:[#allocation5 + $0x2450] sm:$0xff]
    %v1384 = vld [vmem:[#allocation5 + $0x2458] sm:$0xff]
    %v1385 = vld [vmem:[#allocation5 + $0x2460] sm:$0xff]
    %v1386 = vld [vmem:[#allocation5 + $0x2468] sm:$0xff]
    %v1387 = vld [vmem:[#allocation5 + $0x2470] sm:$0xff]
    %v1388 = vld [vmem:[#allocation5 + $0x2478] sm:$0xff]
    %v1389 = vld [vmem:[#allocation5 + $0x2480] sm:$0xff]
    %v1390 = vld [vmem:[#allocation5 + $0x2488] sm:$0xff]
    %v1391 = vld [vmem:[#allocation5 + $0x2490] sm:$0xff]
    %v1392 = vld [vmem:[#allocation5 + $0x2498] sm:$0xff]
    %v1393 = vld [vmem:[#allocation5 + $0x24a0] sm:$0xff]
    %v1394 = vld [vmem:[#allocation5 + $0x24a8] sm:$0xff]
    %v1395 = vld [vmem:[#allocation5 + $0x24b0] sm:$0xff]
    %v1396 = vld [vmem:[#allocation5 + $0x24b8] sm:$0xff]
    %v1397 = vld [vmem:[#allocation5 + $0x24c0] sm:$0xff]
    %v1398 = vld [vmem:[#allocation5 + $0x24c8] sm:$0xff]
    %v1399 = vld [vmem:[#allocation5 + $0x24d0] sm:$0xff]
    %v1400 = vld [vmem:[#allocation5 + $0x24d8] sm:$0xff]
    %v1401 = vld [vmem:[#allocation5 + $0x24e0] sm:$0xff]
    %v1402 = vld [vmem:[#allocation5 + $0x24e8] sm:$0xff]
    %v1403 = vld [vmem:[#allocation5 + $0x24f0] sm:$0xff]
    %v1404 = vld [vmem:[#allocation5 + $0x24f8] sm:$0xff]
    %v1405 = vld [vmem:[#allocation5 + $0x2500] sm:$0xff]
    %v1406 = vld [vmem:[#allocation5 + $0x2508] sm:$0xff]
    %v1407 = vld [vmem:[#allocation5 + $0x2510] sm:$0xff]
    %v1408 = vld [vmem:[#allocation5 + $0x2518] sm:$0xff]
    %v1409 = vld [vmem:[#allocation5 + $0x2520] sm:$0xff]
    %v1410 = vld [vmem:[#allocation5 + $0x2528] sm:$0xff]
    %v1411 = vld [vmem:[#allocation5 + $0x2530] sm:$0xff]
    %v1412 = vld [vmem:[#allocation5 + $0x2538] sm:$0xff]
    %v1413 = vld [vmem:[#allocation5 + $0x2540] sm:$0xff]
    %v1414 = vld [vmem:[#allocation5 + $0x2548] sm:$0xff]
    %v1415 = vld [vmem:[#allocation5 + $0x2550] sm:$0xff]
    %v1416 = vld [vmem:[#allocation5 + $0x2558] sm:$0xff]
    %v1417 = vld [vmem:[#allocation5 + $0x2560] sm:$0xff]
    %v1418 = vld [vmem:[#allocation5 + $0x2568] sm:$0xff]
    %v1419 = vld [vmem:[#allocation5 + $0x2570] sm:$0xff]
    %v1420 = vld [vmem:[#allocation5 + $0x2578] sm:$0xff]
    %v1421 = vld [vmem:[#allocation5 + $0x2580] sm:$0xff]
    %v1422 = vld [vmem:[#allocation5 + $0x2588] sm:$0xff]
    %v1423 = vld [vmem:[#allocation5 + $0x2590] sm:$0xff]
    %v1424 = vld [vmem:[#allocation5 + $0x2598] sm:$0xff]
    %v1425 = vld [vmem:[#allocation5 + $0x25a0] sm:$0xff]
    %v1426 = vld [vmem:[#allocation5 + $0x25a8] sm:$0xff]
    %v1427 = vld [vmem:[#allocation5 + $0x25b0] sm:$0xff]
    %v1428 = vld [vmem:[#allocation5 + $0x25b8] sm:$0xff]
    %v1429 = vld [vmem:[#allocation5 + $0x25c0] sm:$0xff]
    %v1430 = vld [vmem:[#allocation5 + $0x25c8] sm:$0xff]
    %v1431 = vld [vmem:[#allocation5 + $0x25d0] sm:$0xff]
    %v1432 = vld [vmem:[#allocation5 + $0x25d8] sm:$0xff]
    %v1433 = vld [vmem:[#allocation5 + $0x25e0] sm:$0xff]
    %v1434 = vld [vmem:[#allocation5 + $0x25e8] sm:$0xff]
    %v1435 = vld [vmem:[#allocation5 + $0x25f0] sm:$0xff]
    %v1436 = vld [vmem:[#allocation5 + $0x25f8] sm:$0xff]
    %v1437 = vld [vmem:[#allocation5 + $0x2600] sm:$0xff]
    %v1438 = vld [vmem:[#allocation5 + $0x2608] sm:$0xff]
    %v1439 = vld [vmem:[#allocation5 + $0x2610] sm:$0xff]
    %v1440 = vld [vmem:[#allocation5 + $0x2618] sm:$0xff]
    %v1441 = vld [vmem:[#allocation5 + $0x2620] sm:$0xff]
    %v1442 = vld [vmem:[#allocation5 + $0x2628] sm:$0xff]
    %v1443 = vld [vmem:[#allocation5 + $0x2630] sm:$0xff]
    %v1444 = vld [vmem:[#allocation5 + $0x2638] sm:$0xff]
    %v1445 = vld [vmem:[#allocation5 + $0x2640] sm:$0xff]
    %v1446 = vld [vmem:[#allocation5 + $0x2648] sm:$0xff]
    %v1447 = vld [vmem:[#allocation5 + $0x2650] sm:$0xff]
    %v1448 = vld [vmem:[#allocation5 + $0x2658] sm:$0xff]
    %v1449 = vld [vmem:[#allocation5 + $0x2660] sm:$0xff]
    %v1450 = vld [vmem:[#allocation5 + $0x2668] sm:$0xff]
    %v1451 = vld [vmem:[#allocation5 + $0x2670] sm:$0xff]
    %v1452 = vld [vmem:[#allocation5 + $0x2678] sm:$0xff]
    %v1453 = vld [vmem:[#allocation5 + $0x2680] sm:$0xff]
    %v1454 = vld [vmem:[#allocation5 + $0x2688] sm:$0xff]
    %v1455 = vld [vmem:[#allocation5 + $0x2690] sm:$0xff]
    %v1456 = vld [vmem:[#allocation5 + $0x2698] sm:$0xff]
    %v1457 = vld [vmem:[#allocation5 + $0x26a0] sm:$0xff]
    %v1458 = vld [vmem:[#allocation5 + $0x26a8] sm:$0xff]
    %v1459 = vld [vmem:[#allocation5 + $0x26b0] sm:$0xff]
    %v1460 = vld [vmem:[#allocation5 + $0x26b8] sm:$0xff]
    %v1461 = vld [vmem:[#allocation5 + $0x26c0] sm:$0xff]
    %v1462 = vld [vmem:[#allocation5 + $0x26c8] sm:$0xff]
    %v1463 = vld [vmem:[#allocation5 + $0x26d0] sm:$0xff]
    %v1464 = vld [vmem:[#allocation5 + $0x26d8] sm:$0xff]
    %v1465 = vld [vmem:[#allocation5 + $0x26e0] sm:$0xff]
    %v1466 = vld [vmem:[#allocation5 + $0x26e8] sm:$0xff]
    %v1467 = vld [vmem:[#allocation5 + $0x26f0] sm:$0xff]
    %v1468 = vld [vmem:[#allocation5 + $0x26f8] sm:$0xff]
    %v1469 = vld [vmem:[#allocation5 + $0x2700] sm:$0xff]
    %v1470 = vld [vmem:[#allocation5 + $0x2708] sm:$0xff]
    %v1471 = vld [vmem:[#allocation5 + $0x2710] sm:$0xff]
    %v1472 = vld [vmem:[#allocation5 + $0x2718] sm:$0xff]
    %v1473 = vld [vmem:[#allocation5 + $0x2720] sm:$0xff]
    %v1474 = vld [vmem:[#allocation5 + $0x2728] sm:$0xff]
    %v1475 = vld [vmem:[#allocation5 + $0x2730] sm:$0xff]
    %v1476 = vld [vmem:[#allocation5 + $0x2738] sm:$0xff]
    %v1477 = vld [vmem:[#allocation5 + $0x2740] sm:$0xff]
    %v1478 = vld [vmem:[#allocation5 + $0x2748] sm:$0xff]
    %v1479 = vld [vmem:[#allocation5 + $0x2750] sm:$0xff]
    %v1480 = vld [vmem:[#allocation5 + $0x2758] sm:$0xff]
    %v1481 = vld [vmem:[#allocation5 + $0x2760] sm:$0xff]
    %v1482 = vld [vmem:[#allocation5 + $0x2768] sm:$0xff]
    %v1483 = vld [vmem:[#allocation5 + $0x2770] sm:$0xff]
    %v1484 = vld [vmem:[#allocation5 + $0x2778] sm:$0xff]
    %v1485 = vld [vmem:[#allocation5 + $0x2780] sm:$0xff]
    %v1486 = vld [vmem:[#allocation5 + $0x2788] sm:$0xff]
    %v1487 = vld [vmem:[#allocation5 + $0x2790] sm:$0xff]
    %v1488 = vld [vmem:[#allocation5 + $0x2798] sm:$0xff]
    %v1489 = vld [vmem:[#allocation5 + $0x27a0] sm:$0xff]
    %v1490 = vld [vmem:[#allocation5 + $0x27a8] sm:$0xff]
    %v1491 = vld [vmem:[#allocation5 + $0x27b0] sm:$0xff]
    %v1492 = vld [vmem:[#allocation5 + $0x27b8] sm:$0xff]
    %v1493 = vld [vmem:[#allocation5 + $0x27c0] sm:$0xff]
    %v1494 = vld [vmem:[#allocation5 + $0x27c8] sm:$0xff]
    %v1495 = vld [vmem:[#allocation5 + $0x27d0] sm:$0xff]
    %v1496 = vld [vmem:[#allocation5 + $0x27d8] sm:$0xff]
    %v1497 = vld [vmem:[#allocation5 + $0x27e0] sm:$0xff]
    %v1498 = vld [vmem:[#allocation5 + $0x27e8] sm:$0xff]
    %v1499 = vld [vmem:[#allocation5 + $0x27f0] sm:$0xff]
    %v1500 = vld [vmem:[#allocation5 + $0x27f8] sm:$0xff]
    %v1501 = vld [vmem:[#allocation5 + $0x2800] sm:$0xff]
    %v1502 = vld [vmem:[#allocation5 + $0x2808] sm:$0xff]
    %v1503 = vld [vmem:[#allocation5 + $0x2810] sm:$0xff]
    %v1504 = vld [vmem:[#allocation5 + $0x2818] sm:$0xff]
    %v1505 = vld [vmem:[#allocation5 + $0x2820] sm:$0xff]
    %v1506 = vld [vmem:[#allocation5 + $0x2828] sm:$0xff]
    %v1507 = vld [vmem:[#allocation5 + $0x2830] sm:$0xff]
    %v1508 = vld [vmem:[#allocation5 + $0x2838] sm:$0xff]
    %v1509 = vld [vmem:[#allocation5 + $0x2840] sm:$0xff]
    %v1510 = vld [vmem:[#allocation5 + $0x2848] sm:$0xff]
    %v1511 = vld [vmem:[#allocation5 + $0x2850] sm:$0xff]
    %v1512 = vld [vmem:[#allocation5 + $0x2858] sm:$0xff]
    %v1513 = vld [vmem:[#allocation5 + $0x2860] sm:$0xff]
    %v1514 = vld [vmem:[#allocation5 + $0x2868] sm:$0xff]
    %v1515 = vld [vmem:[#allocation5 + $0x2870] sm:$0xff]
    %v1516 = vld [vmem:[#allocation5 + $0x2878] sm:$0xff]
    %v1517 = vld [vmem:[#allocation5 + $0x2880] sm:$0xff]
    %v1518 = vld [vmem:[#allocation5 + $0x2888] sm:$0xff]
    %v1519 = vld [vmem:[#allocation5 + $0x2890] sm:$0xff]
    %v1520 = vld [vmem:[#allocation5 + $0x2898] sm:$0xff]
    %v1521 = vld [vmem:[#allocation5 + $0x28a0] sm:$0xff]
    %v1522 = vld [vmem:[#allocation5 + $0x28a8] sm:$0xff]
    %v1523 = vld [vmem:[#allocation5 + $0x28b0] sm:$0xff]
    %v1524 = vld [vmem:[#allocation5 + $0x28b8] sm:$0xff]
    %v1525 = vld [vmem:[#allocation5 + $0x28c0] sm:$0xff]
    %v1526 = vld [vmem:[#allocation5 + $0x28c8] sm:$0xff]
    %v1527 = vld [vmem:[#allocation5 + $0x28d0] sm:$0xff]
    %v1528 = vld [vmem:[#allocation5 + $0x28d8] sm:$0xff]
    %v1529 = vld [vmem:[#allocation5 + $0x28e0] sm:$0xff]
    %v1530 = vld [vmem:[#allocation5 + $0x28e8] sm:$0xff]
    %v1531 = vld [vmem:[#allocation5 + $0x28f0] sm:$0xff]
    %v1532 = vld [vmem:[#allocation5 + $0x28f8] sm:$0xff]
    %v1533 = vld [vmem:[#allocation5 + $0x2900] sm:$0xff]
    %v1534 = vld [vmem:[#allocation5 + $0x2908] sm:$0xff]
    %v1535 = vld [vmem:[#allocation5 + $0x2910] sm:$0xff]
    %v1536 = vld [vmem:[#allocation5 + $0x2918] sm:$0xff]
    %v1537 = vld [vmem:[#allocation5 + $0x2920] sm:$0xff]
    %v1538 = vld [vmem:[#allocation5 + $0x2928] sm:$0xff]
    %v1539 = vld [vmem:[#allocation5 + $0x2930] sm:$0xff]
    %v1540 = vld [vmem:[#allocation5 + $0x2938] sm:$0xff]
    %v1541 = vld [vmem:[#allocation5 + $0x2940] sm:$0xff]
    %v1542 = vld [vmem:[#allocation5 + $0x2948] sm:$0xff]
    %v1543 = vld [vmem:[#allocation5 + $0x2950] sm:$0xff]
    %v1544 = vld [vmem:[#allocation5 + $0x2958] sm:$0xff]
    %v1545 = vld [vmem:[#allocation5 + $0x2960] sm:$0xff]
    %v1546 = vld [vmem:[#allocation5 + $0x2968] sm:$0xff]
    %v1547 = vld [vmem:[#allocation5 + $0x2970] sm:$0xff]
    %v1548 = vld [vmem:[#allocation5 + $0x2978] sm:$0xff]
    %v1549 = vld [vmem:[#allocation5 + $0x2980] sm:$0xff]
    %v1550 = vld [vmem:[#allocation5 + $0x2988] sm:$0xff]
    %v1551 = vld [vmem:[#allocation5 + $0x2990] sm:$0xff]
    %v1552 = vld [vmem:[#allocation5 + $0x2998] sm:$0xff]
    %v1553 = vld [vmem:[#allocation5 + $0x29a0] sm:$0xff]
    %v1554 = vld [vmem:[#allocation5 + $0x29a8] sm:$0xff]
    %v1555 = vld [vmem:[#allocation5 + $0x29b0] sm:$0xff]
    %v1556 = vld [vmem:[#allocation5 + $0x29b8] sm:$0xff]
    %v1557 = vld [vmem:[#allocation5 + $0x29c0] sm:$0xff]
    %v1558 = vld [vmem:[#allocation5 + $0x29c8] sm:$0xff]
    %v1559 = vld [vmem:[#allocation5 + $0x29d0] sm:$0xff]
    %v1560 = vld [vmem:[#allocation5 + $0x29d8] sm:$0xff]
    %v1561 = vld [vmem:[#allocation5 + $0x29e0] sm:$0xff]
    %v1562 = vld [vmem:[#allocation5 + $0x29e8] sm:$0xff]
    %v1563 = vld [vmem:[#allocation5 + $0x29f0] sm:$0xff]
    %v1564 = vld [vmem:[#allocation5 + $0x29f8] sm:$0xff]
    %v1565 = vld [vmem:[#allocation5 + $0x2a00] sm:$0xff]
    %v1566 = vld [vmem:[#allocation5 + $0x2a08] sm:$0xff]
    %v1567 = vld [vmem:[#allocation5 + $0x2a10] sm:$0xff]
    %v1568 = vld [vmem:[#allocation5 + $0x2a18] sm:$0xff]
    %v1569 = vld [vmem:[#allocation5 + $0x2a20] sm:$0xff]
    %v1570 = vld [vmem:[#allocation5 + $0x2a28] sm:$0xff]
    %v1571 = vld [vmem:[#allocation5 + $0x2a30] sm:$0xff]
    %v1572 = vld [vmem:[#allocation5 + $0x2a38] sm:$0xff]
    %v1573 = vld [vmem:[#allocation5 + $0x2a40] sm:$0xff]
    %v1574 = vld [vmem:[#allocation5 + $0x2a48] sm:$0xff]
    %v1575 = vld [vmem:[#allocation5 + $0x2a50] sm:$0xff]
    %v1576 = vld [vmem:[#allocation5 + $0x2a58] sm:$0xff]
    %v1577 = vld [vmem:[#allocation5 + $0x2a60] sm:$0xff]
    %v1578 = vld [vmem:[#allocation5 + $0x2a68] sm:$0xff]
    %v1579 = vld [vmem:[#allocation5 + $0x2a70] sm:$0xff]
    %v1580 = vld [vmem:[#allocation5 + $0x2a78] sm:$0xff]
    %v1581 = vld [vmem:[#allocation5 + $0x2a80] sm:$0xff]
    %v1582 = vld [vmem:[#allocation5 + $0x2a88] sm:$0xff]
    %v1583 = vld [vmem:[#allocation5 + $0x2a90] sm:$0xff]
    %v1584 = vld [vmem:[#allocation5 + $0x2a98] sm:$0xff]
    %v1585 = vld [vmem:[#allocation5 + $0x2aa0] sm:$0xff]
    %v1586 = vld [vmem:[#allocation5 + $0x2aa8] sm:$0xff]
    %v1587 = vld [vmem:[#allocation5 + $0x2ab0] sm:$0xff]
    %v1588 = vld [vmem:[#allocation5 + $0x2ab8] sm:$0xff]
    %v1589 = vld [vmem:[#allocation5 + $0x2ac0] sm:$0xff]
    %v1590 = vld [vmem:[#allocation5 + $0x2ac8] sm:$0xff]
    %v1591 = vld [vmem:[#allocation5 + $0x2ad0] sm:$0xff]
    %v1592 = vld [vmem:[#allocation5 + $0x2ad8] sm:$0xff]
    %v1593 = vld [vmem:[#allocation5 + $0x2ae0] sm:$0xff]
    %v1594 = vld [vmem:[#allocation5 + $0x2ae8] sm:$0xff]
    %v1595 = vld [vmem:[#allocation5 + $0x2af0] sm:$0xff]
    %v1596 = vld [vmem:[#allocation5 + $0x2af8] sm:$0xff]
    %v1597 = vld [vmem:[#allocation5 + $0x2b00] sm:$0xff]
    %v1598 = vld [vmem:[#allocation5 + $0x2b08] sm:$0xff]
    %v1599 = vld [vmem:[#allocation5 + $0x2b10] sm:$0xff]
    %v1600 = vld [vmem:[#allocation5 + $0x2b18] sm:$0xff]
    %v1601 = vld [vmem:[#allocation5 + $0x2b20] sm:$0xff]
    %v1602 = vld [vmem:[#allocation5 + $0x2b28] sm:$0xff]
    %v1603 = vld [vmem:[#allocation5 + $0x2b30] sm:$0xff]
    %v1604 = vld [vmem:[#allocation5 + $0x2b38] sm:$0xff]
    %v1605 = vld [vmem:[#allocation5 + $0x2b40] sm:$0xff]
    %v1606 = vld [vmem:[#allocation5 + $0x2b48] sm:$0xff]
    %v1607 = vld [vmem:[#allocation5 + $0x2b50] sm:$0xff]
    %v1608 = vld [vmem:[#allocation5 + $0x2b58] sm:$0xff]
    %v1609 = vld [vmem:[#allocation5 + $0x2b60] sm:$0xff]
    %v1610 = vld [vmem:[#allocation5 + $0x2b68] sm:$0xff]
    %v1611 = vld [vmem:[#allocation5 + $0x2b70] sm:$0xff]
    %v1612 = vld [vmem:[#allocation5 + $0x2b78] sm:$0xff]
    %v1613 = vld [vmem:[#allocation5 + $0x2b80] sm:$0xff]
    %v1614 = vld [vmem:[#allocation5 + $0x2b88] sm:$0xff]
    %v1615 = vld [vmem:[#allocation5 + $0x2b90] sm:$0xff]
    %v1616 = vld [vmem:[#allocation5 + $0x2b98] sm:$0xff]
    %v1617 = vld [vmem:[#allocation5 + $0x2ba0] sm:$0xff]
    %v1618 = vld [vmem:[#allocation5 + $0x2ba8] sm:$0xff]
    %v1619 = vld [vmem:[#allocation5 + $0x2bb0] sm:$0xff]
    %v1620 = vld [vmem:[#allocation5 + $0x2bb8] sm:$0xff]
    %v1621 = vld [vmem:[#allocation5 + $0x2bc0] sm:$0xff]
    %v1622 = vld [vmem:[#allocation5 + $0x2bc8] sm:$0xff]
    %v1623 = vld [vmem:[#allocation5 + $0x2bd0] sm:$0xff]
    %v1624 = vld [vmem:[#allocation5 + $0x2bd8] sm:$0xff]
    %v1625 = vld [vmem:[#allocation5 + $0x2be0] sm:$0xff]
    %v1626 = vld [vmem:[#allocation5 + $0x2be8] sm:$0xff]
    %v1627 = vld [vmem:[#allocation5 + $0x2bf0] sm:$0xff]
    %v1628 = vld [vmem:[#allocation5 + $0x2bf8] sm:$0xff]
    %v1629 = vld [vmem:[#allocation5 + $0x2c00] sm:$0xff]
    %v1630 = vld [vmem:[#allocation5 + $0x2c08] sm:$0xff]
    %v1631 = vld [vmem:[#allocation5 + $0x2c10] sm:$0xff]
    %v1632 = vld [vmem:[#allocation5 + $0x2c18] sm:$0xff]
    %v1633 = vld [vmem:[#allocation5 + $0x2c20] sm:$0xff]
    %v1634 = vld [vmem:[#allocation5 + $0x2c28] sm:$0xff]
    %v1635 = vld [vmem:[#allocation5 + $0x2c30] sm:$0xff]
    %v1636 = vld [vmem:[#allocation5 + $0x2c38] sm:$0xff]
    %v1637 = vld [vmem:[#allocation5 + $0x2c40] sm:$0xff]
    %v1638 = vld [vmem:[#allocation5 + $0x2c48] sm:$0xff]
    %v1639 = vld [vmem:[#allocation5 + $0x2c50] sm:$0xff]
    %v1640 = vld [vmem:[#allocation5 + $0x2c58] sm:$0xff]
    %v1641 = vld [vmem:[#allocation5 + $0x2c60] sm:$0xff]
    %v1642 = vld [vmem:[#allocation5 + $0x2c68] sm:$0xff]
    %v1643 = vld [vmem:[#allocation5 + $0x2c70] sm:$0xff]
    %v1644 = vld [vmem:[#allocation5 + $0x2c78] sm:$0xff]
    %v1645 = vld [vmem:[#allocation5 + $0x2c80] sm:$0xff]
    %v1646 = vld [vmem:[#allocation5 + $0x2c88] sm:$0xff]
    %v1647 = vld [vmem:[#allocation5 + $0x2c90] sm:$0xff]
    %v1648 = vld [vmem:[#allocation5 + $0x2c98] sm:$0xff]
    %v1649 = vld [vmem:[#allocation5 + $0x2ca0] sm:$0xff]
    %v1650 = vld [vmem:[#allocation5 + $0x2ca8] sm:$0xff]
    %v1651 = vld [vmem:[#allocation5 + $0x2cb0] sm:$0xff]
    %v1652 = vld [vmem:[#allocation5 + $0x2cb8] sm:$0xff]
    %v1653 = vld [vmem:[#allocation5 + $0x2cc0] sm:$0xff]
    %v1654 = vld [vmem:[#allocation5 + $0x2cc8] sm:$0xff]
    %v1655 = vld [vmem:[#allocation5 + $0x2cd0] sm:$0xff]
    %v1656 = vld [vmem:[#allocation5 + $0x2cd8] sm:$0xff]
    %v1657 = vld [vmem:[#allocation5 + $0x2ce0] sm:$0xff]
    %v1658 = vld [vmem:[#allocation5 + $0x2ce8] sm:$0xff]
    %v1659 = vld [vmem:[#allocation5 + $0x2cf0] sm:$0xff]
    %v1660 = vld [vmem:[#allocation5 + $0x2cf8] sm:$0xff]
    %v1661 = vld [vmem:[#allocation5 + $0x2d00] sm:$0xff]
    %v1662 = vld [vmem:[#allocation5 + $0x2d08] sm:$0xff]
    %v1663 = vld [vmem:[#allocation5 + $0x2d10] sm:$0xff]
    %v1664 = vld [vmem:[#allocation5 + $0x2d18] sm:$0xff]
    %v1665 = vld [vmem:[#allocation5 + $0x2d20] sm:$0xff]
    %v1666 = vld [vmem:[#allocation5 + $0x2d28] sm:$0xff]
    %v1667 = vld [vmem:[#allocation5 + $0x2d30] sm:$0xff]
    %v1668 = vld [vmem:[#allocation5 + $0x2d38] sm:$0xff]
    %v1669 = vld [vmem:[#allocation5 + $0x2d40] sm:$0xff]
    %v1670 = vld [vmem:[#allocation5 + $0x2d48] sm:$0xff]
    %v1671 = vld [vmem:[#allocation5 + $0x2d50] sm:$0xff]
    %v1672 = vld [vmem:[#allocation5 + $0x2d58] sm:$0xff]
    %v1673 = vld [vmem:[#allocation5 + $0x2d60] sm:$0xff]
    %v1674 = vld [vmem:[#allocation5 + $0x2d68] sm:$0xff]
    %v1675 = vld [vmem:[#allocation5 + $0x2d70] sm:$0xff]
    %v1676 = vld [vmem:[#allocation5 + $0x2d78] sm:$0xff]
    %v1677 = vld [vmem:[#allocation5 + $0x2d80] sm:$0xff]
    %v1678 = vld [vmem:[#allocation5 + $0x2d88] sm:$0xff]
    %v1679 = vld [vmem:[#allocation5 + $0x2d90] sm:$0xff]
    %v1680 = vld [vmem:[#allocation5 + $0x2d98] sm:$0xff]
    %v1681 = vld [vmem:[#allocation5 + $0x2da0] sm:$0xff]
    %v1682 = vld [vmem:[#allocation5 + $0x2da8] sm:$0xff]
    %v1683 = vld [vmem:[#allocation5 + $0x2db0] sm:$0xff]
    %v1684 = vld [vmem:[#allocation5 + $0x2db8] sm:$0xff]
    %v1685 = vld [vmem:[#allocation5 + $0x2dc0] sm:$0xff]
    %v1686 = vld [vmem:[#allocation5 + $0x2dc8] sm:$0xff]
    %v1687 = vld [vmem:[#allocation5 + $0x2dd0] sm:$0xff]
    %v1688 = vld [vmem:[#allocation5 + $0x2dd8] sm:$0xff]
    %v1689 = vld [vmem:[#allocation5 + $0x2de0] sm:$0xff]
    %v1690 = vld [vmem:[#allocation5 + $0x2de8] sm:$0xff]
    %v1691 = vld [vmem:[#allocation5 + $0x2df0] sm:$0xff]
    %v1692 = vld [vmem:[#allocation5 + $0x2df8] sm:$0xff]
    %v1693 = vld [vmem:[#allocation5 + $0x2e00] sm:$0xff]
    %v1694 = vld [vmem:[#allocation5 + $0x2e08] sm:$0xff]
    %v1695 = vld [vmem:[#allocation5 + $0x2e10] sm:$0xff]
    %v1696 = vld [vmem:[#allocation5 + $0x2e18] sm:$0xff]
    %v1697 = vld [vmem:[#allocation5 + $0x2e20] sm:$0xff]
    %v1698 = vld [vmem:[#allocation5 + $0x2e28] sm:$0xff]
    %v1699 = vld [vmem:[#allocation5 + $0x2e30] sm:$0xff]
    %v1700 = vld [vmem:[#allocation5 + $0x2e38] sm:$0xff]
    %v1701 = vld [vmem:[#allocation5 + $0x2e40] sm:$0xff]
    %v1702 = vld [vmem:[#allocation5 + $0x2e48] sm:$0xff]
    %v1703 = vld [vmem:[#allocation5 + $0x2e50] sm:$0xff]
    %v1704 = vld [vmem:[#allocation5 + $0x2e58] sm:$0xff]
    %v1705 = vld [vmem:[#allocation5 + $0x2e60] sm:$0xff]
    %v1706 = vld [vmem:[#allocation5 + $0x2e68] sm:$0xff]
    %v1707 = vld [vmem:[#allocation5 + $0x2e70] sm:$0xff]
    %v1708 = vld [vmem:[#allocation5 + $0x2e78] sm:$0xff]
    %v1709 = vld [vmem:[#allocation5 + $0x2e80] sm:$0xff]
    %v1710 = vld [vmem:[#allocation5 + $0x2e88] sm:$0xff]
    %v1711 = vld [vmem:[#allocation5 + $0x2e90] sm:$0xff]
    %v1712 = vld [vmem:[#allocation5 + $0x2e98] sm:$0xff]
    %v1713 = vld [vmem:[#allocation5 + $0x2ea0] sm:$0xff]
    %v1714 = vld [vmem:[#allocation5 + $0x2ea8] sm:$0xff]
    %v1715 = vld [vmem:[#allocation5 + $0x2eb0] sm:$0xff]
    %v1716 = vld [vmem:[#allocation5 + $0x2eb8] sm:$0xff]
    %v1717 = vld [vmem:[#allocation5 + $0x2ec0] sm:$0xff]
    %v1718 = vld [vmem:[#allocation5 + $0x2ec8] sm:$0xff]
    %v1719 = vld [vmem:[#allocation5 + $0x2ed0] sm:$0xff]
    %v1720 = vld [vmem:[#allocation5 + $0x2ed8] sm:$0xff]
    %v1721 = vld [vmem:[#allocation5 + $0x2ee0] sm:$0xff]
    %v1722 = vld [vmem:[#allocation5 + $0x2ee8] sm:$0xff]
    %v1723 = vld [vmem:[#allocation5 + $0x2ef0] sm:$0xff]
    %v1724 = vld [vmem:[#allocation5 + $0x2ef8] sm:$0xff]
    %v1725 = vld [vmem:[#allocation5 + $0x2f00] sm:$0xff]
    %v1726 = vld [vmem:[#allocation5 + $0x2f08] sm:$0xff]
    %v1727 = vld [vmem:[#allocation5 + $0x2f10] sm:$0xff]
    %v1728 = vld [vmem:[#allocation5 + $0x2f18] sm:$0xff]
    %v1729 = vld [vmem:[#allocation5 + $0x2f20] sm:$0xff]
    %v1730 = vld [vmem:[#allocation5 + $0x2f28] sm:$0xff]
    %v1731 = vld [vmem:[#allocation5 + $0x2f30] sm:$0xff]
    %v1732 = vld [vmem:[#allocation5 + $0x2f38] sm:$0xff]
    %v1733 = vld [vmem:[#allocation5 + $0x2f40] sm:$0xff]
    %v1734 = vld [vmem:[#allocation5 + $0x2f48] sm:$0xff]
    %v1735 = vld [vmem:[#allocation5 + $0x2f50] sm:$0xff]
    %v1736 = vld [vmem:[#allocation5 + $0x2f58] sm:$0xff]
    %v1737 = vld [vmem:[#allocation5 + $0x2f60] sm:$0xff]
    %v1738 = vld [vmem:[#allocation5 + $0x2f68] sm:$0xff]
    %v1739 = vld [vmem:[#allocation5 + $0x2f70] sm:$0xff]
    %v1740 = vld [vmem:[#allocation5 + $0x2f78] sm:$0xff]
    %v1741 = vld [vmem:[#allocation5 + $0x2f80] sm:$0xff]
    %v1742 = vld [vmem:[#allocation5 + $0x2f88] sm:$0xff]
    %v1743 = vld [vmem:[#allocation5 + $0x2f90] sm:$0xff]
    %v1744 = vld [vmem:[#allocation5 + $0x2f98] sm:$0xff]
    %v1745 = vld [vmem:[#allocation5 + $0x2fa0] sm:$0xff]
    %v1746 = vld [vmem:[#allocation5 + $0x2fa8] sm:$0xff]
    %v1747 = vld [vmem:[#allocation5 + $0x2fb0] sm:$0xff]
    %v1748 = vld [vmem:[#allocation5 + $0x2fb8] sm:$0xff]
    %v1749 = vld [vmem:[#allocation5 + $0x2fc0] sm:$0xff]
    %v1750 = vld [vmem:[#allocation5 + $0x2fc8] sm:$0xff]
    %v1751 = vld [vmem:[#allocation5 + $0x2fd0] sm:$0xff]
    %v1752 = vld [vmem:[#allocation5 + $0x2fd8] sm:$0xff]
    %v1753 = vld [vmem:[#allocation5 + $0x2fe0] sm:$0xff]
    %v1754 = vld [vmem:[#allocation5 + $0x2fe8] sm:$0xff]
    %v1755 = vld [vmem:[#allocation5 + $0x2ff0] sm:$0xff]
    %v1756 = vld [vmem:[#allocation5 + $0x2ff8] sm:$0xff]
    %v1757 = vld [vmem:[#allocation5 + $0x3000] sm:$0xff]
    %v1758 = vld [vmem:[#allocation5 + $0x3008] sm:$0xff]
    %v1759 = vld [vmem:[#allocation5 + $0x3010] sm:$0xff]
    %v1760 = vld [vmem:[#allocation5 + $0x3018] sm:$0xff]
    %v1761 = vld [vmem:[#allocation5 + $0x3020] sm:$0xff]
    %v1762 = vld [vmem:[#allocation5 + $0x3028] sm:$0xff]
    %v1763 = vld [vmem:[#allocation5 + $0x3030] sm:$0xff]
    %v1764 = vld [vmem:[#allocation5 + $0x3038] sm:$0xff]
    %v1765 = vld [vmem:[#allocation5 + $0x3040] sm:$0xff]
    %v1766 = vld [vmem:[#allocation5 + $0x3048] sm:$0xff]
    %v1767 = vld [vmem:[#allocation5 + $0x3050] sm:$0xff]
    %v1768 = vld [vmem:[#allocation5 + $0x3058] sm:$0xff]
    %v1769 = vld [vmem:[#allocation5 + $0x3060] sm:$0xff]
    %v1770 = vld [vmem:[#allocation5 + $0x3068] sm:$0xff]
    %v1771 = vld [vmem:[#allocation5 + $0x3070] sm:$0xff]
    %v1772 = vld [vmem:[#allocation5 + $0x3078] sm:$0xff]
    %v1773 = vld [vmem:[#allocation5 + $0x3080] sm:$0xff]
    %v1774 = vld [vmem:[#allocation5 + $0x3088] sm:$0xff]
    %v1775 = vld [vmem:[#allocation5 + $0x3090] sm:$0xff]
    %v1776 = vld [vmem:[#allocation5 + $0x3098] sm:$0xff]
    %v1777 = vld [vmem:[#allocation5 + $0x30a0] sm:$0xff]
    %v1778 = vld [vmem:[#allocation5 + $0x30a8] sm:$0xff]
    %v1779 = vld [vmem:[#allocation5 + $0x30b0] sm:$0xff]
    %v1780 = vld [vmem:[#allocation5 + $0x30b8] sm:$0xff]
    %v1781 = vld [vmem:[#allocation5 + $0x30c0] sm:$0xff]
    %v1782 = vld [vmem:[#allocation5 + $0x30c8] sm:$0xff]
    %v1783 = vld [vmem:[#allocation5 + $0x30d0] sm:$0xff]
    %v1784 = vld [vmem:[#allocation5 + $0x30d8] sm:$0xff]
    %v1785 = vld [vmem:[#allocation5 + $0x30e0] sm:$0xff]
    %v1786 = vld [vmem:[#allocation5 + $0x30e8] sm:$0xff]
    %v1787 = vld [vmem:[#allocation5 + $0x30f0] sm:$0xff]
    %v1788 = vld [vmem:[#allocation5 + $0x30f8] sm:$0xff]
    %v1789 = vld [vmem:[#allocation5 + $0x3100] sm:$0xff]
    %v1790 = vld [vmem:[#allocation5 + $0x3108] sm:$0xff]
    %v1791 = vld [vmem:[#allocation5 + $0x3110] sm:$0xff]
    %v1792 = vld [vmem:[#allocation5 + $0x3118] sm:$0xff]
    %v1793 = vld [vmem:[#allocation5 + $0x3120] sm:$0xff]
    %v1794 = vld [vmem:[#allocation5 + $0x3128] sm:$0xff]
    %v1795 = vld [vmem:[#allocation5 + $0x3130] sm:$0xff]
    %v1796 = vld [vmem:[#allocation5 + $0x3138] sm:$0xff]
    %v1797 = vld [vmem:[#allocation5 + $0x3140] sm:$0xff]
    %v1798 = vld [vmem:[#allocation5 + $0x3148] sm:$0xff]
    %v1799 = vld [vmem:[#allocation5 + $0x3150] sm:$0xff]
    %v1800 = vld [vmem:[#allocation5 + $0x3158] sm:$0xff]
    %v1801 = vld [vmem:[#allocation5 + $0x3160] sm:$0xff]
    %v1802 = vld [vmem:[#allocation5 + $0x3168] sm:$0xff]
    %v1803 = vld [vmem:[#allocation5 + $0x3170] sm:$0xff]
    %v1804 = vld [vmem:[#allocation5 + $0x3178] sm:$0xff]
    %v1805 = vld [vmem:[#allocation5 + $0x3180] sm:$0xff]
    %v1806 = vld [vmem:[#allocation5 + $0x3188] sm:$0xff]
    %v1807 = vld [vmem:[#allocation5 + $0x3190] sm:$0xff]
    %v1808 = vld [vmem:[#allocation5 + $0x3198] sm:$0xff]
    %v1809 = vld [vmem:[#allocation5 + $0x31a0] sm:$0xff]
    %v1810 = vld [vmem:[#allocation5 + $0x31a8] sm:$0xff]
    %v1811 = vld [vmem:[#allocation5 + $0x31b0] sm:$0xff]
    %v1812 = vld [vmem:[#allocation5 + $0x31b8] sm:$0xff]
    %v1813 = vld [vmem:[#allocation5 + $0x31c0] sm:$0xff]
    %v1814 = vld [vmem:[#allocation5 + $0x31c8] sm:$0xff]
    %v1815 = vld [vmem:[#allocation5 + $0x31d0] sm:$0xff]
    %v1816 = vld [vmem:[#allocation5 + $0x31d8] sm:$0xff]
    %v1817 = vld [vmem:[#allocation5 + $0x31e0] sm:$0xff]
    %v1818 = vld [vmem:[#allocation5 + $0x31e8] sm:$0xff]
    %v1819 = vld [vmem:[#allocation5 + $0x31f0] sm:$0xff]
    %v1820 = vld [vmem:[#allocation5 + $0x31f8] sm:$0xff]
    %v1821 = vld [vmem:[#allocation5 + $0x3200] sm:$0xff]
    %v1822 = vld [vmem:[#allocation5 + $0x3208] sm:$0xff]
    %v1823 = vld [vmem:[#allocation5 + $0x3210] sm:$0xff]
    %v1824 = vld [vmem:[#allocation5 + $0x3218] sm:$0xff]
    %v1825 = vld [vmem:[#allocation5 + $0x3220] sm:$0xff]
    %v1826 = vld [vmem:[#allocation5 + $0x3228] sm:$0xff]
    %v1827 = vld [vmem:[#allocation5 + $0x3230] sm:$0xff]
    %v1828 = vld [vmem:[#allocation5 + $0x3238] sm:$0xff]
    %v1829 = vld [vmem:[#allocation5 + $0x3240] sm:$0xff]
    %v1830 = vld [vmem:[#allocation5 + $0x3248] sm:$0xff]
    %v1831 = vld [vmem:[#allocation5 + $0x3250] sm:$0xff]
    %v1832 = vld [vmem:[#allocation5 + $0x3258] sm:$0xff]
    %v1833 = vld [vmem:[#allocation5 + $0x3260] sm:$0xff]
    %v1834 = vld [vmem:[#allocation5 + $0x3268] sm:$0xff]
    %v1835 = vld [vmem:[#allocation5 + $0x3270] sm:$0xff]
    %v1836 = vld [vmem:[#allocation5 + $0x3278] sm:$0xff]
    %v1837 = vld [vmem:[#allocation5 + $0x3280] sm:$0xff]
    %v1838 = vld [vmem:[#allocation5 + $0x3288] sm:$0xff]
    %v1839 = vld [vmem:[#allocation5 + $0x3290] sm:$0xff]
    %v1840 = vld [vmem:[#allocation5 + $0x3298] sm:$0xff]
    %v1841 = vld [vmem:[#allocation5 + $0x32a0] sm:$0xff]
    %v1842 = vld [vmem:[#allocation5 + $0x32a8] sm:$0xff]
    %v1843 = vld [vmem:[#allocation5 + $0x32b0] sm:$0xff]
    %v1844 = vld [vmem:[#allocation5 + $0x32b8] sm:$0xff]
    %v1845 = vld [vmem:[#allocation5 + $0x32c0] sm:$0xff]
    %v1846 = vld [vmem:[#allocation5 + $0x32c8] sm:$0xff]
    %v1847 = vld [vmem:[#allocation5 + $0x32d0] sm:$0xff]
    %v1848 = vld [vmem:[#allocation5 + $0x32d8] sm:$0xff]
    %v1849 = vld [vmem:[#allocation5 + $0x32e0] sm:$0xff]
    %v1850 = vld [vmem:[#allocation5 + $0x32e8] sm:$0xff]
    %v1851 = vld [vmem:[#allocation5 + $0x32f0] sm:$0xff]
    %v1852 = vld [vmem:[#allocation5 + $0x32f8] sm:$0xff]
    %v1853 = vld [vmem:[#allocation5 + $0x3300] sm:$0xff]
    %v1854 = vld [vmem:[#allocation5 + $0x3308] sm:$0xff]
    %v1855 = vld [vmem:[#allocation5 + $0x3310] sm:$0xff]
    %v1856 = vld [vmem:[#allocation5 + $0x3318] sm:$0xff]
    %v1857 = vld [vmem:[#allocation5 + $0x3320] sm:$0xff]
    %v1858 = vld [vmem:[#allocation5 + $0x3328] sm:$0xff]
    %v1859 = vld [vmem:[#allocation5 + $0x3330] sm:$0xff]
    %v1860 = vld [vmem:[#allocation5 + $0x3338] sm:$0xff]
    %v1861 = vld [vmem:[#allocation5 + $0x3340] sm:$0xff]
    %v1862 = vld [vmem:[#allocation5 + $0x3348] sm:$0xff]
    %v1863 = vld [vmem:[#allocation5 + $0x3350] sm:$0xff]
    %v1864 = vld [vmem:[#allocation5 + $0x3358] sm:$0xff]
    %v1865 = vld [vmem:[#allocation5 + $0x3360] sm:$0xff]
    %v1866 = vld [vmem:[#allocation5 + $0x3368] sm:$0xff]
    %v1867 = vld [vmem:[#allocation5 + $0x3370] sm:$0xff]
    %v1868 = vld [vmem:[#allocation5 + $0x3378] sm:$0xff]
    %v1869 = vld [vmem:[#allocation5 + $0x3380] sm:$0xff]
    %v1870 = vld [vmem:[#allocation5 + $0x3388] sm:$0xff]
    %v1871 = vld [vmem:[#allocation5 + $0x3390] sm:$0xff]
    %v1872 = vld [vmem:[#allocation5 + $0x3398] sm:$0xff]
    %v1873 = vld [vmem:[#allocation5 + $0x33a0] sm:$0xff]
    %v1874 = vld [vmem:[#allocation5 + $0x33a8] sm:$0xff]
    %v1875 = vld [vmem:[#allocation5 + $0x33b0] sm:$0xff]
    %v1876 = vld [vmem:[#allocation5 + $0x33b8] sm:$0xff]
    %v1877 = vld [vmem:[#allocation5 + $0x33c0] sm:$0xff]
    %v1878 = vld [vmem:[#allocation5 + $0x33c8] sm:$0xff]
    %v1879 = vld [vmem:[#allocation5 + $0x33d0] sm:$0xff]
    %v1880 = vld [vmem:[#allocation5 + $0x33d8] sm:$0xff]
    %v1881 = vld [vmem:[#allocation5 + $0x33e0] sm:$0xff]
    %v1882 = vld [vmem:[#allocation5 + $0x33e8] sm:$0xff]
    %v1883 = vld [vmem:[#allocation5 + $0x33f0] sm:$0xff]
    %v1884 = vld [vmem:[#allocation5 + $0x33f8] sm:$0xff]
    %v1885 = vld [vmem:[#allocation5 + $0x3400] sm:$0xff]
    %v1886 = vld [vmem:[#allocation5 + $0x3408] sm:$0xff]
    %v1887 = vld [vmem:[#allocation5 + $0x3410] sm:$0xff]
    %v1888 = vld [vmem:[#allocation5 + $0x3418] sm:$0xff]
    %v1889 = vld [vmem:[#allocation5 + $0x3420] sm:$0xff]
    %v1890 = vld [vmem:[#allocation5 + $0x3428] sm:$0xff]
    %v1891 = vld [vmem:[#allocation5 + $0x3430] sm:$0xff]
    %v1892 = vld [vmem:[#allocation5 + $0x3438] sm:$0xff]
    %v1893 = vld [vmem:[#allocation5 + $0x3440] sm:$0xff]
    %v1894 = vld [vmem:[#allocation5 + $0x3448] sm:$0xff]
    %v1895 = vld [vmem:[#allocation5 + $0x3450] sm:$0xff]
    %v1896 = vld [vmem:[#allocation5 + $0x3458] sm:$0xff]
    %v1897 = vld [vmem:[#allocation5 + $0x3460] sm:$0xff]
    %v1898 = vld [vmem:[#allocation5 + $0x3468] sm:$0xff]
    %v1899 = vld [vmem:[#allocation5 + $0x3470] sm:$0xff]
    %v1900 = vld [vmem:[#allocation5 + $0x3478] sm:$0xff]
    %v1901 = vld [vmem:[#allocation5 + $0x3480] sm:$0xff]
    %v1902 = vld [vmem:[#allocation5 + $0x3488] sm:$0xff]
    %v1903 = vld [vmem:[#allocation5 + $0x3490] sm:$0xff]
    %v1904 = vld [vmem:[#allocation5 + $0x3498] sm:$0xff]
    %v1905 = vld [vmem:[#allocation5 + $0x34a0] sm:$0xff]
    %v1906 = vld [vmem:[#allocation5 + $0x34a8] sm:$0xff]
    %v1907 = vld [vmem:[#allocation5 + $0x34b0] sm:$0xff]
    %v1908 = vld [vmem:[#allocation5 + $0x34b8] sm:$0xff]
    %v1909 = vld [vmem:[#allocation5 + $0x34c0] sm:$0xff]
    %v1910 = vld [vmem:[#allocation5 + $0x34c8] sm:$0xff]
    %v1911 = vld [vmem:[#allocation5 + $0x34d0] sm:$0xff]
    %v1912 = vld [vmem:[#allocation5 + $0x34d8] sm:$0xff]
    %v1913 = vld [vmem:[#allocation5 + $0x34e0] sm:$0xff]
    %v1914 = vld [vmem:[#allocation5 + $0x34e8] sm:$0xff]
    %v1915 = vld [vmem:[#allocation5 + $0x34f0] sm:$0xff]
    %v1916 = vld [vmem:[#allocation5 + $0x34f8] sm:$0xff]
    %v1917 = vld [vmem:[#allocation5 + $0x3500] sm:$0xff]
    %v1918 = vld [vmem:[#allocation5 + $0x3508] sm:$0xff]
    %v1919 = vld [vmem:[#allocation5 + $0x3510] sm:$0xff]
    %v1920 = vld [vmem:[#allocation5 + $0x3518] sm:$0xff]
    %v1921 = vld [vmem:[#allocation5 + $0x3520] sm:$0xff]
    %v1922 = vld [vmem:[#allocation5 + $0x3528] sm:$0xff]
    %v1923 = vld [vmem:[#allocation5 + $0x3530] sm:$0xff]
    %v1924 = vld [vmem:[#allocation5 + $0x3538] sm:$0xff]
    %v1925 = vld [vmem:[#allocation5 + $0x3540] sm:$0xff]
    %v1926 = vld [vmem:[#allocation5 + $0x3548] sm:$0xff]
    %v1927 = vld [vmem:[#allocation5 + $0x3550] sm:$0xff]
    %v1928 = vld [vmem:[#allocation5 + $0x3558] sm:$0xff]
    %v1929 = vld [vmem:[#allocation5 + $0x3560] sm:$0xff]
    %v1930 = vld [vmem:[#allocation5 + $0x3568] sm:$0xff]
    %v1931 = vld [vmem:[#allocation5 + $0x3570] sm:$0xff]
    %v1932 = vld [vmem:[#allocation5 + $0x3578] sm:$0xff]
    %v1933 = vld [vmem:[#allocation5 + $0x3580] sm:$0xff]
    %v1934 = vld [vmem:[#allocation5 + $0x3588] sm:$0xff]
    %v1935 = vld [vmem:[#allocation5 + $0x3590] sm:$0xff]
    %v1936 = vld [vmem:[#allocation5 + $0x3598] sm:$0xff]
    %v1937 = vld [vmem:[#allocation5 + $0x35a0] sm:$0xff]
    %v1938 = vld [vmem:[#allocation5 + $0x35a8] sm:$0xff]
    %v1939 = vld [vmem:[#allocation5 + $0x35b0] sm:$0xff]
    %v1940 = vld [vmem:[#allocation5 + $0x35b8] sm:$0xff]
    %v1941 = vld [vmem:[#allocation5 + $0x35c0] sm:$0xff]
    %v1942 = vld [vmem:[#allocation5 + $0x35c8] sm:$0xff]
    %v1943 = vld [vmem:[#allocation5 + $0x35d0] sm:$0xff]
    %v1944 = vld [vmem:[#allocation5 + $0x35d8] sm:$0xff]
    %v1945 = vld [vmem:[#allocation5 + $0x35e0] sm:$0xff]
    %v1946 = vld [vmem:[#allocation5 + $0x35e8] sm:$0xff]
    %v1947 = vld [vmem:[#allocation5 + $0x35f0] sm:$0xff]
    %v1948 = vld [vmem:[#allocation5 + $0x35f8] sm:$0xff]
    %v1949 = vld [vmem:[#allocation5 + $0x3600] sm:$0xff]
    %v1950 = vld [vmem:[#allocation5 + $0x3608] sm:$0xff]
    %v1951 = vld [vmem:[#allocation5 + $0x3610] sm:$0xff]
    %v1952 = vld [vmem:[#allocation5 + $0x3618] sm:$0xff]
    %v1953 = vld [vmem:[#allocation5 + $0x3620] sm:$0xff]
    %v1954 = vld [vmem:[#allocation5 + $0x3628] sm:$0xff]
    %v1955 = vld [vmem:[#allocation5 + $0x3630] sm:$0xff]
    %v1956 = vld [vmem:[#allocation5 + $0x3638] sm:$0xff]
    %v1957 = vld [vmem:[#allocation5 + $0x3640] sm:$0xff]
    %v1958 = vld [vmem:[#allocation5 + $0x3648] sm:$0xff]
    %v1959 = vld [vmem:[#allocation5 + $0x3650] sm:$0xff]
    %v1960 = vld [vmem:[#allocation5 + $0x3658] sm:$0xff]
    %v1961 = vld [vmem:[#allocation5 + $0x3660] sm:$0xff]
    %v1962 = vld [vmem:[#allocation5 + $0x3668] sm:$0xff]
    %v1963 = vld [vmem:[#allocation5 + $0x3670] sm:$0xff]
    %v1964 = vld [vmem:[#allocation5 + $0x3678] sm:$0xff]
    %v1965 = vld [vmem:[#allocation5 + $0x3680] sm:$0xff]
    %v1966 = vld [vmem:[#allocation5 + $0x3688] sm:$0xff]
    %v1967 = vld [vmem:[#allocation5 + $0x3690] sm:$0xff]
    %v1968 = vld [vmem:[#allocation5 + $0x3698] sm:$0xff]
    %v1969 = vld [vmem:[#allocation5 + $0x36a0] sm:$0xff]
    %v1970 = vld [vmem:[#allocation5 + $0x36a8] sm:$0xff]
    %v1971 = vld [vmem:[#allocation5 + $0x36b0] sm:$0xff]
    %v1972 = vld [vmem:[#allocation5 + $0x36b8] sm:$0xff]
    %v1973 = vld [vmem:[#allocation5 + $0x36c0] sm:$0xff]
    %v1974 = vld [vmem:[#allocation5 + $0x36c8] sm:$0xff]
    %v1975 = vld [vmem:[#allocation5 + $0x36d0] sm:$0xff]
    %v1976 = vld [vmem:[#allocation5 + $0x36d8] sm:$0xff]
    %v1977 = vld [vmem:[#allocation5 + $0x36e0] sm:$0xff]
    %v1978 = vld [vmem:[#allocation5 + $0x36e8] sm:$0xff]
    %v1979 = vld [vmem:[#allocation5 + $0x36f0] sm:$0xff]
    %v1980 = vld [vmem:[#allocation5 + $0x36f8] sm:$0xff]
    %v1981 = vld [vmem:[#allocation5 + $0x3700] sm:$0xff]
    %v1982 = vld [vmem:[#allocation5 + $0x3708] sm:$0xff]
    %v1983 = vld [vmem:[#allocation5 + $0x3710] sm:$0xff]
    %v1984 = vld [vmem:[#allocation5 + $0x3718] sm:$0xff]
    %v1985 = vld [vmem:[#allocation5 + $0x3720] sm:$0xff]
    %v1986 = vld [vmem:[#allocation5 + $0x3728] sm:$0xff]
    %v1987 = vld [vmem:[#allocation5 + $0x3730] sm:$0xff]
    %v1988 = vld [vmem:[#allocation5 + $0x3738] sm:$0xff]
    %v1989 = vld [vmem:[#allocation5 + $0x3740] sm:$0xff]
    %v1990 = vld [vmem:[#allocation5 + $0x3748] sm:$0xff]
    %v1991 = vld [vmem:[#allocation5 + $0x3750] sm:$0xff]
    %v1992 = vld [vmem:[#allocation5 + $0x3758] sm:$0xff]
    %v1993 = vld [vmem:[#allocation5 + $0x3760] sm:$0xff]
    %v1994 = vld [vmem:[#allocation5 + $0x3768] sm:$0xff]
    %v1995 = vld [vmem:[#allocation5 + $0x3770] sm:$0xff]
    %v1996 = vld [vmem:[#allocation5 + $0x3778] sm:$0xff]
    %v1997 = vld [vmem:[#allocation5 + $0x3780] sm:$0xff]
    %v1998 = vld [vmem:[#allocation5 + $0x3788] sm:$0xff]
    %v1999 = vld [vmem:[#allocation5 + $0x3790] sm:$0xff]
    %v2000 = vld [vmem:[#allocation5 + $0x3798] sm:$0xff]
    %v2001 = vld [vmem:[#allocation5 + $0x37a0] sm:$0xff]
    %v2002 = vld [vmem:[#allocation5 + $0x37a8] sm:$0xff]
    %v2003 = vld [vmem:[#allocation5 + $0x37b0] sm:$0xff]
    %v2004 = vld [vmem:[#allocation5 + $0x37b8] sm:$0xff]
    %v2005 = vld [vmem:[#allocation5 + $0x37c0] sm:$0xff]
    %v2006 = vld [vmem:[#allocation5 + $0x37c8] sm:$0xff]
    %v2007 = vld [vmem:[#allocation5 + $0x37d0] sm:$0xff]
    %v2008 = vld [vmem:[#allocation5 + $0x37d8] sm:$0xff]
    %v2009 = vld [vmem:[#allocation5 + $0x37e0] sm:$0xff]
    %v2010 = vld [vmem:[#allocation5 + $0x37e8] sm:$0xff]
    %v2011 = vld [vmem:[#allocation5 + $0x37f0] sm:$0xff]
    %v2012 = vld [vmem:[#allocation5 + $0x37f8] sm:$0xff]
    %v2013 = vld [vmem:[#allocation5 + $0x3800] sm:$0xff]
    %v2014 = vld [vmem:[#allocation5 + $0x3808] sm:$0xff]
    %v2015 = vld [vmem:[#allocation5 + $0x3810] sm:$0xff]
    %v2016 = vld [vmem:[#allocation5 + $0x3818] sm:$0xff]
    %v2017 = vld [vmem:[#allocation5 + $0x3820] sm:$0xff]
    %v2018 = vld [vmem:[#allocation5 + $0x3828] sm:$0xff]
    %v2019 = vld [vmem:[#allocation5 + $0x3830] sm:$0xff]
    %v2020 = vld [vmem:[#allocation5 + $0x3838] sm:$0xff]
    %v2021 = vld [vmem:[#allocation5 + $0x3840] sm:$0xff]
    %v2022 = vld [vmem:[#allocation5 + $0x3848] sm:$0xff]
    %v2023 = vld [vmem:[#allocation5 + $0x3850] sm:$0xff]
    %v2024 = vld [vmem:[#allocation5 + $0x3858] sm:$0xff]
    %v2025 = vld [vmem:[#allocation5 + $0x3860] sm:$0xff]
    %v2026 = vld [vmem:[#allocation5 + $0x3868] sm:$0xff]
    %v2027 = vld [vmem:[#allocation5 + $0x3870] sm:$0xff]
    %v2028 = vld [vmem:[#allocation5 + $0x3878] sm:$0xff]
    %v2029 = vld [vmem:[#allocation5 + $0x3880] sm:$0xff]
    %v2030 = vld [vmem:[#allocation5 + $0x3888] sm:$0xff]
    %v2031 = vld [vmem:[#allocation5 + $0x3890] sm:$0xff]
    %v2032 = vld [vmem:[#allocation5 + $0x3898] sm:$0xff]
    %v2033 = vld [vmem:[#allocation5 + $0x38a0] sm:$0xff]
    %v2034 = vld [vmem:[#allocation5 + $0x38a8] sm:$0xff]
    %v2035 = vld [vmem:[#allocation5 + $0x38b0] sm:$0xff]
    %v2036 = vld [vmem:[#allocation5 + $0x38b8] sm:$0xff]
    %v2037 = vld [vmem:[#allocation5 + $0x38c0] sm:$0xff]
    %v2038 = vld [vmem:[#allocation5 + $0x38c8] sm:$0xff]
    %v2039 = vld [vmem:[#allocation5 + $0x38d0] sm:$0xff]
    %v2040 = vld [vmem:[#allocation5 + $0x38d8] sm:$0xff]
    %v2041 = vld [vmem:[#allocation5 + $0x38e0] sm:$0xff]
    %v2042 = vld [vmem:[#allocation5 + $0x38e8] sm:$0xff]
    %v2043 = vld [vmem:[#allocation5 + $0x38f0] sm:$0xff]
    %v2044 = vld [vmem:[#allocation5 + $0x38f8] sm:$0xff]
    %v2045 = vld [vmem:[#allocation5 + $0x3900] sm:$0xff]
    %v2046 = vld [vmem:[#allocation5 + $0x3908] sm:$0xff]
    %v2047 = vld [vmem:[#allocation5 + $0x3910] sm:$0xff]
    %v2048 = vld [vmem:[#allocation5 + $0x3918] sm:$0xff]
    %v2049 = vld [vmem:[#allocation5 + $0x3920] sm:$0xff]
    %v2050 = vld [vmem:[#allocation5 + $0x3928] sm:$0xff]
    %v2051 = vld [vmem:[#allocation5 + $0x3930] sm:$0xff]
    %v2052 = vld [vmem:[#allocation5 + $0x3938] sm:$0xff]
    %v2053 = vld [vmem:[#allocation5 + $0x3940] sm:$0xff]
    %v2054 = vld [vmem:[#allocation5 + $0x3948] sm:$0xff]
    %v2055 = vld [vmem:[#allocation5 + $0x3950] sm:$0xff]
    %v2056 = vld [vmem:[#allocation5 + $0x3958] sm:$0xff]
    %v2057 = vld [vmem:[#allocation5 + $0x3960] sm:$0xff]
    %v2058 = vld [vmem:[#allocation5 + $0x3968] sm:$0xff]
    %v2059 = vld [vmem:[#allocation5 + $0x3970] sm:$0xff]
    %v2060 = vld [vmem:[#allocation5 + $0x3978] sm:$0xff]
    %v2061 = vld [vmem:[#allocation5 + $0x3980] sm:$0xff]
    %v2062 = vld [vmem:[#allocation5 + $0x3988] sm:$0xff]
    %v2063 = vld [vmem:[#allocation5 + $0x3990] sm:$0xff]
    %v2064 = vld [vmem:[#allocation5 + $0x3998] sm:$0xff]
    %v2065 = vld [vmem:[#allocation5 + $0x39a0] sm:$0xff]
    %v2066 = vld [vmem:[#allocation5 + $0x39a8] sm:$0xff]
    %v2067 = vld [vmem:[#allocation5 + $0x39b0] sm:$0xff]
    %v2068 = vld [vmem:[#allocation5 + $0x39b8] sm:$0xff]
    %v2069 = vld [vmem:[#allocation5 + $0x39c0] sm:$0xff]
    %v2070 = vld [vmem:[#allocation5 + $0x39c8] sm:$0xff]
    %v2071 = vld [vmem:[#allocation5 + $0x39d0] sm:$0xff]
    %v2072 = vld [vmem:[#allocation5 + $0x39d8] sm:$0xff]
    %v2073 = vld [vmem:[#allocation5 + $0x39e0] sm:$0xff]
    %v2074 = vld [vmem:[#allocation5 + $0x39e8] sm:$0xff]
    %v2075 = vld [vmem:[#allocation5 + $0x39f0] sm:$0xff]
    %v2076 = vld [vmem:[#allocation5 + $0x39f8] sm:$0xff]
    %v2077 = vld [vmem:[#allocation5 + $0x3a00] sm:$0xff]
    %v2078 = vld [vmem:[#allocation5 + $0x3a08] sm:$0xff]
    %v2079 = vld [vmem:[#allocation5 + $0x3a10] sm:$0xff]
    %v2080 = vld [vmem:[#allocation5 + $0x3a18] sm:$0xff]
    %v2081 = vld [vmem:[#allocation5 + $0x3a20] sm:$0xff]
    %v2082 = vld [vmem:[#allocation5 + $0x3a28] sm:$0xff]
    %v2083 = vld [vmem:[#allocation5 + $0x3a30] sm:$0xff]
    %v2084 = vld [vmem:[#allocation5 + $0x3a38] sm:$0xff]
    %v2085 = vld [vmem:[#allocation5 + $0x3a40] sm:$0xff]
    %v2086 = vld [vmem:[#allocation5 + $0x3a48] sm:$0xff]
    %v2087 = vld [vmem:[#allocation5 + $0x3a50] sm:$0xff]
    %v2088 = vld [vmem:[#allocation5 + $0x3a58] sm:$0xff]
    %v2089 = vld [vmem:[#allocation5 + $0x3a60] sm:$0xff]
    %v2090 = vld [vmem:[#allocation5 + $0x3a68] sm:$0xff]
    %v2091 = vld [vmem:[#allocation5 + $0x3a70] sm:$0xff]
    %v2092 = vld [vmem:[#allocation5 + $0x3a78] sm:$0xff]
    %v2093 = vld [vmem:[#allocation5 + $0x3a80] sm:$0xff]
    %v2094 = vld [vmem:[#allocation5 + $0x3a88] sm:$0xff]
    %v2095 = vld [vmem:[#allocation5 + $0x3a90] sm:$0xff]
    %v2096 = vld [vmem:[#allocation5 + $0x3a98] sm:$0xff]
    %v2097 = vld [vmem:[#allocation5 + $0x3aa0] sm:$0xff]
    %v2098 = vld [vmem:[#allocation5 + $0x3aa8] sm:$0xff]
    %v2099 = vld [vmem:[#allocation5 + $0x3ab0] sm:$0xff]
    %v2100 = vld [vmem:[#allocation5 + $0x3ab8] sm:$0xff]
    %v2101 = vld [vmem:[#allocation5 + $0x3ac0] sm:$0xff]
    %v2102 = vld [vmem:[#allocation5 + $0x3ac8] sm:$0xff]
    %v2103 = vld [vmem:[#allocation5 + $0x3ad0] sm:$0xff]
    %v2104 = vld [vmem:[#allocation5 + $0x3ad8] sm:$0xff]
    %v2105 = vld [vmem:[#allocation5 + $0x3ae0] sm:$0xff]
    %v2106 = vld [vmem:[#allocation5 + $0x3ae8] sm:$0xff]
    %v2107 = vld [vmem:[#allocation5 + $0x3af0] sm:$0xff]
    %v2108 = vld [vmem:[#allocation5 + $0x3af8] sm:$0xff]
    %v2109 = vld [vmem:[#allocation5 + $0x3b00] sm:$0xff]
    %v2110 = vld [vmem:[#allocation5 + $0x3b08] sm:$0xff]
    %v2111 = vld [vmem:[#allocation5 + $0x3b10] sm:$0xff]
    %v2112 = vld [vmem:[#allocation5 + $0x3b18] sm:$0xff]
    %v2113 = vld [vmem:[#allocation5 + $0x3b20] sm:$0xff]
    %v2114 = vld [vmem:[#allocation5 + $0x3b28] sm:$0xff]
    %v2115 = vld [vmem:[#allocation5 + $0x3b30] sm:$0xff]
    %v2116 = vld [vmem:[#allocation5 + $0x3b38] sm:$0xff]
    %v2117 = vld [vmem:[#allocation5 + $0x3b40] sm:$0xff]
    %v2118 = vld [vmem:[#allocation5 + $0x3b48] sm:$0xff]
    %v2119 = vld [vmem:[#allocation5 + $0x3b50] sm:$0xff]
    %v2120 = vld [vmem:[#allocation5 + $0x3b58] sm:$0xff]
    %v2121 = vld [vmem:[#allocation5 + $0x3b60] sm:$0xff]
    %v2122 = vld [vmem:[#allocation5 + $0x3b68] sm:$0xff]
    %v2123 = vld [vmem:[#allocation5 + $0x3b70] sm:$0xff]
    %v2124 = vld [vmem:[#allocation5 + $0x3b78] sm:$0xff]
    %v2125 = vld [vmem:[#allocation5 + $0x3b80] sm:$0xff]
    %v2126 = vld [vmem:[#allocation5 + $0x3b88] sm:$0xff]
    %v2127 = vld [vmem:[#allocation5 + $0x3b90] sm:$0xff]
    %v2128 = vld [vmem:[#allocation5 + $0x3b98] sm:$0xff]
    %v2129 = vld [vmem:[#allocation5 + $0x3ba0] sm:$0xff]
    %v2130 = vld [vmem:[#allocation5 + $0x3ba8] sm:$0xff]
    %v2131 = vld [vmem:[#allocation5 + $0x3bb0] sm:$0xff]
    %v2132 = vld [vmem:[#allocation5 + $0x3bb8] sm:$0xff]
    %v2133 = vld [vmem:[#allocation5 + $0x3bc0] sm:$0xff]
    %v2134 = vld [vmem:[#allocation5 + $0x3bc8] sm:$0xff]
    %v2135 = vld [vmem:[#allocation5 + $0x3bd0] sm:$0xff]
    %v2136 = vld [vmem:[#allocation5 + $0x3bd8] sm:$0xff]
    %v2137 = vld [vmem:[#allocation5 + $0x3be0] sm:$0xff]
    %v2138 = vld [vmem:[#allocation5 + $0x3be8] sm:$0xff]
    %v2139 = vld [vmem:[#allocation5 + $0x3bf0] sm:$0xff]
    %v2140 = vld [vmem:[#allocation5 + $0x3bf8] sm:$0xff]
    %v2141 = vld [vmem:[#allocation5 + $0x3c00] sm:$0xff]
    %v2142 = vld [vmem:[#allocation5 + $0x3c08] sm:$0xff]
    %v2143 = vld [vmem:[#allocation5 + $0x3c10] sm:$0xff]
    %v2144 = vld [vmem:[#allocation5 + $0x3c18] sm:$0xff]
    %v2145 = vld [vmem:[#allocation5 + $0x3c20] sm:$0xff]
    %v2146 = vld [vmem:[#allocation5 + $0x3c28] sm:$0xff]
    %v2147 = vld [vmem:[#allocation5 + $0x3c30] sm:$0xff]
    %v2148 = vld [vmem:[#allocation5 + $0x3c38] sm:$0xff]
    %v2149 = vld [vmem:[#allocation5 + $0x3c40] sm:$0xff]
    %v2150 = vld [vmem:[#allocation5 + $0x3c48] sm:$0xff]
    %v2151 = vld [vmem:[#allocation5 + $0x3c50] sm:$0xff]
    %v2152 = vld [vmem:[#allocation5 + $0x3c58] sm:$0xff]
    %v2153 = vld [vmem:[#allocation5 + $0x3c60] sm:$0xff]
    %v2154 = vld [vmem:[#allocation5 + $0x3c68] sm:$0xff]
    %v2155 = vld [vmem:[#allocation5 + $0x3c70] sm:$0xff]
    %v2156 = vld [vmem:[#allocation5 + $0x3c78] sm:$0xff]
    %v2157 = vld [vmem:[#allocation5 + $0x3c80] sm:$0xff]
    %v2158 = vld [vmem:[#allocation5 + $0x3c88] sm:$0xff]
    %v2159 = vld [vmem:[#allocation5 + $0x3c90] sm:$0xff]
    %v2160 = vld [vmem:[#allocation5 + $0x3c98] sm:$0xff]
    %v2161 = vld [vmem:[#allocation5 + $0x3ca0] sm:$0xff]
    %v2162 = vld [vmem:[#allocation5 + $0x3ca8] sm:$0xff]
    %v2163 = vld [vmem:[#allocation5 + $0x3cb0] sm:$0xff]
    %v2164 = vld [vmem:[#allocation5 + $0x3cb8] sm:$0xff]
    %v2165 = vld [vmem:[#allocation5 + $0x3cc0] sm:$0xff]
    %v2166 = vld [vmem:[#allocation5 + $0x3cc8] sm:$0xff]
    %v2167 = vld [vmem:[#allocation5 + $0x3cd0] sm:$0xff]
    %v2168 = vld [vmem:[#allocation5 + $0x3cd8] sm:$0xff]
    %v2169 = vld [vmem:[#allocation5 + $0x3ce0] sm:$0xff]
    %v2170 = vld [vmem:[#allocation5 + $0x3ce8] sm:$0xff]
    %v2171 = vld [vmem:[#allocation5 + $0x3cf0] sm:$0xff]
    %v2172 = vld [vmem:[#allocation5 + $0x3cf8] sm:$0xff]
    %v2173 = vld [vmem:[#allocation5 + $0x3d00] sm:$0xff]
    %v2174 = vld [vmem:[#allocation5 + $0x3d08] sm:$0xff]
    %v2175 = vld [vmem:[#allocation5 + $0x3d10] sm:$0xff]
    %v2176 = vld [vmem:[#allocation5 + $0x3d18] sm:$0xff]
    %v2177 = vld [vmem:[#allocation5 + $0x3d20] sm:$0xff]
    %v2178 = vld [vmem:[#allocation5 + $0x3d28] sm:$0xff]
    %v2179 = vld [vmem:[#allocation5 + $0x3d30] sm:$0xff]
    %v2180 = vld [vmem:[#allocation5 + $0x3d38] sm:$0xff]
    %v2181 = vld [vmem:[#allocation5 + $0x3d40] sm:$0xff]
    %v2182 = vld [vmem:[#allocation5 + $0x3d48] sm:$0xff]
    %v2183 = vld [vmem:[#allocation5 + $0x3d50] sm:$0xff]
    %v2184 = vld [vmem:[#allocation5 + $0x3d58] sm:$0xff]
    %v2185 = vld [vmem:[#allocation5 + $0x3d60] sm:$0xff]
    %v2186 = vld [vmem:[#allocation5 + $0x3d68] sm:$0xff]
    %v2187 = vld [vmem:[#allocation5 + $0x3d70] sm:$0xff]
    %v2188 = vld [vmem:[#allocation5 + $0x3d78] sm:$0xff]
    %v2189 = vld [vmem:[#allocation5 + $0x3d80] sm:$0xff]
    %v2190 = vld [vmem:[#allocation5 + $0x3d88] sm:$0xff]
    %v2191 = vld [vmem:[#allocation5 + $0x3d90] sm:$0xff]
    %v2192 = vld [vmem:[#allocation5 + $0x3d98] sm:$0xff]
    %v2193 = vld [vmem:[#allocation5 + $0x3da0] sm:$0xff]
    %v2194 = vld [vmem:[#allocation5 + $0x3da8] sm:$0xff]
    %v2195 = vld [vmem:[#allocation5 + $0x3db0] sm:$0xff]
    %v2196 = vld [vmem:[#allocation5 + $0x3db8] sm:$0xff]
    %v2197 = vld [vmem:[#allocation5 + $0x3dc0] sm:$0xff]
    %v2198 = vld [vmem:[#allocation5 + $0x3dc8] sm:$0xff]
    %v2199 = vld [vmem:[#allocation5 + $0x3dd0] sm:$0xff]
    %v2200 = vld [vmem:[#allocation5 + $0x3dd8] sm:$0xff]
    %v2201 = vld [vmem:[#allocation5 + $0x3de0] sm:$0xff]
    %v2202 = vld [vmem:[#allocation5 + $0x3de8] sm:$0xff]
    %v2203 = vld [vmem:[#allocation5 + $0x3df0] sm:$0xff]
    %v2204 = vld [vmem:[#allocation5 + $0x3df8] sm:$0xff]
    %v2205 = vld [vmem:[#allocation5 + $0x3e00] sm:$0xff]
    %v2206 = vld [vmem:[#allocation5 + $0x3e08] sm:$0xff]
    %v2207 = vld [vmem:[#allocation5 + $0x3e10] sm:$0xff]
    %v2208 = vld [vmem:[#allocation5 + $0x3e18] sm:$0xff]
    %v2209 = vld [vmem:[#allocation5 + $0x3e20] sm:$0xff]
    %v2210 = vld [vmem:[#allocation5 + $0x3e28] sm:$0xff]
    %v2211 = vld [vmem:[#allocation5 + $0x3e30] sm:$0xff]
    %v2212 = vld [vmem:[#allocation5 + $0x3e38] sm:$0xff]
    %v2213 = vld [vmem:[#allocation5 + $0x3e40] sm:$0xff]
    %v2214 = vld [vmem:[#allocation5 + $0x3e48] sm:$0xff]
    %v2215 = vld [vmem:[#allocation5 + $0x3e50] sm:$0xff]
    %v2216 = vld [vmem:[#allocation5 + $0x3e58] sm:$0xff]
    %v2217 = vld [vmem:[#allocation5 + $0x3e60] sm:$0xff]
    %v2218 = vld [vmem:[#allocation5 + $0x3e68] sm:$0xff]
    %v2219 = vld [vmem:[#allocation5 + $0x3e70] sm:$0xff]
    %v2220 = vld [vmem:[#allocation5 + $0x3e78] sm:$0xff]
    %v2221 = vld [vmem:[#allocation5 + $0x3e80] sm:$0xff]
    %v2222 = vld [vmem:[#allocation5 + $0x3e88] sm:$0xff]
    %v2223 = vld [vmem:[#allocation5 + $0x3e90] sm:$0xff]
    %v2224 = vld [vmem:[#allocation5 + $0x3e98] sm:$0xff]
    %v2225 = vld [vmem:[#allocation5 + $0x3ea0] sm:$0xff]
    %v2226 = vld [vmem:[#allocation5 + $0x3ea8] sm:$0xff]
    %v2227 = vld [vmem:[#allocation5 + $0x3eb0] sm:$0xff]
    %v2228 = vld [vmem:[#allocation5 + $0x3eb8] sm:$0xff]
    %v2229 = vld [vmem:[#allocation5 + $0x3ec0] sm:$0xff]
    %v2230 = vld [vmem:[#allocation5 + $0x3ec8] sm:$0xff]
    %v2231 = vld [vmem:[#allocation5 + $0x3ed0] sm:$0xff]
    %v2232 = vld [vmem:[#allocation5 + $0x3ed8] sm:$0xff]
    %v2233 = vld [vmem:[#allocation5 + $0x3ee0] sm:$0xff]
    %v2234 = vld [vmem:[#allocation5 + $0x3ee8] sm:$0xff]
    %v2235 = vld [vmem:[#allocation5 + $0x3ef0] sm:$0xff]
    %v2236 = vld [vmem:[#allocation5 + $0x3ef8] sm:$0xff]
    %v2237 = vld [vmem:[#allocation5 + $0x3f00] sm:$0xff]
    %v2238 = vld [vmem:[#allocation5 + $0x3f08] sm:$0xff]
    %v2239 = vld [vmem:[#allocation5 + $0x3f10] sm:$0xff]
    %v2240 = vld [vmem:[#allocation5 + $0x3f18] sm:$0xff]
    %v2241 = vld [vmem:[#allocation5 + $0x3f20] sm:$0xff]
    %v2242 = vld [vmem:[#allocation5 + $0x3f28] sm:$0xff]
    %v2243 = vld [vmem:[#allocation5 + $0x3f30] sm:$0xff]
    %v2244 = vld [vmem:[#allocation5 + $0x3f38] sm:$0xff]
    %v2245 = vld [vmem:[#allocation5 + $0x3f40] sm:$0xff]
    %v2246 = vld [vmem:[#allocation5 + $0x3f48] sm:$0xff]
    %v2247 = vld [vmem:[#allocation5 + $0x3f50] sm:$0xff]
    %v2248 = vld [vmem:[#allocation5 + $0x3f58] sm:$0xff]
    %v2249 = vld [vmem:[#allocation5 + $0x3f60] sm:$0xff]
    %v2250 = vld [vmem:[#allocation5 + $0x3f68] sm:$0xff]
    %v2251 = vld [vmem:[#allocation5 + $0x3f70] sm:$0xff]
    %v2252 = vld [vmem:[#allocation5 + $0x3f78] sm:$0xff]
    %v2253 = vld [vmem:[#allocation5 + $0x3f80] sm:$0xff]
    %v2254 = vld [vmem:[#allocation5 + $0x3f88] sm:$0xff]
    %v2255 = vld [vmem:[#allocation5 + $0x3f90] sm:$0xff]
    %v2256 = vld [vmem:[#allocation5 + $0x3f98] sm:$0xff]
    %v2257 = vld [vmem:[#allocation5 + $0x3fa0] sm:$0xff]
    %v2258 = vld [vmem:[#allocation5 + $0x3fa8] sm:$0xff]
    %v2259 = vld [vmem:[#allocation5 + $0x3fb0] sm:$0xff]
    %v2260 = vld [vmem:[#allocation5 + $0x3fb8] sm:$0xff]
    %v2261 = vld [vmem:[#allocation5 + $0x3fc0] sm:$0xff]
    %v2262 = vld [vmem:[#allocation5 + $0x3fc8] sm:$0xff]
    %v2263 = vld [vmem:[#allocation5 + $0x3fd0] sm:$0xff]
    %v2264 = vld [vmem:[#allocation5 + $0x3fd8] sm:$0xff]
    %v2265 = vld [vmem:[#allocation5 + $0x3fe0] sm:$0xff]
    %v2266 = vld [vmem:[#allocation5 + $0x3fe8] sm:$0xff]
    %v2267 = vld [vmem:[#allocation5 + $0x3ff0] sm:$0xff]
    %v2268 = vld [vmem:[#allocation5 + $0x3ff8] sm:$0xff]
    %v2269 = vld [vmem:[#allocation7] sm:$0x1]
    %v2271 = vperm.slane %v2269, 0
    %2273 = vmatpush.msra.mxu0 %v236
    %2274 = vmatpush.msra.mxu0 %v235
    %2275 = vmatpush.msra.mxu0 %v234
    %2276 = vmatpush.msra.mxu0 %v233
    %2277 = vmatpush.msra.mxu0 %v232
    %2278 = vmatpush.msra.mxu0 %v231
    %2279 = vmatpush.msra.mxu0 %v230
    %2280 = vmatpush.msra.mxu0 %v229
    %2281 = vmatpush.msra.mxu0 %v228
    %2282 = vmatpush.msra.mxu0 %v227
    %2283 = vmatpush.msra.mxu0 %v226
    %2284 = vmatpush.msra.mxu0 %v225
    %2285 = vmatpush.msra.mxu0 %v224
    %2286 = vmatpush.msra.mxu0 %v223
    %2287 = vmatpush.msra.mxu0 %v222
    %2288 = vmatpush.msra.mxu0 %v221
    %2289 = vmatmul.f32.gmra.mxu0 %v93
    %v2290 = vpop.f32.mrf.mxu0
    %v2291 = vadd.f32 %v2271, %v2290
    %2292 = vdwg.mxu0
    %2293 = vmatpush.msra.mxu0 %v252
    %2294 = vmatpush.msra.mxu0 %v251
    %2295 = vmatpush.msra.mxu0 %v250
    %2296 = vmatpush.msra.mxu0 %v249
    %2297 = vmatpush.msra.mxu0 %v248
    %2298 = vmatpush.msra.mxu0 %v247
    %2299 = vmatpush.msra.mxu0 %v246
    %2300 = vmatpush.msra.mxu0 %v245
    %2301 = vmatpush.msra.mxu0 %v244
    %2302 = vmatpush.msra.mxu0 %v243
    %2303 = vmatpush.msra.mxu0 %v242
    %2304 = vmatpush.msra.mxu0 %v241
    %2305 = vmatpush.msra.mxu0 %v240
    %2306 = vmatpush.msra.mxu0 %v239
    %2307 = vmatpush.msra.mxu0 %v238
    %2308 = vmatpush.msra.mxu0 %v237
    %2309 = vmatmul.f32.gmra.mxu0 %v94
    %v2310 = vpop.f32.mrf.mxu0
    %v2311 = vadd.f32 %v2291, %v2310
    %2312 = vdwg.mxu0
    %2313 = vmatpush.msra.mxu0 %v268
    %2314 = vmatpush.msra.mxu0 %v267
    %2315 = vmatpush.msra.mxu0 %v266
    %2316 = vmatpush.msra.mxu0 %v265
    %2317 = vmatpush.msra.mxu0 %v264
    %2318 = vmatpush.msra.mxu0 %v263
    %2319 = vmatpush.msra.mxu0 %v262
    %2320 = vmatpush.msra.mxu0 %v261
    %2321 = vmatpush.msra.mxu0 %v260
    %2322 = vmatpush.msra.mxu0 %v259
    %2323 = vmatpush.msra.mxu0 %v258
    %2324 = vmatpush.msra.mxu0 %v257
    %2325 = vmatpush.msra.mxu0 %v256
    %2326 = vmatpush.msra.mxu0 %v255
    %2327 = vmatpush.msra.mxu0 %v254
    %2328 = vmatpush.msra.mxu0 %v253
    %2329 = vmatmul.f32.gmra.mxu0 %v95
    %v2330 = vpop.f32.mrf.mxu0
    %v2331 = vadd.f32 %v2311, %v2330
    %2332 = vdwg.mxu0
    %2333 = vmatpush.msra.mxu0 %v284
    %2334 = vmatpush.msra.mxu0 %v283
    %2335 = vmatpush.msra.mxu0 %v282
    %2336 = vmatpush.msra.mxu0 %v281
    %2337 = vmatpush.msra.mxu0 %v280
    %2338 = vmatpush.msra.mxu0 %v279
    %2339 = vmatpush.msra.mxu0 %v278
    %2340 = vmatpush.msra.mxu0 %v277
    %2341 = vmatpush.msra.mxu0 %v276
    %2342 = vmatpush.msra.mxu0 %v275
    %2343 = vmatpush.msra.mxu0 %v274
    %2344 = vmatpush.msra.mxu0 %v273
    %2345 = vmatpush.msra.mxu0 %v272
    %2346 = vmatpush.msra.mxu0 %v271
    %2347 = vmatpush.msra.mxu0 %v270
    %2348 = vmatpush.msra.mxu0 %v269
    %2349 = vmatmul.f32.gmra.mxu0 %v96
    %v2350 = vpop.f32.mrf.mxu0
    %v2351 = vadd.f32 %v2331, %v2350
    %2352 = vdwg.mxu0
    %2353 = vmatpush.msra.mxu0 %v300
    %2354 = vmatpush.msra.mxu0 %v299
    %2355 = vmatpush.msra.mxu0 %v298
    %2356 = vmatpush.msra.mxu0 %v297
    %2357 = vmatpush.msra.mxu0 %v296
    %2358 = vmatpush.msra.mxu0 %v295
    %2359 = vmatpush.msra.mxu0 %v294
    %2360 = vmatpush.msra.mxu0 %v293
    %2361 = vmatpush.msra.mxu0 %v292
    %2362 = vmatpush.msra.mxu0 %v291
    %2363 = vmatpush.msra.mxu0 %v290
    %2364 = vmatpush.msra.mxu0 %v289
    %2365 = vmatpush.msra.mxu0 %v288
    %2366 = vmatpush.msra.mxu0 %v287
    %2367 = vmatpush.msra.mxu0 %v286
    %2368 = vmatpush.msra.mxu0 %v285
    %2369 = vmatmul.f32.gmra.mxu0 %v97
    %v2370 = vpop.f32.mrf.mxu0
    %v2371 = vadd.f32 %v2351, %v2370
    %2372 = vdwg.mxu0
    %2373 = vmatpush.msra.mxu0 %v316
    %2374 = vmatpush.msra.mxu0 %v315
    %2375 = vmatpush.msra.mxu0 %v314
    %2376 = vmatpush.msra.mxu0 %v313
    %2377 = vmatpush.msra.mxu0 %v312
    %2378 = vmatpush.msra.mxu0 %v311
    %2379 = vmatpush.msra.mxu0 %v310
    %2380 = vmatpush.msra.mxu0 %v309
    %2381 = vmatpush.msra.mxu0 %v308
    %2382 = vmatpush.msra.mxu0 %v307
    %2383 = vmatpush.msra.mxu0 %v306
    %2384 = vmatpush.msra.mxu0 %v305
    %2385 = vmatpush.msra.mxu0 %v304
    %2386 = vmatpush.msra.mxu0 %v303
    %2387 = vmatpush.msra.mxu0 %v302
    %2388 = vmatpush.msra.mxu0 %v301
    %2389 = vmatmul.f32.gmra.mxu0 %v98
    %v2390 = vpop.f32.mrf.mxu0
    %v2391 = vadd.f32 %v2371, %v2390
    %2392 = vdwg.mxu0
    %2393 = vmatpush.msra.mxu0 %v332
    %2394 = vmatpush.msra.mxu0 %v331
    %2395 = vmatpush.msra.mxu0 %v330
    %2396 = vmatpush.msra.mxu0 %v329
    %2397 = vmatpush.msra.mxu0 %v328
    %2398 = vmatpush.msra.mxu0 %v327
    %2399 = vmatpush.msra.mxu0 %v326
    %2400 = vmatpush.msra.mxu0 %v325
    %2401 = vmatpush.msra.mxu0 %v324
    %2402 = vmatpush.msra.mxu0 %v323
    %2403 = vmatpush.msra.mxu0 %v322
    %2404 = vmatpush.msra.mxu0 %v321
    %2405 = vmatpush.msra.mxu0 %v320
    %2406 = vmatpush.msra.mxu0 %v319
    %2407 = vmatpush.msra.mxu0 %v318
    %2408 = vmatpush.msra.mxu0 %v317
    %2409 = vmatmul.f32.gmra.mxu0 %v99
    %v2410 = vpop.f32.mrf.mxu0
    %v2411 = vadd.f32 %v2391, %v2410
    %2412 = vdwg.mxu0
    %2413 = vmatpush.msra.mxu0 %v348
    %2414 = vmatpush.msra.mxu0 %v347
    %2415 = vmatpush.msra.mxu0 %v346
    %2416 = vmatpush.msra.mxu0 %v345
    %2417 = vmatpush.msra.mxu0 %v344
    %2418 = vmatpush.msra.mxu0 %v343
    %2419 = vmatpush.msra.mxu0 %v342
    %2420 = vmatpush.msra.mxu0 %v341
    %2421 = vmatpush.msra.mxu0 %v340
    %2422 = vmatpush.msra.mxu0 %v339
    %2423 = vmatpush.msra.mxu0 %v338
    %2424 = vmatpush.msra.mxu0 %v337
    %2425 = vmatpush.msra.mxu0 %v336
    %2426 = vmatpush.msra.mxu0 %v335
    %2427 = vmatpush.msra.mxu0 %v334
    %2428 = vmatpush.msra.mxu0 %v333
    %2429 = vmatmul.f32.gmra.mxu0 %v100
    %v2430 = vpop.f32.mrf.mxu0
    %v2431 = vadd.f32 %v2411, %v2430
    %2432 = vdwg.mxu0
    %2433 = vmatpush.msra.mxu0 %v364
    %2434 = vmatpush.msra.mxu0 %v363
    %2435 = vmatpush.msra.mxu0 %v362
    %2436 = vmatpush.msra.mxu0 %v361
    %2437 = vmatpush.msra.mxu0 %v360
    %2438 = vmatpush.msra.mxu0 %v359
    %2439 = vmatpush.msra.mxu0 %v358
    %2440 = vmatpush.msra.mxu0 %v357
    %2441 = vmatpush.msra.mxu0 %v356
    %2442 = vmatpush.msra.mxu0 %v355
    %2443 = vmatpush.msra.mxu0 %v354
    %2444 = vmatpush.msra.mxu0 %v353
    %2445 = vmatpush.msra.mxu0 %v352
    %2446 = vmatpush.msra.mxu0 %v351
    %2447 = vmatpush.msra.mxu0 %v350
    %2448 = vmatpush.msra.mxu0 %v349
    %2449 = vmatmul.f32.gmra.mxu0 %v101
    %v2450 = vpop.f32.mrf.mxu0
    %v2451 = vadd.f32 %v2431, %v2450
    %2452 = vdwg.mxu0
    %2453 = vmatpush.msra.mxu0 %v380
    %2454 = vmatpush.msra.mxu0 %v379
    %2455 = vmatpush.msra.mxu0 %v378
    %2456 = vmatpush.msra.mxu0 %v377
    %2457 = vmatpush.msra.mxu0 %v376
    %2458 = vmatpush.msra.mxu0 %v375
    %2459 = vmatpush.msra.mxu0 %v374
    %2460 = vmatpush.msra.mxu0 %v373
    %2461 = vmatpush.msra.mxu0 %v372
    %2462 = vmatpush.msra.mxu0 %v371
    %2463 = vmatpush.msra.mxu0 %v370
    %2464 = vmatpush.msra.mxu0 %v369
    %2465 = vmatpush.msra.mxu0 %v368
    %2466 = vmatpush.msra.mxu0 %v367
    %2467 = vmatpush.msra.mxu0 %v366
    %2468 = vmatpush.msra.mxu0 %v365
    %2469 = vmatmul.f32.gmra.mxu0 %v102
    %v2470 = vpop.f32.mrf.mxu0
    %v2471 = vadd.f32 %v2451, %v2470
    %2472 = vdwg.mxu0
    %2473 = vmatpush.msra.mxu0 %v396
    %2474 = vmatpush.msra.mxu0 %v395
    %2475 = vmatpush.msra.mxu0 %v394
    %2476 = vmatpush.msra.mxu0 %v393
    %2477 = vmatpush.msra.mxu0 %v392
    %2478 = vmatpush.msra.mxu0 %v391
    %2479 = vmatpush.msra.mxu0 %v390
    %2480 = vmatpush.msra.mxu0 %v389
    %2481 = vmatpush.msra.mxu0 %v388
    %2482 = vmatpush.msra.mxu0 %v387
    %2483 = vmatpush.msra.mxu0 %v386
    %2484 = vmatpush.msra.mxu0 %v385
    %2485 = vmatpush.msra.mxu0 %v384
    %2486 = vmatpush.msra.mxu0 %v383
    %2487 = vmatpush.msra.mxu0 %v382
    %2488 = vmatpush.msra.mxu0 %v381
    %2489 = vmatmul.f32.gmra.mxu0 %v103
    %v2490 = vpop.f32.mrf.mxu0
    %v2491 = vadd.f32 %v2471, %v2490
    %2492 = vdwg.mxu0
    %2493 = vmatpush.msra.mxu0 %v412
    %2494 = vmatpush.msra.mxu0 %v411
    %2495 = vmatpush.msra.mxu0 %v410
    %2496 = vmatpush.msra.mxu0 %v409
    %2497 = vmatpush.msra.mxu0 %v408
    %2498 = vmatpush.msra.mxu0 %v407
    %2499 = vmatpush.msra.mxu0 %v406
    %2500 = vmatpush.msra.mxu0 %v405
    %2501 = vmatpush.msra.mxu0 %v404
    %2502 = vmatpush.msra.mxu0 %v403
    %2503 = vmatpush.msra.mxu0 %v402
    %2504 = vmatpush.msra.mxu0 %v401
    %2505 = vmatpush.msra.mxu0 %v400
    %2506 = vmatpush.msra.mxu0 %v399
    %2507 = vmatpush.msra.mxu0 %v398
    %2508 = vmatpush.msra.mxu0 %v397
    %2509 = vmatmul.f32.gmra.mxu0 %v104
    %v2510 = vpop.f32.mrf.mxu0
    %v2511 = vadd.f32 %v2491, %v2510
    %2512 = vdwg.mxu0
    %2513 = vmatpush.msra.mxu0 %v428
    %2514 = vmatpush.msra.mxu0 %v427
    %2515 = vmatpush.msra.mxu0 %v426
    %2516 = vmatpush.msra.mxu0 %v425
    %2517 = vmatpush.msra.mxu0 %v424
    %2518 = vmatpush.msra.mxu0 %v423
    %2519 = vmatpush.msra.mxu0 %v422
    %2520 = vmatpush.msra.mxu0 %v421
    %2521 = vmatpush.msra.mxu0 %v420
    %2522 = vmatpush.msra.mxu0 %v419
    %2523 = vmatpush.msra.mxu0 %v418
    %2524 = vmatpush.msra.mxu0 %v417
    %2525 = vmatpush.msra.mxu0 %v416
    %2526 = vmatpush.msra.mxu0 %v415
    %2527 = vmatpush.msra.mxu0 %v414
    %2528 = vmatpush.msra.mxu0 %v413
    %2529 = vmatmul.f32.gmra.mxu0 %v105
    %v2530 = vpop.f32.mrf.mxu0
    %v2531 = vadd.f32 %v2511, %v2530
    %2532 = vdwg.mxu0
    %2533 = vmatpush.msra.mxu0 %v444
    %2534 = vmatpush.msra.mxu0 %v443
    %2535 = vmatpush.msra.mxu0 %v442
    %2536 = vmatpush.msra.mxu0 %v441
    %2537 = vmatpush.msra.mxu0 %v440
    %2538 = vmatpush.msra.mxu0 %v439
    %2539 = vmatpush.msra.mxu0 %v438
    %2540 = vmatpush.msra.mxu0 %v437
    %2541 = vmatpush.msra.mxu0 %v436
    %2542 = vmatpush.msra.mxu0 %v435
    %2543 = vmatpush.msra.mxu0 %v434
    %2544 = vmatpush.msra.mxu0 %v433
    %2545 = vmatpush.msra.mxu0 %v432
    %2546 = vmatpush.msra.mxu0 %v431
    %2547 = vmatpush.msra.mxu0 %v430
    %2548 = vmatpush.msra.mxu0 %v429
    %2549 = vmatmul.f32.gmra.mxu0 %v106
    %v2550 = vpop.f32.mrf.mxu0
    %v2551 = vadd.f32 %v2531, %v2550
    %2552 = vdwg.mxu0
    %2553 = vmatpush.msra.mxu0 %v460
    %2554 = vmatpush.msra.mxu0 %v459
    %2555 = vmatpush.msra.mxu0 %v458
    %2556 = vmatpush.msra.mxu0 %v457
    %2557 = vmatpush.msra.mxu0 %v456
    %2558 = vmatpush.msra.mxu0 %v455
    %2559 = vmatpush.msra.mxu0 %v454
    %2560 = vmatpush.msra.mxu0 %v453
    %2561 = vmatpush.msra.mxu0 %v452
    %2562 = vmatpush.msra.mxu0 %v451
    %2563 = vmatpush.msra.mxu0 %v450
    %2564 = vmatpush.msra.mxu0 %v449
    %2565 = vmatpush.msra.mxu0 %v448
    %2566 = vmatpush.msra.mxu0 %v447
    %2567 = vmatpush.msra.mxu0 %v446
    %2568 = vmatpush.msra.mxu0 %v445
    %2569 = vmatmul.f32.gmra.mxu0 %v107
    %v2570 = vpop.f32.mrf.mxu0
    %v2571 = vadd.f32 %v2551, %v2570
    %2572 = vdwg.mxu0
    %2573 = vmatpush.msra.mxu0 %v476
    %2574 = vmatpush.msra.mxu0 %v475
    %2575 = vmatpush.msra.mxu0 %v474
    %2576 = vmatpush.msra.mxu0 %v473
    %2577 = vmatpush.msra.mxu0 %v472
    %2578 = vmatpush.msra.mxu0 %v471
    %2579 = vmatpush.msra.mxu0 %v470
    %2580 = vmatpush.msra.mxu0 %v469
    %2581 = vmatpush.msra.mxu0 %v468
    %2582 = vmatpush.msra.mxu0 %v467
    %2583 = vmatpush.msra.mxu0 %v466
    %2584 = vmatpush.msra.mxu0 %v465
    %2585 = vmatpush.msra.mxu0 %v464
    %2586 = vmatpush.msra.mxu0 %v463
    %2587 = vmatpush.msra.mxu0 %v462
    %2588 = vmatpush.msra.mxu0 %v461
    %2589 = vmatmul.f32.gmra.mxu0 %v108
    %v2590 = vpop.f32.mrf.mxu0
    %v2591 = vadd.f32 %v2571, %v2590
    %2592 = vdwg.mxu0
    %2593 = vmatpush.msra.mxu0 %v492
    %2594 = vmatpush.msra.mxu0 %v491
    %2595 = vmatpush.msra.mxu0 %v490
    %2596 = vmatpush.msra.mxu0 %v489
    %2597 = vmatpush.msra.mxu0 %v488
    %2598 = vmatpush.msra.mxu0 %v487
    %2599 = vmatpush.msra.mxu0 %v486
    %2600 = vmatpush.msra.mxu0 %v485
    %2601 = vmatpush.msra.mxu0 %v484
    %2602 = vmatpush.msra.mxu0 %v483
    %2603 = vmatpush.msra.mxu0 %v482
    %2604 = vmatpush.msra.mxu0 %v481
    %2605 = vmatpush.msra.mxu0 %v480
    %2606 = vmatpush.msra.mxu0 %v479
    %2607 = vmatpush.msra.mxu0 %v478
    %2608 = vmatpush.msra.mxu0 %v477
    %2609 = vmatmul.f32.gmra.mxu0 %v109
    %v2610 = vpop.f32.mrf.mxu0
    %v2611 = vadd.f32 %v2591, %v2610
    %2612 = vdwg.mxu0
    %2613 = vmatpush.msra.mxu0 %v508
    %2614 = vmatpush.msra.mxu0 %v507
    %2615 = vmatpush.msra.mxu0 %v506
    %2616 = vmatpush.msra.mxu0 %v505
    %2617 = vmatpush.msra.mxu0 %v504
    %2618 = vmatpush.msra.mxu0 %v503
    %2619 = vmatpush.msra.mxu0 %v502
    %2620 = vmatpush.msra.mxu0 %v501
    %2621 = vmatpush.msra.mxu0 %v500
    %2622 = vmatpush.msra.mxu0 %v499
    %2623 = vmatpush.msra.mxu0 %v498
    %2624 = vmatpush.msra.mxu0 %v497
    %2625 = vmatpush.msra.mxu0 %v496
    %2626 = vmatpush.msra.mxu0 %v495
    %2627 = vmatpush.msra.mxu0 %v494
    %2628 = vmatpush.msra.mxu0 %v493
    %2629 = vmatmul.f32.gmra.mxu0 %v110
    %v2630 = vpop.f32.mrf.mxu0
    %v2631 = vadd.f32 %v2611, %v2630
    %2632 = vdwg.mxu0
    %2633 = vmatpush.msra.mxu0 %v524
    %2634 = vmatpush.msra.mxu0 %v523
    %2635 = vmatpush.msra.mxu0 %v522
    %2636 = vmatpush.msra.mxu0 %v521
    %2637 = vmatpush.msra.mxu0 %v520
    %2638 = vmatpush.msra.mxu0 %v519
    %2639 = vmatpush.msra.mxu0 %v518
    %2640 = vmatpush.msra.mxu0 %v517
    %2641 = vmatpush.msra.mxu0 %v516
    %2642 = vmatpush.msra.mxu0 %v515
    %2643 = vmatpush.msra.mxu0 %v514
    %2644 = vmatpush.msra.mxu0 %v513
    %2645 = vmatpush.msra.mxu0 %v512
    %2646 = vmatpush.msra.mxu0 %v511
    %2647 = vmatpush.msra.mxu0 %v510
    %2648 = vmatpush.msra.mxu0 %v509
    %2649 = vmatmul.f32.gmra.mxu0 %v111
    %v2650 = vpop.f32.mrf.mxu0
    %v2651 = vadd.f32 %v2631, %v2650
    %2652 = vdwg.mxu0
    %2653 = vmatpush.msra.mxu0 %v540
    %2654 = vmatpush.msra.mxu0 %v539
    %2655 = vmatpush.msra.mxu0 %v538
    %2656 = vmatpush.msra.mxu0 %v537
    %2657 = vmatpush.msra.mxu0 %v536
    %2658 = vmatpush.msra.mxu0 %v535
    %2659 = vmatpush.msra.mxu0 %v534
    %2660 = vmatpush.msra.mxu0 %v533
    %2661 = vmatpush.msra.mxu0 %v532
    %2662 = vmatpush.msra.mxu0 %v531
    %2663 = vmatpush.msra.mxu0 %v530
    %2664 = vmatpush.msra.mxu0 %v529
    %2665 = vmatpush.msra.mxu0 %v528
    %2666 = vmatpush.msra.mxu0 %v527
    %2667 = vmatpush.msra.mxu0 %v526
    %2668 = vmatpush.msra.mxu0 %v525
    %2669 = vmatmul.f32.gmra.mxu0 %v112
    %v2670 = vpop.f32.mrf.mxu0
    %v2671 = vadd.f32 %v2651, %v2670
    %2672 = vdwg.mxu0
    %2673 = vmatpush.msra.mxu0 %v556
    %2674 = vmatpush.msra.mxu0 %v555
    %2675 = vmatpush.msra.mxu0 %v554
    %2676 = vmatpush.msra.mxu0 %v553
    %2677 = vmatpush.msra.mxu0 %v552
    %2678 = vmatpush.msra.mxu0 %v551
    %2679 = vmatpush.msra.mxu0 %v550
    %2680 = vmatpush.msra.mxu0 %v549
    %2681 = vmatpush.msra.mxu0 %v548
    %2682 = vmatpush.msra.mxu0 %v547
    %2683 = vmatpush.msra.mxu0 %v546
    %2684 = vmatpush.msra.mxu0 %v545
    %2685 = vmatpush.msra.mxu0 %v544
    %2686 = vmatpush.msra.mxu0 %v543
    %2687 = vmatpush.msra.mxu0 %v542
    %2688 = vmatpush.msra.mxu0 %v541
    %2689 = vmatmul.f32.gmra.mxu0 %v113
    %v2690 = vpop.f32.mrf.mxu0
    %v2691 = vadd.f32 %v2671, %v2690
    %2692 = vdwg.mxu0
    %2693 = vmatpush.msra.mxu0 %v572
    %2694 = vmatpush.msra.mxu0 %v571
    %2695 = vmatpush.msra.mxu0 %v570
    %2696 = vmatpush.msra.mxu0 %v569
    %2697 = vmatpush.msra.mxu0 %v568
    %2698 = vmatpush.msra.mxu0 %v567
    %2699 = vmatpush.msra.mxu0 %v566
    %2700 = vmatpush.msra.mxu0 %v565
    %2701 = vmatpush.msra.mxu0 %v564
    %2702 = vmatpush.msra.mxu0 %v563
    %2703 = vmatpush.msra.mxu0 %v562
    %2704 = vmatpush.msra.mxu0 %v561
    %2705 = vmatpush.msra.mxu0 %v560
    %2706 = vmatpush.msra.mxu0 %v559
    %2707 = vmatpush.msra.mxu0 %v558
    %2708 = vmatpush.msra.mxu0 %v557
    %2709 = vmatmul.f32.gmra.mxu0 %v114
    %v2710 = vpop.f32.mrf.mxu0
    %v2711 = vadd.f32 %v2691, %v2710
    %2712 = vdwg.mxu0
    %2713 = vmatpush.msra.mxu0 %v588
    %2714 = vmatpush.msra.mxu0 %v587
    %2715 = vmatpush.msra.mxu0 %v586
    %2716 = vmatpush.msra.mxu0 %v585
    %2717 = vmatpush.msra.mxu0 %v584
    %2718 = vmatpush.msra.mxu0 %v583
    %2719 = vmatpush.msra.mxu0 %v582
    %2720 = vmatpush.msra.mxu0 %v581
    %2721 = vmatpush.msra.mxu0 %v580
    %2722 = vmatpush.msra.mxu0 %v579
    %2723 = vmatpush.msra.mxu0 %v578
    %2724 = vmatpush.msra.mxu0 %v577
    %2725 = vmatpush.msra.mxu0 %v576
    %2726 = vmatpush.msra.mxu0 %v575
    %2727 = vmatpush.msra.mxu0 %v574
    %2728 = vmatpush.msra.mxu0 %v573
    %2729 = vmatmul.f32.gmra.mxu0 %v115
    %v2730 = vpop.f32.mrf.mxu0
    %v2731 = vadd.f32 %v2711, %v2730
    %2732 = vdwg.mxu0
    %2733 = vmatpush.msra.mxu0 %v604
    %2734 = vmatpush.msra.mxu0 %v603
    %2735 = vmatpush.msra.mxu0 %v602
    %2736 = vmatpush.msra.mxu0 %v601
    %2737 = vmatpush.msra.mxu0 %v600
    %2738 = vmatpush.msra.mxu0 %v599
    %2739 = vmatpush.msra.mxu0 %v598
    %2740 = vmatpush.msra.mxu0 %v597
    %2741 = vmatpush.msra.mxu0 %v596
    %2742 = vmatpush.msra.mxu0 %v595
    %2743 = vmatpush.msra.mxu0 %v594
    %2744 = vmatpush.msra.mxu0 %v593
    %2745 = vmatpush.msra.mxu0 %v592
    %2746 = vmatpush.msra.mxu0 %v591
    %2747 = vmatpush.msra.mxu0 %v590
    %2748 = vmatpush.msra.mxu0 %v589
    %2749 = vmatmul.f32.gmra.mxu0 %v116
    %v2750 = vpop.f32.mrf.mxu0
    %v2751 = vadd.f32 %v2731, %v2750
    %2752 = vdwg.mxu0
    %2753 = vmatpush.msra.mxu0 %v620
    %2754 = vmatpush.msra.mxu0 %v619
    %2755 = vmatpush.msra.mxu0 %v618
    %2756 = vmatpush.msra.mxu0 %v617
    %2757 = vmatpush.msra.mxu0 %v616
    %2758 = vmatpush.msra.mxu0 %v615
    %2759 = vmatpush.msra.mxu0 %v614
    %2760 = vmatpush.msra.mxu0 %v613
    %2761 = vmatpush.msra.mxu0 %v612
    %2762 = vmatpush.msra.mxu0 %v611
    %2763 = vmatpush.msra.mxu0 %v610
    %2764 = vmatpush.msra.mxu0 %v609
    %2765 = vmatpush.msra.mxu0 %v608
    %2766 = vmatpush.msra.mxu0 %v607
    %2767 = vmatpush.msra.mxu0 %v606
    %2768 = vmatpush.msra.mxu0 %v605
    %2769 = vmatmul.f32.gmra.mxu0 %v117
    %v2770 = vpop.f32.mrf.mxu0
    %v2771 = vadd.f32 %v2751, %v2770
    %2772 = vdwg.mxu0
    %2773 = vmatpush.msra.mxu0 %v636
    %2774 = vmatpush.msra.mxu0 %v635
    %2775 = vmatpush.msra.mxu0 %v634
    %2776 = vmatpush.msra.mxu0 %v633
    %2777 = vmatpush.msra.mxu0 %v632
    %2778 = vmatpush.msra.mxu0 %v631
    %2779 = vmatpush.msra.mxu0 %v630
    %2780 = vmatpush.msra.mxu0 %v629
    %2781 = vmatpush.msra.mxu0 %v628
    %2782 = vmatpush.msra.mxu0 %v627
    %2783 = vmatpush.msra.mxu0 %v626
    %2784 = vmatpush.msra.mxu0 %v625
    %2785 = vmatpush.msra.mxu0 %v624
    %2786 = vmatpush.msra.mxu0 %v623
    %2787 = vmatpush.msra.mxu0 %v622
    %2788 = vmatpush.msra.mxu0 %v621
    %2789 = vmatmul.f32.gmra.mxu0 %v118
    %v2790 = vpop.f32.mrf.mxu0
    %v2791 = vadd.f32 %v2771, %v2790
    %2792 = vdwg.mxu0
    %2793 = vmatpush.msra.mxu0 %v652
    %2794 = vmatpush.msra.mxu0 %v651
    %2795 = vmatpush.msra.mxu0 %v650
    %2796 = vmatpush.msra.mxu0 %v649
    %2797 = vmatpush.msra.mxu0 %v648
    %2798 = vmatpush.msra.mxu0 %v647
    %2799 = vmatpush.msra.mxu0 %v646
    %2800 = vmatpush.msra.mxu0 %v645
    %2801 = vmatpush.msra.mxu0 %v644
    %2802 = vmatpush.msra.mxu0 %v643
    %2803 = vmatpush.msra.mxu0 %v642
    %2804 = vmatpush.msra.mxu0 %v641
    %2805 = vmatpush.msra.mxu0 %v640
    %2806 = vmatpush.msra.mxu0 %v639
    %2807 = vmatpush.msra.mxu0 %v638
    %2808 = vmatpush.msra.mxu0 %v637
    %2809 = vmatmul.f32.gmra.mxu0 %v119
    %v2810 = vpop.f32.mrf.mxu0
    %v2811 = vadd.f32 %v2791, %v2810
    %2812 = vdwg.mxu0
    %2813 = vmatpush.msra.mxu0 %v668
    %2814 = vmatpush.msra.mxu0 %v667
    %2815 = vmatpush.msra.mxu0 %v666
    %2816 = vmatpush.msra.mxu0 %v665
    %2817 = vmatpush.msra.mxu0 %v664
    %2818 = vmatpush.msra.mxu0 %v663
    %2819 = vmatpush.msra.mxu0 %v662
    %2820 = vmatpush.msra.mxu0 %v661
    %2821 = vmatpush.msra.mxu0 %v660
    %2822 = vmatpush.msra.mxu0 %v659
    %2823 = vmatpush.msra.mxu0 %v658
    %2824 = vmatpush.msra.mxu0 %v657
    %2825 = vmatpush.msra.mxu0 %v656
    %2826 = vmatpush.msra.mxu0 %v655
    %2827 = vmatpush.msra.mxu0 %v654
    %2828 = vmatpush.msra.mxu0 %v653
    %2829 = vmatmul.f32.gmra.mxu0 %v120
    %v2830 = vpop.f32.mrf.mxu0
    %v2831 = vadd.f32 %v2811, %v2830
    %2832 = vdwg.mxu0
    %2833 = vmatpush.msra.mxu0 %v684
    %2834 = vmatpush.msra.mxu0 %v683
    %2835 = vmatpush.msra.mxu0 %v682
    %2836 = vmatpush.msra.mxu0 %v681
    %2837 = vmatpush.msra.mxu0 %v680
    %2838 = vmatpush.msra.mxu0 %v679
    %2839 = vmatpush.msra.mxu0 %v678
    %2840 = vmatpush.msra.mxu0 %v677
    %2841 = vmatpush.msra.mxu0 %v676
    %2842 = vmatpush.msra.mxu0 %v675
    %2843 = vmatpush.msra.mxu0 %v674
    %2844 = vmatpush.msra.mxu0 %v673
    %2845 = vmatpush.msra.mxu0 %v672
    %2846 = vmatpush.msra.mxu0 %v671
    %2847 = vmatpush.msra.mxu0 %v670
    %2848 = vmatpush.msra.mxu0 %v669
    %2849 = vmatmul.f32.gmra.mxu0 %v121
    %v2850 = vpop.f32.mrf.mxu0
    %v2851 = vadd.f32 %v2831, %v2850
    %2852 = vdwg.mxu0
    %2853 = vmatpush.msra.mxu0 %v700
    %2854 = vmatpush.msra.mxu0 %v699
    %2855 = vmatpush.msra.mxu0 %v698
    %2856 = vmatpush.msra.mxu0 %v697
    %2857 = vmatpush.msra.mxu0 %v696
    %2858 = vmatpush.msra.mxu0 %v695
    %2859 = vmatpush.msra.mxu0 %v694
    %2860 = vmatpush.msra.mxu0 %v693
    %2861 = vmatpush.msra.mxu0 %v692
    %2862 = vmatpush.msra.mxu0 %v691
    %2863 = vmatpush.msra.mxu0 %v690
    %2864 = vmatpush.msra.mxu0 %v689
    %2865 = vmatpush.msra.mxu0 %v688
    %2866 = vmatpush.msra.mxu0 %v687
    %2867 = vmatpush.msra.mxu0 %v686
    %2868 = vmatpush.msra.mxu0 %v685
    %2869 = vmatmul.f32.gmra.mxu0 %v122
    %v2870 = vpop.f32.mrf.mxu0
    %v2871 = vadd.f32 %v2851, %v2870
    %2872 = vdwg.mxu0
    %2873 = vmatpush.msra.mxu0 %v716
    %2874 = vmatpush.msra.mxu0 %v715
    %2875 = vmatpush.msra.mxu0 %v714
    %2876 = vmatpush.msra.mxu0 %v713
    %2877 = vmatpush.msra.mxu0 %v712
    %2878 = vmatpush.msra.mxu0 %v711
    %2879 = vmatpush.msra.mxu0 %v710
    %2880 = vmatpush.msra.mxu0 %v709
    %2881 = vmatpush.msra.mxu0 %v708
    %2882 = vmatpush.msra.mxu0 %v707
    %2883 = vmatpush.msra.mxu0 %v706
    %2884 = vmatpush.msra.mxu0 %v705
    %2885 = vmatpush.msra.mxu0 %v704
    %2886 = vmatpush.msra.mxu0 %v703
    %2887 = vmatpush.msra.mxu0 %v702
    %2888 = vmatpush.msra.mxu0 %v701
    %2889 = vmatmul.f32.gmra.mxu0 %v123
    %v2890 = vpop.f32.mrf.mxu0
    %v2891 = vadd.f32 %v2871, %v2890
    %2892 = vdwg.mxu0
    %2893 = vmatpush.msra.mxu0 %v732
    %2894 = vmatpush.msra.mxu0 %v731
    %2895 = vmatpush.msra.mxu0 %v730
    %2896 = vmatpush.msra.mxu0 %v729
    %2897 = vmatpush.msra.mxu0 %v728
    %2898 = vmatpush.msra.mxu0 %v727
    %2899 = vmatpush.msra.mxu0 %v726
    %2900 = vmatpush.msra.mxu0 %v725
    %2901 = vmatpush.msra.mxu0 %v724
    %2902 = vmatpush.msra.mxu0 %v723
    %2903 = vmatpush.msra.mxu0 %v722
    %2904 = vmatpush.msra.mxu0 %v721
    %2905 = vmatpush.msra.mxu0 %v720
    %2906 = vmatpush.msra.mxu0 %v719
    %2907 = vmatpush.msra.mxu0 %v718
    %2908 = vmatpush.msra.mxu0 %v717
    %2909 = vmatmul.f32.gmra.mxu0 %v124
    %v2910 = vpop.f32.mrf.mxu0
    %v2911 = vadd.f32 %v2891, %v2910
    %2912 = vdwg.mxu0
    %2913 = vmatpush.msra.mxu0 %v748
    %2914 = vmatpush.msra.mxu0 %v747
    %2915 = vmatpush.msra.mxu0 %v746
    %2916 = vmatpush.msra.mxu0 %v745
    %2917 = vmatpush.msra.mxu0 %v744
    %2918 = vmatpush.msra.mxu0 %v743
    %2919 = vmatpush.msra.mxu0 %v742
    %2920 = vmatpush.msra.mxu0 %v741
    %2921 = vmatpush.msra.mxu0 %v740
    %2922 = vmatpush.msra.mxu0 %v739
    %2923 = vmatpush.msra.mxu0 %v738
    %2924 = vmatpush.msra.mxu0 %v737
    %2925 = vmatpush.msra.mxu0 %v736
    %2926 = vmatpush.msra.mxu0 %v735
    %2927 = vmatpush.msra.mxu0 %v734
    %2928 = vmatpush.msra.mxu0 %v733
    %2929 = vmatmul.f32.gmra.mxu0 %v125
    %v2930 = vpop.f32.mrf.mxu0
    %v2931 = vadd.f32 %v2911, %v2930
    %2932 = vdwg.mxu0
    %2933 = vmatpush.msra.mxu0 %v764
    %2934 = vmatpush.msra.mxu0 %v763
    %2935 = vmatpush.msra.mxu0 %v762
    %2936 = vmatpush.msra.mxu0 %v761
    %2937 = vmatpush.msra.mxu0 %v760
    %2938 = vmatpush.msra.mxu0 %v759
    %2939 = vmatpush.msra.mxu0 %v758
    %2940 = vmatpush.msra.mxu0 %v757
    %2941 = vmatpush.msra.mxu0 %v756
    %2942 = vmatpush.msra.mxu0 %v755
    %2943 = vmatpush.msra.mxu0 %v754
    %2944 = vmatpush.msra.mxu0 %v753
    %2945 = vmatpush.msra.mxu0 %v752
    %2946 = vmatpush.msra.mxu0 %v751
    %2947 = vmatpush.msra.mxu0 %v750
    %2948 = vmatpush.msra.mxu0 %v749
    %2949 = vmatmul.f32.gmra.mxu0 %v126
    %v2950 = vpop.f32.mrf.mxu0
    %v2951 = vadd.f32 %v2931, %v2950
    %2952 = vdwg.mxu0
    %2953 = vmatpush.msra.mxu0 %v780
    %2954 = vmatpush.msra.mxu0 %v779
    %2955 = vmatpush.msra.mxu0 %v778
    %2956 = vmatpush.msra.mxu0 %v777
    %2957 = vmatpush.msra.mxu0 %v776
    %2958 = vmatpush.msra.mxu0 %v775
    %2959 = vmatpush.msra.mxu0 %v774
    %2960 = vmatpush.msra.mxu0 %v773
    %2961 = vmatpush.msra.mxu0 %v772
    %2962 = vmatpush.msra.mxu0 %v771
    %2963 = vmatpush.msra.mxu0 %v770
    %2964 = vmatpush.msra.mxu0 %v769
    %2965 = vmatpush.msra.mxu0 %v768
    %2966 = vmatpush.msra.mxu0 %v767
    %2967 = vmatpush.msra.mxu0 %v766
    %2968 = vmatpush.msra.mxu0 %v765
    %2969 = vmatmul.f32.gmra.mxu0 %v127
    %v2970 = vpop.f32.mrf.mxu0
    %v2971 = vadd.f32 %v2951, %v2970
    %2972 = vdwg.mxu0
    %2973 = vmatpush.msra.mxu0 %v796
    %2974 = vmatpush.msra.mxu0 %v795
    %2975 = vmatpush.msra.mxu0 %v794
    %2976 = vmatpush.msra.mxu0 %v793
    %2977 = vmatpush.msra.mxu0 %v792
    %2978 = vmatpush.msra.mxu0 %v791
    %2979 = vmatpush.msra.mxu0 %v790
    %2980 = vmatpush.msra.mxu0 %v789
    %2981 = vmatpush.msra.mxu0 %v788
    %2982 = vmatpush.msra.mxu0 %v787
    %2983 = vmatpush.msra.mxu0 %v786
    %2984 = vmatpush.msra.mxu0 %v785
    %2985 = vmatpush.msra.mxu0 %v784
    %2986 = vmatpush.msra.mxu0 %v783
    %2987 = vmatpush.msra.mxu0 %v782
    %2988 = vmatpush.msra.mxu0 %v781
    %2989 = vmatmul.f32.gmra.mxu0 %v128
    %v2990 = vpop.f32.mrf.mxu0
    %v2991 = vadd.f32 %v2971, %v2990
    %2992 = vdwg.mxu0
    %2993 = vmatpush.msra.mxu0 %v812
    %2994 = vmatpush.msra.mxu0 %v811
    %2995 = vmatpush.msra.mxu0 %v810
    %2996 = vmatpush.msra.mxu0 %v809
    %2997 = vmatpush.msra.mxu0 %v808
    %2998 = vmatpush.msra.mxu0 %v807
    %2999 = vmatpush.msra.mxu0 %v806
    %3000 = vmatpush.msra.mxu0 %v805
    %3001 = vmatpush.msra.mxu0 %v804
    %3002 = vmatpush.msra.mxu0 %v803
    %3003 = vmatpush.msra.mxu0 %v802
    %3004 = vmatpush.msra.mxu0 %v801
    %3005 = vmatpush.msra.mxu0 %v800
    %3006 = vmatpush.msra.mxu0 %v799
    %3007 = vmatpush.msra.mxu0 %v798
    %3008 = vmatpush.msra.mxu0 %v797
    %3009 = vmatmul.f32.gmra.mxu0 %v129
    %v3010 = vpop.f32.mrf.mxu0
    %v3011 = vadd.f32 %v2991, %v3010
    %3012 = vdwg.mxu0
    %3013 = vmatpush.msra.mxu0 %v828
    %3014 = vmatpush.msra.mxu0 %v827
    %3015 = vmatpush.msra.mxu0 %v826
    %3016 = vmatpush.msra.mxu0 %v825
    %3017 = vmatpush.msra.mxu0 %v824
    %3018 = vmatpush.msra.mxu0 %v823
    %3019 = vmatpush.msra.mxu0 %v822
    %3020 = vmatpush.msra.mxu0 %v821
    %3021 = vmatpush.msra.mxu0 %v820
    %3022 = vmatpush.msra.mxu0 %v819
    %3023 = vmatpush.msra.mxu0 %v818
    %3024 = vmatpush.msra.mxu0 %v817
    %3025 = vmatpush.msra.mxu0 %v816
    %3026 = vmatpush.msra.mxu0 %v815
    %3027 = vmatpush.msra.mxu0 %v814
    %3028 = vmatpush.msra.mxu0 %v813
    %3029 = vmatmul.f32.gmra.mxu0 %v130
    %v3030 = vpop.f32.mrf.mxu0
    %v3031 = vadd.f32 %v3011, %v3030
    %3032 = vdwg.mxu0
    %3033 = vmatpush.msra.mxu0 %v844
    %3034 = vmatpush.msra.mxu0 %v843
    %3035 = vmatpush.msra.mxu0 %v842
    %3036 = vmatpush.msra.mxu0 %v841
    %3037 = vmatpush.msra.mxu0 %v840
    %3038 = vmatpush.msra.mxu0 %v839
    %3039 = vmatpush.msra.mxu0 %v838
    %3040 = vmatpush.msra.mxu0 %v837
    %3041 = vmatpush.msra.mxu0 %v836
    %3042 = vmatpush.msra.mxu0 %v835
    %3043 = vmatpush.msra.mxu0 %v834
    %3044 = vmatpush.msra.mxu0 %v833
    %3045 = vmatpush.msra.mxu0 %v832
    %3046 = vmatpush.msra.mxu0 %v831
    %3047 = vmatpush.msra.mxu0 %v830
    %3048 = vmatpush.msra.mxu0 %v829
    %3049 = vmatmul.f32.gmra.mxu0 %v131
    %v3050 = vpop.f32.mrf.mxu0
    %v3051 = vadd.f32 %v3031, %v3050
    %3052 = vdwg.mxu0
    %3053 = vmatpush.msra.mxu0 %v860
    %3054 = vmatpush.msra.mxu0 %v859
    %3055 = vmatpush.msra.mxu0 %v858
    %3056 = vmatpush.msra.mxu0 %v857
    %3057 = vmatpush.msra.mxu0 %v856
    %3058 = vmatpush.msra.mxu0 %v855
    %3059 = vmatpush.msra.mxu0 %v854
    %3060 = vmatpush.msra.mxu0 %v853
    %3061 = vmatpush.msra.mxu0 %v852
    %3062 = vmatpush.msra.mxu0 %v851
    %3063 = vmatpush.msra.mxu0 %v850
    %3064 = vmatpush.msra.mxu0 %v849
    %3065 = vmatpush.msra.mxu0 %v848
    %3066 = vmatpush.msra.mxu0 %v847
    %3067 = vmatpush.msra.mxu0 %v846
    %3068 = vmatpush.msra.mxu0 %v845
    %3069 = vmatmul.f32.gmra.mxu0 %v132
    %v3070 = vpop.f32.mrf.mxu0
    %v3071 = vadd.f32 %v3051, %v3070
    %3072 = vdwg.mxu0
    %3073 = vmatpush.msra.mxu0 %v876
    %3074 = vmatpush.msra.mxu0 %v875
    %3075 = vmatpush.msra.mxu0 %v874
    %3076 = vmatpush.msra.mxu0 %v873
    %3077 = vmatpush.msra.mxu0 %v872
    %3078 = vmatpush.msra.mxu0 %v871
    %3079 = vmatpush.msra.mxu0 %v870
    %3080 = vmatpush.msra.mxu0 %v869
    %3081 = vmatpush.msra.mxu0 %v868
    %3082 = vmatpush.msra.mxu0 %v867
    %3083 = vmatpush.msra.mxu0 %v866
    %3084 = vmatpush.msra.mxu0 %v865
    %3085 = vmatpush.msra.mxu0 %v864
    %3086 = vmatpush.msra.mxu0 %v863
    %3087 = vmatpush.msra.mxu0 %v862
    %3088 = vmatpush.msra.mxu0 %v861
    %3089 = vmatmul.f32.gmra.mxu0 %v133
    %v3090 = vpop.f32.mrf.mxu0
    %v3091 = vadd.f32 %v3071, %v3090
    %3092 = vdwg.mxu0
    %3093 = vmatpush.msra.mxu0 %v892
    %3094 = vmatpush.msra.mxu0 %v891
    %3095 = vmatpush.msra.mxu0 %v890
    %3096 = vmatpush.msra.mxu0 %v889
    %3097 = vmatpush.msra.mxu0 %v888
    %3098 = vmatpush.msra.mxu0 %v887
    %3099 = vmatpush.msra.mxu0 %v886
    %3100 = vmatpush.msra.mxu0 %v885
    %3101 = vmatpush.msra.mxu0 %v884
    %3102 = vmatpush.msra.mxu0 %v883
    %3103 = vmatpush.msra.mxu0 %v882
    %3104 = vmatpush.msra.mxu0 %v881
    %3105 = vmatpush.msra.mxu0 %v880
    %3106 = vmatpush.msra.mxu0 %v879
    %3107 = vmatpush.msra.mxu0 %v878
    %3108 = vmatpush.msra.mxu0 %v877
    %3109 = vmatmul.f32.gmra.mxu0 %v134
    %v3110 = vpop.f32.mrf.mxu0
    %v3111 = vadd.f32 %v3091, %v3110
    %3112 = vdwg.mxu0
    %3113 = vmatpush.msra.mxu0 %v908
    %3114 = vmatpush.msra.mxu0 %v907
    %3115 = vmatpush.msra.mxu0 %v906
    %3116 = vmatpush.msra.mxu0 %v905
    %3117 = vmatpush.msra.mxu0 %v904
    %3118 = vmatpush.msra.mxu0 %v903
    %3119 = vmatpush.msra.mxu0 %v902
    %3120 = vmatpush.msra.mxu0 %v901
    %3121 = vmatpush.msra.mxu0 %v900
    %3122 = vmatpush.msra.mxu0 %v899
    %3123 = vmatpush.msra.mxu0 %v898
    %3124 = vmatpush.msra.mxu0 %v897
    %3125 = vmatpush.msra.mxu0 %v896
    %3126 = vmatpush.msra.mxu0 %v895
    %3127 = vmatpush.msra.mxu0 %v894
    %3128 = vmatpush.msra.mxu0 %v893
    %3129 = vmatmul.f32.gmra.mxu0 %v135
    %v3130 = vpop.f32.mrf.mxu0
    %v3131 = vadd.f32 %v3111, %v3130
    %3132 = vdwg.mxu0
    %3133 = vmatpush.msra.mxu0 %v924
    %3134 = vmatpush.msra.mxu0 %v923
    %3135 = vmatpush.msra.mxu0 %v922
    %3136 = vmatpush.msra.mxu0 %v921
    %3137 = vmatpush.msra.mxu0 %v920
    %3138 = vmatpush.msra.mxu0 %v919
    %3139 = vmatpush.msra.mxu0 %v918
    %3140 = vmatpush.msra.mxu0 %v917
    %3141 = vmatpush.msra.mxu0 %v916
    %3142 = vmatpush.msra.mxu0 %v915
    %3143 = vmatpush.msra.mxu0 %v914
    %3144 = vmatpush.msra.mxu0 %v913
    %3145 = vmatpush.msra.mxu0 %v912
    %3146 = vmatpush.msra.mxu0 %v911
    %3147 = vmatpush.msra.mxu0 %v910
    %3148 = vmatpush.msra.mxu0 %v909
    %3149 = vmatmul.f32.gmra.mxu0 %v136
    %v3150 = vpop.f32.mrf.mxu0
    %v3151 = vadd.f32 %v3131, %v3150
    %3152 = vdwg.mxu0
    %3153 = vmatpush.msra.mxu0 %v940
    %3154 = vmatpush.msra.mxu0 %v939
    %3155 = vmatpush.msra.mxu0 %v938
    %3156 = vmatpush.msra.mxu0 %v937
    %3157 = vmatpush.msra.mxu0 %v936
    %3158 = vmatpush.msra.mxu0 %v935
    %3159 = vmatpush.msra.mxu0 %v934
    %3160 = vmatpush.msra.mxu0 %v933
    %3161 = vmatpush.msra.mxu0 %v932
    %3162 = vmatpush.msra.mxu0 %v931
    %3163 = vmatpush.msra.mxu0 %v930
    %3164 = vmatpush.msra.mxu0 %v929
    %3165 = vmatpush.msra.mxu0 %v928
    %3166 = vmatpush.msra.mxu0 %v927
    %3167 = vmatpush.msra.mxu0 %v926
    %3168 = vmatpush.msra.mxu0 %v925
    %3169 = vmatmul.f32.gmra.mxu0 %v137
    %v3170 = vpop.f32.mrf.mxu0
    %v3171 = vadd.f32 %v3151, %v3170
    %3172 = vdwg.mxu0
    %3173 = vmatpush.msra.mxu0 %v956
    %3174 = vmatpush.msra.mxu0 %v955
    %3175 = vmatpush.msra.mxu0 %v954
    %3176 = vmatpush.msra.mxu0 %v953
    %3177 = vmatpush.msra.mxu0 %v952
    %3178 = vmatpush.msra.mxu0 %v951
    %3179 = vmatpush.msra.mxu0 %v950
    %3180 = vmatpush.msra.mxu0 %v949
    %3181 = vmatpush.msra.mxu0 %v948
    %3182 = vmatpush.msra.mxu0 %v947
    %3183 = vmatpush.msra.mxu0 %v946
    %3184 = vmatpush.msra.mxu0 %v945
    %3185 = vmatpush.msra.mxu0 %v944
    %3186 = vmatpush.msra.mxu0 %v943
    %3187 = vmatpush.msra.mxu0 %v942
    %3188 = vmatpush.msra.mxu0 %v941
    %3189 = vmatmul.f32.gmra.mxu0 %v138
    %v3190 = vpop.f32.mrf.mxu0
    %v3191 = vadd.f32 %v3171, %v3190
    %3192 = vdwg.mxu0
    %3193 = vmatpush.msra.mxu0 %v972
    %3194 = vmatpush.msra.mxu0 %v971
    %3195 = vmatpush.msra.mxu0 %v970
    %3196 = vmatpush.msra.mxu0 %v969
    %3197 = vmatpush.msra.mxu0 %v968
    %3198 = vmatpush.msra.mxu0 %v967
    %3199 = vmatpush.msra.mxu0 %v966
    %3200 = vmatpush.msra.mxu0 %v965
    %3201 = vmatpush.msra.mxu0 %v964
    %3202 = vmatpush.msra.mxu0 %v963
    %3203 = vmatpush.msra.mxu0 %v962
    %3204 = vmatpush.msra.mxu0 %v961
    %3205 = vmatpush.msra.mxu0 %v960
    %3206 = vmatpush.msra.mxu0 %v959
    %3207 = vmatpush.msra.mxu0 %v958
    %3208 = vmatpush.msra.mxu0 %v957
    %3209 = vmatmul.f32.gmra.mxu0 %v139
    %v3210 = vpop.f32.mrf.mxu0
    %v3211 = vadd.f32 %v3191, %v3210
    %3212 = vdwg.mxu0
    %3213 = vmatpush.msra.mxu0 %v988
    %3214 = vmatpush.msra.mxu0 %v987
    %3215 = vmatpush.msra.mxu0 %v986
    %3216 = vmatpush.msra.mxu0 %v985
    %3217 = vmatpush.msra.mxu0 %v984
    %3218 = vmatpush.msra.mxu0 %v983
    %3219 = vmatpush.msra.mxu0 %v982
    %3220 = vmatpush.msra.mxu0 %v981
    %3221 = vmatpush.msra.mxu0 %v980
    %3222 = vmatpush.msra.mxu0 %v979
    %3223 = vmatpush.msra.mxu0 %v978
    %3224 = vmatpush.msra.mxu0 %v977
    %3225 = vmatpush.msra.mxu0 %v976
    %3226 = vmatpush.msra.mxu0 %v975
    %3227 = vmatpush.msra.mxu0 %v974
    %3228 = vmatpush.msra.mxu0 %v973
    %3229 = vmatmul.f32.gmra.mxu0 %v140
    %v3230 = vpop.f32.mrf.mxu0
    %v3231 = vadd.f32 %v3211, %v3230
    %3232 = vdwg.mxu0
    %3233 = vmatpush.msra.mxu0 %v1004
    %3234 = vmatpush.msra.mxu0 %v1003
    %3235 = vmatpush.msra.mxu0 %v1002
    %3236 = vmatpush.msra.mxu0 %v1001
    %3237 = vmatpush.msra.mxu0 %v1000
    %3238 = vmatpush.msra.mxu0 %v999
    %3239 = vmatpush.msra.mxu0 %v998
    %3240 = vmatpush.msra.mxu0 %v997
    %3241 = vmatpush.msra.mxu0 %v996
    %3242 = vmatpush.msra.mxu0 %v995
    %3243 = vmatpush.msra.mxu0 %v994
    %3244 = vmatpush.msra.mxu0 %v993
    %3245 = vmatpush.msra.mxu0 %v992
    %3246 = vmatpush.msra.mxu0 %v991
    %3247 = vmatpush.msra.mxu0 %v990
    %3248 = vmatpush.msra.mxu0 %v989
    %3249 = vmatmul.f32.gmra.mxu0 %v141
    %v3250 = vpop.f32.mrf.mxu0
    %v3251 = vadd.f32 %v3231, %v3250
    %3252 = vdwg.mxu0
    %3253 = vmatpush.msra.mxu0 %v1020
    %3254 = vmatpush.msra.mxu0 %v1019
    %3255 = vmatpush.msra.mxu0 %v1018
    %3256 = vmatpush.msra.mxu0 %v1017
    %3257 = vmatpush.msra.mxu0 %v1016
    %3258 = vmatpush.msra.mxu0 %v1015
    %3259 = vmatpush.msra.mxu0 %v1014
    %3260 = vmatpush.msra.mxu0 %v1013
    %3261 = vmatpush.msra.mxu0 %v1012
    %3262 = vmatpush.msra.mxu0 %v1011
    %3263 = vmatpush.msra.mxu0 %v1010
    %3264 = vmatpush.msra.mxu0 %v1009
    %3265 = vmatpush.msra.mxu0 %v1008
    %3266 = vmatpush.msra.mxu0 %v1007
    %3267 = vmatpush.msra.mxu0 %v1006
    %3268 = vmatpush.msra.mxu0 %v1005
    %3269 = vmatmul.f32.gmra.mxu0 %v142
    %v3270 = vpop.f32.mrf.mxu0
    %v3271 = vadd.f32 %v3251, %v3270
    %3272 = vdwg.mxu0
    %3273 = vmatpush.msra.mxu0 %v1036
    %3274 = vmatpush.msra.mxu0 %v1035
    %3275 = vmatpush.msra.mxu0 %v1034
    %3276 = vmatpush.msra.mxu0 %v1033
    %3277 = vmatpush.msra.mxu0 %v1032
    %3278 = vmatpush.msra.mxu0 %v1031
    %3279 = vmatpush.msra.mxu0 %v1030
    %3280 = vmatpush.msra.mxu0 %v1029
    %3281 = vmatpush.msra.mxu0 %v1028
    %3282 = vmatpush.msra.mxu0 %v1027
    %3283 = vmatpush.msra.mxu0 %v1026
    %3284 = vmatpush.msra.mxu0 %v1025
    %3285 = vmatpush.msra.mxu0 %v1024
    %3286 = vmatpush.msra.mxu0 %v1023
    %3287 = vmatpush.msra.mxu0 %v1022
    %3288 = vmatpush.msra.mxu0 %v1021
    %3289 = vmatmul.f32.gmra.mxu0 %v143
    %v3290 = vpop.f32.mrf.mxu0
    %v3291 = vadd.f32 %v3271, %v3290
    %3292 = vdwg.mxu0
    %3293 = vmatpush.msra.mxu0 %v1052
    %3294 = vmatpush.msra.mxu0 %v1051
    %3295 = vmatpush.msra.mxu0 %v1050
    %3296 = vmatpush.msra.mxu0 %v1049
    %3297 = vmatpush.msra.mxu0 %v1048
    %3298 = vmatpush.msra.mxu0 %v1047
    %3299 = vmatpush.msra.mxu0 %v1046
    %3300 = vmatpush.msra.mxu0 %v1045
    %3301 = vmatpush.msra.mxu0 %v1044
    %3302 = vmatpush.msra.mxu0 %v1043
    %3303 = vmatpush.msra.mxu0 %v1042
    %3304 = vmatpush.msra.mxu0 %v1041
    %3305 = vmatpush.msra.mxu0 %v1040
    %3306 = vmatpush.msra.mxu0 %v1039
    %3307 = vmatpush.msra.mxu0 %v1038
    %3308 = vmatpush.msra.mxu0 %v1037
    %3309 = vmatmul.f32.gmra.mxu0 %v144
    %v3310 = vpop.f32.mrf.mxu0
    %v3311 = vadd.f32 %v3291, %v3310
    %3312 = vdwg.mxu0
    %3313 = vmatpush.msra.mxu0 %v1068
    %3314 = vmatpush.msra.mxu0 %v1067
    %3315 = vmatpush.msra.mxu0 %v1066
    %3316 = vmatpush.msra.mxu0 %v1065
    %3317 = vmatpush.msra.mxu0 %v1064
    %3318 = vmatpush.msra.mxu0 %v1063
    %3319 = vmatpush.msra.mxu0 %v1062
    %3320 = vmatpush.msra.mxu0 %v1061
    %3321 = vmatpush.msra.mxu0 %v1060
    %3322 = vmatpush.msra.mxu0 %v1059
    %3323 = vmatpush.msra.mxu0 %v1058
    %3324 = vmatpush.msra.mxu0 %v1057
    %3325 = vmatpush.msra.mxu0 %v1056
    %3326 = vmatpush.msra.mxu0 %v1055
    %3327 = vmatpush.msra.mxu0 %v1054
    %3328 = vmatpush.msra.mxu0 %v1053
    %3329 = vmatmul.f32.gmra.mxu0 %v145
    %v3330 = vpop.f32.mrf.mxu0
    %v3331 = vadd.f32 %v3311, %v3330
    %3332 = vdwg.mxu0
    %3333 = vmatpush.msra.mxu0 %v1084
    %3334 = vmatpush.msra.mxu0 %v1083
    %3335 = vmatpush.msra.mxu0 %v1082
    %3336 = vmatpush.msra.mxu0 %v1081
    %3337 = vmatpush.msra.mxu0 %v1080
    %3338 = vmatpush.msra.mxu0 %v1079
    %3339 = vmatpush.msra.mxu0 %v1078
    %3340 = vmatpush.msra.mxu0 %v1077
    %3341 = vmatpush.msra.mxu0 %v1076
    %3342 = vmatpush.msra.mxu0 %v1075
    %3343 = vmatpush.msra.mxu0 %v1074
    %3344 = vmatpush.msra.mxu0 %v1073
    %3345 = vmatpush.msra.mxu0 %v1072
    %3346 = vmatpush.msra.mxu0 %v1071
    %3347 = vmatpush.msra.mxu0 %v1070
    %3348 = vmatpush.msra.mxu0 %v1069
    %3349 = vmatmul.f32.gmra.mxu0 %v146
    %v3350 = vpop.f32.mrf.mxu0
    %v3351 = vadd.f32 %v3331, %v3350
    %3352 = vdwg.mxu0
    %3353 = vmatpush.msra.mxu0 %v1100
    %3354 = vmatpush.msra.mxu0 %v1099
    %3355 = vmatpush.msra.mxu0 %v1098
    %3356 = vmatpush.msra.mxu0 %v1097
    %3357 = vmatpush.msra.mxu0 %v1096
    %3358 = vmatpush.msra.mxu0 %v1095
    %3359 = vmatpush.msra.mxu0 %v1094
    %3360 = vmatpush.msra.mxu0 %v1093
    %3361 = vmatpush.msra.mxu0 %v1092
    %3362 = vmatpush.msra.mxu0 %v1091
    %3363 = vmatpush.msra.mxu0 %v1090
    %3364 = vmatpush.msra.mxu0 %v1089
    %3365 = vmatpush.msra.mxu0 %v1088
    %3366 = vmatpush.msra.mxu0 %v1087
    %3367 = vmatpush.msra.mxu0 %v1086
    %3368 = vmatpush.msra.mxu0 %v1085
    %3369 = vmatmul.f32.gmra.mxu0 %v147
    %v3370 = vpop.f32.mrf.mxu0
    %v3371 = vadd.f32 %v3351, %v3370
    %3372 = vdwg.mxu0
    %3373 = vmatpush.msra.mxu0 %v1116
    %3374 = vmatpush.msra.mxu0 %v1115
    %3375 = vmatpush.msra.mxu0 %v1114
    %3376 = vmatpush.msra.mxu0 %v1113
    %3377 = vmatpush.msra.mxu0 %v1112
    %3378 = vmatpush.msra.mxu0 %v1111
    %3379 = vmatpush.msra.mxu0 %v1110
    %3380 = vmatpush.msra.mxu0 %v1109
    %3381 = vmatpush.msra.mxu0 %v1108
    %3382 = vmatpush.msra.mxu0 %v1107
    %3383 = vmatpush.msra.mxu0 %v1106
    %3384 = vmatpush.msra.mxu0 %v1105
    %3385 = vmatpush.msra.mxu0 %v1104
    %3386 = vmatpush.msra.mxu0 %v1103
    %3387 = vmatpush.msra.mxu0 %v1102
    %3388 = vmatpush.msra.mxu0 %v1101
    %3389 = vmatmul.f32.gmra.mxu0 %v148
    %v3390 = vpop.f32.mrf.mxu0
    %v3391 = vadd.f32 %v3371, %v3390
    %3392 = vdwg.mxu0
    %3393 = vmatpush.msra.mxu0 %v1132
    %3394 = vmatpush.msra.mxu0 %v1131
    %3395 = vmatpush.msra.mxu0 %v1130
    %3396 = vmatpush.msra.mxu0 %v1129
    %3397 = vmatpush.msra.mxu0 %v1128
    %3398 = vmatpush.msra.mxu0 %v1127
    %3399 = vmatpush.msra.mxu0 %v1126
    %3400 = vmatpush.msra.mxu0 %v1125
    %3401 = vmatpush.msra.mxu0 %v1124
    %3402 = vmatpush.msra.mxu0 %v1123
    %3403 = vmatpush.msra.mxu0 %v1122
    %3404 = vmatpush.msra.mxu0 %v1121
    %3405 = vmatpush.msra.mxu0 %v1120
    %3406 = vmatpush.msra.mxu0 %v1119
    %3407 = vmatpush.msra.mxu0 %v1118
    %3408 = vmatpush.msra.mxu0 %v1117
    %3409 = vmatmul.f32.gmra.mxu0 %v149
    %v3410 = vpop.f32.mrf.mxu0
    %v3411 = vadd.f32 %v3391, %v3410
    %3412 = vdwg.mxu0
    %3413 = vmatpush.msra.mxu0 %v1148
    %3414 = vmatpush.msra.mxu0 %v1147
    %3415 = vmatpush.msra.mxu0 %v1146
    %3416 = vmatpush.msra.mxu0 %v1145
    %3417 = vmatpush.msra.mxu0 %v1144
    %3418 = vmatpush.msra.mxu0 %v1143
    %3419 = vmatpush.msra.mxu0 %v1142
    %3420 = vmatpush.msra.mxu0 %v1141
    %3421 = vmatpush.msra.mxu0 %v1140
    %3422 = vmatpush.msra.mxu0 %v1139
    %3423 = vmatpush.msra.mxu0 %v1138
    %3424 = vmatpush.msra.mxu0 %v1137
    %3425 = vmatpush.msra.mxu0 %v1136
    %3426 = vmatpush.msra.mxu0 %v1135
    %3427 = vmatpush.msra.mxu0 %v1134
    %3428 = vmatpush.msra.mxu0 %v1133
    %3429 = vmatmul.f32.gmra.mxu0 %v150
    %v3430 = vpop.f32.mrf.mxu0
    %v3431 = vadd.f32 %v3411, %v3430
    %3432 = vdwg.mxu0
    %3433 = vmatpush.msra.mxu0 %v1164
    %3434 = vmatpush.msra.mxu0 %v1163
    %3435 = vmatpush.msra.mxu0 %v1162
    %3436 = vmatpush.msra.mxu0 %v1161
    %3437 = vmatpush.msra.mxu0 %v1160
    %3438 = vmatpush.msra.mxu0 %v1159
    %3439 = vmatpush.msra.mxu0 %v1158
    %3440 = vmatpush.msra.mxu0 %v1157
    %3441 = vmatpush.msra.mxu0 %v1156
    %3442 = vmatpush.msra.mxu0 %v1155
    %3443 = vmatpush.msra.mxu0 %v1154
    %3444 = vmatpush.msra.mxu0 %v1153
    %3445 = vmatpush.msra.mxu0 %v1152
    %3446 = vmatpush.msra.mxu0 %v1151
    %3447 = vmatpush.msra.mxu0 %v1150
    %3448 = vmatpush.msra.mxu0 %v1149
    %3449 = vmatmul.f32.gmra.mxu0 %v151
    %v3450 = vpop.f32.mrf.mxu0
    %v3451 = vadd.f32 %v3431, %v3450
    %3452 = vdwg.mxu0
    %3453 = vmatpush.msra.mxu0 %v1180
    %3454 = vmatpush.msra.mxu0 %v1179
    %3455 = vmatpush.msra.mxu0 %v1178
    %3456 = vmatpush.msra.mxu0 %v1177
    %3457 = vmatpush.msra.mxu0 %v1176
    %3458 = vmatpush.msra.mxu0 %v1175
    %3459 = vmatpush.msra.mxu0 %v1174
    %3460 = vmatpush.msra.mxu0 %v1173
    %3461 = vmatpush.msra.mxu0 %v1172
    %3462 = vmatpush.msra.mxu0 %v1171
    %3463 = vmatpush.msra.mxu0 %v1170
    %3464 = vmatpush.msra.mxu0 %v1169
    %3465 = vmatpush.msra.mxu0 %v1168
    %3466 = vmatpush.msra.mxu0 %v1167
    %3467 = vmatpush.msra.mxu0 %v1166
    %3468 = vmatpush.msra.mxu0 %v1165
    %3469 = vmatmul.f32.gmra.mxu0 %v152
    %v3470 = vpop.f32.mrf.mxu0
    %v3471 = vadd.f32 %v3451, %v3470
    %3472 = vdwg.mxu0
    %3473 = vmatpush.msra.mxu0 %v1196
    %3474 = vmatpush.msra.mxu0 %v1195
    %3475 = vmatpush.msra.mxu0 %v1194
    %3476 = vmatpush.msra.mxu0 %v1193
    %3477 = vmatpush.msra.mxu0 %v1192
    %3478 = vmatpush.msra.mxu0 %v1191
    %3479 = vmatpush.msra.mxu0 %v1190
    %3480 = vmatpush.msra.mxu0 %v1189
    %3481 = vmatpush.msra.mxu0 %v1188
    %3482 = vmatpush.msra.mxu0 %v1187
    %3483 = vmatpush.msra.mxu0 %v1186
    %3484 = vmatpush.msra.mxu0 %v1185
    %3485 = vmatpush.msra.mxu0 %v1184
    %3486 = vmatpush.msra.mxu0 %v1183
    %3487 = vmatpush.msra.mxu0 %v1182
    %3488 = vmatpush.msra.mxu0 %v1181
    %3489 = vmatmul.f32.gmra.mxu0 %v153
    %v3490 = vpop.f32.mrf.mxu0
    %v3491 = vadd.f32 %v3471, %v3490
    %3492 = vdwg.mxu0
    %3493 = vmatpush.msra.mxu0 %v1212
    %3494 = vmatpush.msra.mxu0 %v1211
    %3495 = vmatpush.msra.mxu0 %v1210
    %3496 = vmatpush.msra.mxu0 %v1209
    %3497 = vmatpush.msra.mxu0 %v1208
    %3498 = vmatpush.msra.mxu0 %v1207
    %3499 = vmatpush.msra.mxu0 %v1206
    %3500 = vmatpush.msra.mxu0 %v1205
    %3501 = vmatpush.msra.mxu0 %v1204
    %3502 = vmatpush.msra.mxu0 %v1203
    %3503 = vmatpush.msra.mxu0 %v1202
    %3504 = vmatpush.msra.mxu0 %v1201
    %3505 = vmatpush.msra.mxu0 %v1200
    %3506 = vmatpush.msra.mxu0 %v1199
    %3507 = vmatpush.msra.mxu0 %v1198
    %3508 = vmatpush.msra.mxu0 %v1197
    %3509 = vmatmul.f32.gmra.mxu0 %v154
    %v3510 = vpop.f32.mrf.mxu0
    %v3511 = vadd.f32 %v3491, %v3510
    %3512 = vdwg.mxu0
    %3513 = vmatpush.msra.mxu0 %v1228
    %3514 = vmatpush.msra.mxu0 %v1227
    %3515 = vmatpush.msra.mxu0 %v1226
    %3516 = vmatpush.msra.mxu0 %v1225
    %3517 = vmatpush.msra.mxu0 %v1224
    %3518 = vmatpush.msra.mxu0 %v1223
    %3519 = vmatpush.msra.mxu0 %v1222
    %3520 = vmatpush.msra.mxu0 %v1221
    %3521 = vmatpush.msra.mxu0 %v1220
    %3522 = vmatpush.msra.mxu0 %v1219
    %3523 = vmatpush.msra.mxu0 %v1218
    %3524 = vmatpush.msra.mxu0 %v1217
    %3525 = vmatpush.msra.mxu0 %v1216
    %3526 = vmatpush.msra.mxu0 %v1215
    %3527 = vmatpush.msra.mxu0 %v1214
    %3528 = vmatpush.msra.mxu0 %v1213
    %3529 = vmatmul.f32.gmra.mxu0 %v155
    %v3530 = vpop.f32.mrf.mxu0
    %v3531 = vadd.f32 %v3511, %v3530
    %3532 = vdwg.mxu0
    %3533 = vmatpush.msra.mxu0 %v1244
    %3534 = vmatpush.msra.mxu0 %v1243
    %3535 = vmatpush.msra.mxu0 %v1242
    %3536 = vmatpush.msra.mxu0 %v1241
    %3537 = vmatpush.msra.mxu0 %v1240
    %3538 = vmatpush.msra.mxu0 %v1239
    %3539 = vmatpush.msra.mxu0 %v1238
    %3540 = vmatpush.msra.mxu0 %v1237
    %3541 = vmatpush.msra.mxu0 %v1236
    %3542 = vmatpush.msra.mxu0 %v1235
    %3543 = vmatpush.msra.mxu0 %v1234
    %3544 = vmatpush.msra.mxu0 %v1233
    %3545 = vmatpush.msra.mxu0 %v1232
    %3546 = vmatpush.msra.mxu0 %v1231
    %3547 = vmatpush.msra.mxu0 %v1230
    %3548 = vmatpush.msra.mxu0 %v1229
    %3549 = vmatmul.f32.gmra.mxu0 %v156
    %v3550 = vpop.f32.mrf.mxu0
    %v3551 = vadd.f32 %v3531, %v3550
    %3552 = vdwg.mxu0
    %3553 = vmatpush.msra.mxu0 %v1260
    %3554 = vmatpush.msra.mxu0 %v1259
    %3555 = vmatpush.msra.mxu0 %v1258
    %3556 = vmatpush.msra.mxu0 %v1257
    %3557 = vmatpush.msra.mxu0 %v1256
    %3558 = vmatpush.msra.mxu0 %v1255
    %3559 = vmatpush.msra.mxu0 %v1254
    %3560 = vmatpush.msra.mxu0 %v1253
    %3561 = vmatpush.msra.mxu0 %v1252
    %3562 = vmatpush.msra.mxu0 %v1251
    %3563 = vmatpush.msra.mxu0 %v1250
    %3564 = vmatpush.msra.mxu0 %v1249
    %3565 = vmatpush.msra.mxu0 %v1248
    %3566 = vmatpush.msra.mxu0 %v1247
    %3567 = vmatpush.msra.mxu0 %v1246
    %3568 = vmatpush.msra.mxu0 %v1245
    %3569 = vmatmul.f32.gmra.mxu0 %v157
    %v3570 = vpop.f32.mrf.mxu0
    %v3571 = vadd.f32 %v3551, %v3570
    %3572 = vdwg.mxu0
    %3573 = vmatpush.msra.mxu0 %v1276
    %3574 = vmatpush.msra.mxu0 %v1275
    %3575 = vmatpush.msra.mxu0 %v1274
    %3576 = vmatpush.msra.mxu0 %v1273
    %3577 = vmatpush.msra.mxu0 %v1272
    %3578 = vmatpush.msra.mxu0 %v1271
    %3579 = vmatpush.msra.mxu0 %v1270
    %3580 = vmatpush.msra.mxu0 %v1269
    %3581 = vmatpush.msra.mxu0 %v1268
    %3582 = vmatpush.msra.mxu0 %v1267
    %3583 = vmatpush.msra.mxu0 %v1266
    %3584 = vmatpush.msra.mxu0 %v1265
    %3585 = vmatpush.msra.mxu0 %v1264
    %3586 = vmatpush.msra.mxu0 %v1263
    %3587 = vmatpush.msra.mxu0 %v1262
    %3588 = vmatpush.msra.mxu0 %v1261
    %3589 = vmatmul.f32.gmra.mxu0 %v158
    %v3590 = vpop.f32.mrf.mxu0
    %v3591 = vadd.f32 %v3571, %v3590
    %3592 = vdwg.mxu0
    %3593 = vmatpush.msra.mxu0 %v1292
    %3594 = vmatpush.msra.mxu0 %v1291
    %3595 = vmatpush.msra.mxu0 %v1290
    %3596 = vmatpush.msra.mxu0 %v1289
    %3597 = vmatpush.msra.mxu0 %v1288
    %3598 = vmatpush.msra.mxu0 %v1287
    %3599 = vmatpush.msra.mxu0 %v1286
    %3600 = vmatpush.msra.mxu0 %v1285
    %3601 = vmatpush.msra.mxu0 %v1284
    %3602 = vmatpush.msra.mxu0 %v1283
    %3603 = vmatpush.msra.mxu0 %v1282
    %3604 = vmatpush.msra.mxu0 %v1281
    %3605 = vmatpush.msra.mxu0 %v1280
    %3606 = vmatpush.msra.mxu0 %v1279
    %3607 = vmatpush.msra.mxu0 %v1278
    %3608 = vmatpush.msra.mxu0 %v1277
    %3609 = vmatmul.f32.gmra.mxu0 %v159
    %v3610 = vpop.f32.mrf.mxu0
    %v3611 = vadd.f32 %v3591, %v3610
    %3612 = vdwg.mxu0
    %3613 = vmatpush.msra.mxu0 %v1308
    %3614 = vmatpush.msra.mxu0 %v1307
    %3615 = vmatpush.msra.mxu0 %v1306
    %3616 = vmatpush.msra.mxu0 %v1305
    %3617 = vmatpush.msra.mxu0 %v1304
    %3618 = vmatpush.msra.mxu0 %v1303
    %3619 = vmatpush.msra.mxu0 %v1302
    %3620 = vmatpush.msra.mxu0 %v1301
    %3621 = vmatpush.msra.mxu0 %v1300
    %3622 = vmatpush.msra.mxu0 %v1299
    %3623 = vmatpush.msra.mxu0 %v1298
    %3624 = vmatpush.msra.mxu0 %v1297
    %3625 = vmatpush.msra.mxu0 %v1296
    %3626 = vmatpush.msra.mxu0 %v1295
    %3627 = vmatpush.msra.mxu0 %v1294
    %3628 = vmatpush.msra.mxu0 %v1293
    %3629 = vmatmul.f32.gmra.mxu0 %v160
    %v3630 = vpop.f32.mrf.mxu0
    %v3631 = vadd.f32 %v3611, %v3630
    %3632 = vdwg.mxu0
    %3633 = vmatpush.msra.mxu0 %v1324
    %3634 = vmatpush.msra.mxu0 %v1323
    %3635 = vmatpush.msra.mxu0 %v1322
    %3636 = vmatpush.msra.mxu0 %v1321
    %3637 = vmatpush.msra.mxu0 %v1320
    %3638 = vmatpush.msra.mxu0 %v1319
    %3639 = vmatpush.msra.mxu0 %v1318
    %3640 = vmatpush.msra.mxu0 %v1317
    %3641 = vmatpush.msra.mxu0 %v1316
    %3642 = vmatpush.msra.mxu0 %v1315
    %3643 = vmatpush.msra.mxu0 %v1314
    %3644 = vmatpush.msra.mxu0 %v1313
    %3645 = vmatpush.msra.mxu0 %v1312
    %3646 = vmatpush.msra.mxu0 %v1311
    %3647 = vmatpush.msra.mxu0 %v1310
    %3648 = vmatpush.msra.mxu0 %v1309
    %3649 = vmatmul.f32.gmra.mxu0 %v161
    %v3650 = vpop.f32.mrf.mxu0
    %v3651 = vadd.f32 %v3631, %v3650
    %3652 = vdwg.mxu0
    %3653 = vmatpush.msra.mxu0 %v1340
    %3654 = vmatpush.msra.mxu0 %v1339
    %3655 = vmatpush.msra.mxu0 %v1338
    %3656 = vmatpush.msra.mxu0 %v1337
    %3657 = vmatpush.msra.mxu0 %v1336
    %3658 = vmatpush.msra.mxu0 %v1335
    %3659 = vmatpush.msra.mxu0 %v1334
    %3660 = vmatpush.msra.mxu0 %v1333
    %3661 = vmatpush.msra.mxu0 %v1332
    %3662 = vmatpush.msra.mxu0 %v1331
    %3663 = vmatpush.msra.mxu0 %v1330
    %3664 = vmatpush.msra.mxu0 %v1329
    %3665 = vmatpush.msra.mxu0 %v1328
    %3666 = vmatpush.msra.mxu0 %v1327
    %3667 = vmatpush.msra.mxu0 %v1326
    %3668 = vmatpush.msra.mxu0 %v1325
    %3669 = vmatmul.f32.gmra.mxu0 %v162
    %v3670 = vpop.f32.mrf.mxu0
    %v3671 = vadd.f32 %v3651, %v3670
    %3672 = vdwg.mxu0
    %3673 = vmatpush.msra.mxu0 %v1356
    %3674 = vmatpush.msra.mxu0 %v1355
    %3675 = vmatpush.msra.mxu0 %v1354
    %3676 = vmatpush.msra.mxu0 %v1353
    %3677 = vmatpush.msra.mxu0 %v1352
    %3678 = vmatpush.msra.mxu0 %v1351
    %3679 = vmatpush.msra.mxu0 %v1350
    %3680 = vmatpush.msra.mxu0 %v1349
    %3681 = vmatpush.msra.mxu0 %v1348
    %3682 = vmatpush.msra.mxu0 %v1347
    %3683 = vmatpush.msra.mxu0 %v1346
    %3684 = vmatpush.msra.mxu0 %v1345
    %3685 = vmatpush.msra.mxu0 %v1344
    %3686 = vmatpush.msra.mxu0 %v1343
    %3687 = vmatpush.msra.mxu0 %v1342
    %3688 = vmatpush.msra.mxu0 %v1341
    %3689 = vmatmul.f32.gmra.mxu0 %v163
    %v3690 = vpop.f32.mrf.mxu0
    %v3691 = vadd.f32 %v3671, %v3690
    %3692 = vdwg.mxu0
    %3693 = vmatpush.msra.mxu0 %v1372
    %3694 = vmatpush.msra.mxu0 %v1371
    %3695 = vmatpush.msra.mxu0 %v1370
    %3696 = vmatpush.msra.mxu0 %v1369
    %3697 = vmatpush.msra.mxu0 %v1368
    %3698 = vmatpush.msra.mxu0 %v1367
    %3699 = vmatpush.msra.mxu0 %v1366
    %3700 = vmatpush.msra.mxu0 %v1365
    %3701 = vmatpush.msra.mxu0 %v1364
    %3702 = vmatpush.msra.mxu0 %v1363
    %3703 = vmatpush.msra.mxu0 %v1362
    %3704 = vmatpush.msra.mxu0 %v1361
    %3705 = vmatpush.msra.mxu0 %v1360
    %3706 = vmatpush.msra.mxu0 %v1359
    %3707 = vmatpush.msra.mxu0 %v1358
    %3708 = vmatpush.msra.mxu0 %v1357
    %3709 = vmatmul.f32.gmra.mxu0 %v164
    %v3710 = vpop.f32.mrf.mxu0
    %v3711 = vadd.f32 %v3691, %v3710
    %3712 = vdwg.mxu0
    %3713 = vmatpush.msra.mxu0 %v1388
    %3714 = vmatpush.msra.mxu0 %v1387
    %3715 = vmatpush.msra.mxu0 %v1386
    %3716 = vmatpush.msra.mxu0 %v1385
    %3717 = vmatpush.msra.mxu0 %v1384
    %3718 = vmatpush.msra.mxu0 %v1383
    %3719 = vmatpush.msra.mxu0 %v1382
    %3720 = vmatpush.msra.mxu0 %v1381
    %3721 = vmatpush.msra.mxu0 %v1380
    %3722 = vmatpush.msra.mxu0 %v1379
    %3723 = vmatpush.msra.mxu0 %v1378
    %3724 = vmatpush.msra.mxu0 %v1377
    %3725 = vmatpush.msra.mxu0 %v1376
    %3726 = vmatpush.msra.mxu0 %v1375
    %3727 = vmatpush.msra.mxu0 %v1374
    %3728 = vmatpush.msra.mxu0 %v1373
    %3729 = vmatmul.f32.gmra.mxu0 %v165
    %v3730 = vpop.f32.mrf.mxu0
    %v3731 = vadd.f32 %v3711, %v3730
    %3732 = vdwg.mxu0
    %3733 = vmatpush.msra.mxu0 %v1404
    %3734 = vmatpush.msra.mxu0 %v1403
    %3735 = vmatpush.msra.mxu0 %v1402
    %3736 = vmatpush.msra.mxu0 %v1401
    %3737 = vmatpush.msra.mxu0 %v1400
    %3738 = vmatpush.msra.mxu0 %v1399
    %3739 = vmatpush.msra.mxu0 %v1398
    %3740 = vmatpush.msra.mxu0 %v1397
    %3741 = vmatpush.msra.mxu0 %v1396
    %3742 = vmatpush.msra.mxu0 %v1395
    %3743 = vmatpush.msra.mxu0 %v1394
    %3744 = vmatpush.msra.mxu0 %v1393
    %3745 = vmatpush.msra.mxu0 %v1392
    %3746 = vmatpush.msra.mxu0 %v1391
    %3747 = vmatpush.msra.mxu0 %v1390
    %3748 = vmatpush.msra.mxu0 %v1389
    %3749 = vmatmul.f32.gmra.mxu0 %v166
    %v3750 = vpop.f32.mrf.mxu0
    %v3751 = vadd.f32 %v3731, %v3750
    %3752 = vdwg.mxu0
    %3753 = vmatpush.msra.mxu0 %v1420
    %3754 = vmatpush.msra.mxu0 %v1419
    %3755 = vmatpush.msra.mxu0 %v1418
    %3756 = vmatpush.msra.mxu0 %v1417
    %3757 = vmatpush.msra.mxu0 %v1416
    %3758 = vmatpush.msra.mxu0 %v1415
    %3759 = vmatpush.msra.mxu0 %v1414
    %3760 = vmatpush.msra.mxu0 %v1413
    %3761 = vmatpush.msra.mxu0 %v1412
    %3762 = vmatpush.msra.mxu0 %v1411
    %3763 = vmatpush.msra.mxu0 %v1410
    %3764 = vmatpush.msra.mxu0 %v1409
    %3765 = vmatpush.msra.mxu0 %v1408
    %3766 = vmatpush.msra.mxu0 %v1407
    %3767 = vmatpush.msra.mxu0 %v1406
    %3768 = vmatpush.msra.mxu0 %v1405
    %3769 = vmatmul.f32.gmra.mxu0 %v167
    %v3770 = vpop.f32.mrf.mxu0
    %v3771 = vadd.f32 %v3751, %v3770
    %3772 = vdwg.mxu0
    %3773 = vmatpush.msra.mxu0 %v1436
    %3774 = vmatpush.msra.mxu0 %v1435
    %3775 = vmatpush.msra.mxu0 %v1434
    %3776 = vmatpush.msra.mxu0 %v1433
    %3777 = vmatpush.msra.mxu0 %v1432
    %3778 = vmatpush.msra.mxu0 %v1431
    %3779 = vmatpush.msra.mxu0 %v1430
    %3780 = vmatpush.msra.mxu0 %v1429
    %3781 = vmatpush.msra.mxu0 %v1428
    %3782 = vmatpush.msra.mxu0 %v1427
    %3783 = vmatpush.msra.mxu0 %v1426
    %3784 = vmatpush.msra.mxu0 %v1425
    %3785 = vmatpush.msra.mxu0 %v1424
    %3786 = vmatpush.msra.mxu0 %v1423
    %3787 = vmatpush.msra.mxu0 %v1422
    %3788 = vmatpush.msra.mxu0 %v1421
    %3789 = vmatmul.f32.gmra.mxu0 %v168
    %v3790 = vpop.f32.mrf.mxu0
    %v3791 = vadd.f32 %v3771, %v3790
    %3792 = vdwg.mxu0
    %3793 = vmatpush.msra.mxu0 %v1452
    %3794 = vmatpush.msra.mxu0 %v1451
    %3795 = vmatpush.msra.mxu0 %v1450
    %3796 = vmatpush.msra.mxu0 %v1449
    %3797 = vmatpush.msra.mxu0 %v1448
    %3798 = vmatpush.msra.mxu0 %v1447
    %3799 = vmatpush.msra.mxu0 %v1446
    %3800 = vmatpush.msra.mxu0 %v1445
    %3801 = vmatpush.msra.mxu0 %v1444
    %3802 = vmatpush.msra.mxu0 %v1443
    %3803 = vmatpush.msra.mxu0 %v1442
    %3804 = vmatpush.msra.mxu0 %v1441
    %3805 = vmatpush.msra.mxu0 %v1440
    %3806 = vmatpush.msra.mxu0 %v1439
    %3807 = vmatpush.msra.mxu0 %v1438
    %3808 = vmatpush.msra.mxu0 %v1437
    %3809 = vmatmul.f32.gmra.mxu0 %v169
    %v3810 = vpop.f32.mrf.mxu0
    %v3811 = vadd.f32 %v3791, %v3810
    %3812 = vdwg.mxu0
    %3813 = vmatpush.msra.mxu0 %v1468
    %3814 = vmatpush.msra.mxu0 %v1467
    %3815 = vmatpush.msra.mxu0 %v1466
    %3816 = vmatpush.msra.mxu0 %v1465
    %3817 = vmatpush.msra.mxu0 %v1464
    %3818 = vmatpush.msra.mxu0 %v1463
    %3819 = vmatpush.msra.mxu0 %v1462
    %3820 = vmatpush.msra.mxu0 %v1461
    %3821 = vmatpush.msra.mxu0 %v1460
    %3822 = vmatpush.msra.mxu0 %v1459
    %3823 = vmatpush.msra.mxu0 %v1458
    %3824 = vmatpush.msra.mxu0 %v1457
    %3825 = vmatpush.msra.mxu0 %v1456
    %3826 = vmatpush.msra.mxu0 %v1455
    %3827 = vmatpush.msra.mxu0 %v1454
    %3828 = vmatpush.msra.mxu0 %v1453
    %3829 = vmatmul.f32.gmra.mxu0 %v170
    %v3830 = vpop.f32.mrf.mxu0
    %v3831 = vadd.f32 %v3811, %v3830
    %3832 = vdwg.mxu0
    %3833 = vmatpush.msra.mxu0 %v1484
    %3834 = vmatpush.msra.mxu0 %v1483
    %3835 = vmatpush.msra.mxu0 %v1482
    %3836 = vmatpush.msra.mxu0 %v1481
    %3837 = vmatpush.msra.mxu0 %v1480
    %3838 = vmatpush.msra.mxu0 %v1479
    %3839 = vmatpush.msra.mxu0 %v1478
    %3840 = vmatpush.msra.mxu0 %v1477
    %3841 = vmatpush.msra.mxu0 %v1476
    %3842 = vmatpush.msra.mxu0 %v1475
    %3843 = vmatpush.msra.mxu0 %v1474
    %3844 = vmatpush.msra.mxu0 %v1473
    %3845 = vmatpush.msra.mxu0 %v1472
    %3846 = vmatpush.msra.mxu0 %v1471
    %3847 = vmatpush.msra.mxu0 %v1470
    %3848 = vmatpush.msra.mxu0 %v1469
    %3849 = vmatmul.f32.gmra.mxu0 %v171
    %v3850 = vpop.f32.mrf.mxu0
    %v3851 = vadd.f32 %v3831, %v3850
    %3852 = vdwg.mxu0
    %3853 = vmatpush.msra.mxu0 %v1500
    %3854 = vmatpush.msra.mxu0 %v1499
    %3855 = vmatpush.msra.mxu0 %v1498
    %3856 = vmatpush.msra.mxu0 %v1497
    %3857 = vmatpush.msra.mxu0 %v1496
    %3858 = vmatpush.msra.mxu0 %v1495
    %3859 = vmatpush.msra.mxu0 %v1494
    %3860 = vmatpush.msra.mxu0 %v1493
    %3861 = vmatpush.msra.mxu0 %v1492
    %3862 = vmatpush.msra.mxu0 %v1491
    %3863 = vmatpush.msra.mxu0 %v1490
    %3864 = vmatpush.msra.mxu0 %v1489
    %3865 = vmatpush.msra.mxu0 %v1488
    %3866 = vmatpush.msra.mxu0 %v1487
    %3867 = vmatpush.msra.mxu0 %v1486
    %3868 = vmatpush.msra.mxu0 %v1485
    %3869 = vmatmul.f32.gmra.mxu0 %v172
    %v3870 = vpop.f32.mrf.mxu0
    %v3871 = vadd.f32 %v3851, %v3870
    %3872 = vdwg.mxu0
    %3873 = vmatpush.msra.mxu0 %v1516
    %3874 = vmatpush.msra.mxu0 %v1515
    %3875 = vmatpush.msra.mxu0 %v1514
    %3876 = vmatpush.msra.mxu0 %v1513
    %3877 = vmatpush.msra.mxu0 %v1512
    %3878 = vmatpush.msra.mxu0 %v1511
    %3879 = vmatpush.msra.mxu0 %v1510
    %3880 = vmatpush.msra.mxu0 %v1509
    %3881 = vmatpush.msra.mxu0 %v1508
    %3882 = vmatpush.msra.mxu0 %v1507
    %3883 = vmatpush.msra.mxu0 %v1506
    %3884 = vmatpush.msra.mxu0 %v1505
    %3885 = vmatpush.msra.mxu0 %v1504
    %3886 = vmatpush.msra.mxu0 %v1503
    %3887 = vmatpush.msra.mxu0 %v1502
    %3888 = vmatpush.msra.mxu0 %v1501
    %3889 = vmatmul.f32.gmra.mxu0 %v173
    %v3890 = vpop.f32.mrf.mxu0
    %v3891 = vadd.f32 %v3871, %v3890
    %3892 = vdwg.mxu0
    %3893 = vmatpush.msra.mxu0 %v1532
    %3894 = vmatpush.msra.mxu0 %v1531
    %3895 = vmatpush.msra.mxu0 %v1530
    %3896 = vmatpush.msra.mxu0 %v1529
    %3897 = vmatpush.msra.mxu0 %v1528
    %3898 = vmatpush.msra.mxu0 %v1527
    %3899 = vmatpush.msra.mxu0 %v1526
    %3900 = vmatpush.msra.mxu0 %v1525
    %3901 = vmatpush.msra.mxu0 %v1524
    %3902 = vmatpush.msra.mxu0 %v1523
    %3903 = vmatpush.msra.mxu0 %v1522
    %3904 = vmatpush.msra.mxu0 %v1521
    %3905 = vmatpush.msra.mxu0 %v1520
    %3906 = vmatpush.msra.mxu0 %v1519
    %3907 = vmatpush.msra.mxu0 %v1518
    %3908 = vmatpush.msra.mxu0 %v1517
    %3909 = vmatmul.f32.gmra.mxu0 %v174
    %v3910 = vpop.f32.mrf.mxu0
    %v3911 = vadd.f32 %v3891, %v3910
    %3912 = vdwg.mxu0
    %3913 = vmatpush.msra.mxu0 %v1548
    %3914 = vmatpush.msra.mxu0 %v1547
    %3915 = vmatpush.msra.mxu0 %v1546
    %3916 = vmatpush.msra.mxu0 %v1545
    %3917 = vmatpush.msra.mxu0 %v1544
    %3918 = vmatpush.msra.mxu0 %v1543
    %3919 = vmatpush.msra.mxu0 %v1542
    %3920 = vmatpush.msra.mxu0 %v1541
    %3921 = vmatpush.msra.mxu0 %v1540
    %3922 = vmatpush.msra.mxu0 %v1539
    %3923 = vmatpush.msra.mxu0 %v1538
    %3924 = vmatpush.msra.mxu0 %v1537
    %3925 = vmatpush.msra.mxu0 %v1536
    %3926 = vmatpush.msra.mxu0 %v1535
    %3927 = vmatpush.msra.mxu0 %v1534
    %3928 = vmatpush.msra.mxu0 %v1533
    %3929 = vmatmul.f32.gmra.mxu0 %v175
    %v3930 = vpop.f32.mrf.mxu0
    %v3931 = vadd.f32 %v3911, %v3930
    %3932 = vdwg.mxu0
    %3933 = vmatpush.msra.mxu0 %v1564
    %3934 = vmatpush.msra.mxu0 %v1563
    %3935 = vmatpush.msra.mxu0 %v1562
    %3936 = vmatpush.msra.mxu0 %v1561
    %3937 = vmatpush.msra.mxu0 %v1560
    %3938 = vmatpush.msra.mxu0 %v1559
    %3939 = vmatpush.msra.mxu0 %v1558
    %3940 = vmatpush.msra.mxu0 %v1557
    %3941 = vmatpush.msra.mxu0 %v1556
    %3942 = vmatpush.msra.mxu0 %v1555
    %3943 = vmatpush.msra.mxu0 %v1554
    %3944 = vmatpush.msra.mxu0 %v1553
    %3945 = vmatpush.msra.mxu0 %v1552
    %3946 = vmatpush.msra.mxu0 %v1551
    %3947 = vmatpush.msra.mxu0 %v1550
    %3948 = vmatpush.msra.mxu0 %v1549
    %3949 = vmatmul.f32.gmra.mxu0 %v176
    %v3950 = vpop.f32.mrf.mxu0
    %v3951 = vadd.f32 %v3931, %v3950
    %3952 = vdwg.mxu0
    %3953 = vmatpush.msra.mxu0 %v1580
    %3954 = vmatpush.msra.mxu0 %v1579
    %3955 = vmatpush.msra.mxu0 %v1578
    %3956 = vmatpush.msra.mxu0 %v1577
    %3957 = vmatpush.msra.mxu0 %v1576
    %3958 = vmatpush.msra.mxu0 %v1575
    %3959 = vmatpush.msra.mxu0 %v1574
    %3960 = vmatpush.msra.mxu0 %v1573
    %3961 = vmatpush.msra.mxu0 %v1572
    %3962 = vmatpush.msra.mxu0 %v1571
    %3963 = vmatpush.msra.mxu0 %v1570
    %3964 = vmatpush.msra.mxu0 %v1569
    %3965 = vmatpush.msra.mxu0 %v1568
    %3966 = vmatpush.msra.mxu0 %v1567
    %3967 = vmatpush.msra.mxu0 %v1566
    %3968 = vmatpush.msra.mxu0 %v1565
    %3969 = vmatmul.f32.gmra.mxu0 %v177
    %v3970 = vpop.f32.mrf.mxu0
    %v3971 = vadd.f32 %v3951, %v3970
    %3972 = vdwg.mxu0
    %3973 = vmatpush.msra.mxu0 %v1596
    %3974 = vmatpush.msra.mxu0 %v1595
    %3975 = vmatpush.msra.mxu0 %v1594
    %3976 = vmatpush.msra.mxu0 %v1593
    %3977 = vmatpush.msra.mxu0 %v1592
    %3978 = vmatpush.msra.mxu0 %v1591
    %3979 = vmatpush.msra.mxu0 %v1590
    %3980 = vmatpush.msra.mxu0 %v1589
    %3981 = vmatpush.msra.mxu0 %v1588
    %3982 = vmatpush.msra.mxu0 %v1587
    %3983 = vmatpush.msra.mxu0 %v1586
    %3984 = vmatpush.msra.mxu0 %v1585
    %3985 = vmatpush.msra.mxu0 %v1584
    %3986 = vmatpush.msra.mxu0 %v1583
    %3987 = vmatpush.msra.mxu0 %v1582
    %3988 = vmatpush.msra.mxu0 %v1581
    %3989 = vmatmul.f32.gmra.mxu0 %v178
    %v3990 = vpop.f32.mrf.mxu0
    %v3991 = vadd.f32 %v3971, %v3990
    %3992 = vdwg.mxu0
    %3993 = vmatpush.msra.mxu0 %v1612
    %3994 = vmatpush.msra.mxu0 %v1611
    %3995 = vmatpush.msra.mxu0 %v1610
    %3996 = vmatpush.msra.mxu0 %v1609
    %3997 = vmatpush.msra.mxu0 %v1608
    %3998 = vmatpush.msra.mxu0 %v1607
    %3999 = vmatpush.msra.mxu0 %v1606
    %4000 = vmatpush.msra.mxu0 %v1605
    %4001 = vmatpush.msra.mxu0 %v1604
    %4002 = vmatpush.msra.mxu0 %v1603
    %4003 = vmatpush.msra.mxu0 %v1602
    %4004 = vmatpush.msra.mxu0 %v1601
    %4005 = vmatpush.msra.mxu0 %v1600
    %4006 = vmatpush.msra.mxu0 %v1599
    %4007 = vmatpush.msra.mxu0 %v1598
    %4008 = vmatpush.msra.mxu0 %v1597
    %4009 = vmatmul.f32.gmra.mxu0 %v179
    %v4010 = vpop.f32.mrf.mxu0
    %v4011 = vadd.f32 %v3991, %v4010
    %4012 = vdwg.mxu0
    %4013 = vmatpush.msra.mxu0 %v1628
    %4014 = vmatpush.msra.mxu0 %v1627
    %4015 = vmatpush.msra.mxu0 %v1626
    %4016 = vmatpush.msra.mxu0 %v1625
    %4017 = vmatpush.msra.mxu0 %v1624
    %4018 = vmatpush.msra.mxu0 %v1623
    %4019 = vmatpush.msra.mxu0 %v1622
    %4020 = vmatpush.msra.mxu0 %v1621
    %4021 = vmatpush.msra.mxu0 %v1620
    %4022 = vmatpush.msra.mxu0 %v1619
    %4023 = vmatpush.msra.mxu0 %v1618
    %4024 = vmatpush.msra.mxu0 %v1617
    %4025 = vmatpush.msra.mxu0 %v1616
    %4026 = vmatpush.msra.mxu0 %v1615
    %4027 = vmatpush.msra.mxu0 %v1614
    %4028 = vmatpush.msra.mxu0 %v1613
    %4029 = vmatmul.f32.gmra.mxu0 %v180
    %v4030 = vpop.f32.mrf.mxu0
    %v4031 = vadd.f32 %v4011, %v4030
    %4032 = vdwg.mxu0
    %4033 = vmatpush.msra.mxu0 %v1644
    %4034 = vmatpush.msra.mxu0 %v1643
    %4035 = vmatpush.msra.mxu0 %v1642
    %4036 = vmatpush.msra.mxu0 %v1641
    %4037 = vmatpush.msra.mxu0 %v1640
    %4038 = vmatpush.msra.mxu0 %v1639
    %4039 = vmatpush.msra.mxu0 %v1638
    %4040 = vmatpush.msra.mxu0 %v1637
    %4041 = vmatpush.msra.mxu0 %v1636
    %4042 = vmatpush.msra.mxu0 %v1635
    %4043 = vmatpush.msra.mxu0 %v1634
    %4044 = vmatpush.msra.mxu0 %v1633
    %4045 = vmatpush.msra.mxu0 %v1632
    %4046 = vmatpush.msra.mxu0 %v1631
    %4047 = vmatpush.msra.mxu0 %v1630
    %4048 = vmatpush.msra.mxu0 %v1629
    %4049 = vmatmul.f32.gmra.mxu0 %v181
    %v4050 = vpop.f32.mrf.mxu0
    %v4051 = vadd.f32 %v4031, %v4050
    %4052 = vdwg.mxu0
    %4053 = vmatpush.msra.mxu0 %v1660
    %4054 = vmatpush.msra.mxu0 %v1659
    %4055 = vmatpush.msra.mxu0 %v1658
    %4056 = vmatpush.msra.mxu0 %v1657
    %4057 = vmatpush.msra.mxu0 %v1656
    %4058 = vmatpush.msra.mxu0 %v1655
    %4059 = vmatpush.msra.mxu0 %v1654
    %4060 = vmatpush.msra.mxu0 %v1653
    %4061 = vmatpush.msra.mxu0 %v1652
    %4062 = vmatpush.msra.mxu0 %v1651
    %4063 = vmatpush.msra.mxu0 %v1650
    %4064 = vmatpush.msra.mxu0 %v1649
    %4065 = vmatpush.msra.mxu0 %v1648
    %4066 = vmatpush.msra.mxu0 %v1647
    %4067 = vmatpush.msra.mxu0 %v1646
    %4068 = vmatpush.msra.mxu0 %v1645
    %4069 = vmatmul.f32.gmra.mxu0 %v182
    %v4070 = vpop.f32.mrf.mxu0
    %v4071 = vadd.f32 %v4051, %v4070
    %4072 = vdwg.mxu0
    %4073 = vmatpush.msra.mxu0 %v1676
    %4074 = vmatpush.msra.mxu0 %v1675
    %4075 = vmatpush.msra.mxu0 %v1674
    %4076 = vmatpush.msra.mxu0 %v1673
    %4077 = vmatpush.msra.mxu0 %v1672
    %4078 = vmatpush.msra.mxu0 %v1671
    %4079 = vmatpush.msra.mxu0 %v1670
    %4080 = vmatpush.msra.mxu0 %v1669
    %4081 = vmatpush.msra.mxu0 %v1668
    %4082 = vmatpush.msra.mxu0 %v1667
    %4083 = vmatpush.msra.mxu0 %v1666
    %4084 = vmatpush.msra.mxu0 %v1665
    %4085 = vmatpush.msra.mxu0 %v1664
    %4086 = vmatpush.msra.mxu0 %v1663
    %4087 = vmatpush.msra.mxu0 %v1662
    %4088 = vmatpush.msra.mxu0 %v1661
    %4089 = vmatmul.f32.gmra.mxu0 %v183
    %v4090 = vpop.f32.mrf.mxu0
    %v4091 = vadd.f32 %v4071, %v4090
    %4092 = vdwg.mxu0
    %4093 = vmatpush.msra.mxu0 %v1692
    %4094 = vmatpush.msra.mxu0 %v1691
    %4095 = vmatpush.msra.mxu0 %v1690
    %4096 = vmatpush.msra.mxu0 %v1689
    %4097 = vmatpush.msra.mxu0 %v1688
    %4098 = vmatpush.msra.mxu0 %v1687
    %4099 = vmatpush.msra.mxu0 %v1686
    %4100 = vmatpush.msra.mxu0 %v1685
    %4101 = vmatpush.msra.mxu0 %v1684
    %4102 = vmatpush.msra.mxu0 %v1683
    %4103 = vmatpush.msra.mxu0 %v1682
    %4104 = vmatpush.msra.mxu0 %v1681
    %4105 = vmatpush.msra.mxu0 %v1680
    %4106 = vmatpush.msra.mxu0 %v1679
    %4107 = vmatpush.msra.mxu0 %v1678
    %4108 = vmatpush.msra.mxu0 %v1677
    %4109 = vmatmul.f32.gmra.mxu0 %v184
    %v4110 = vpop.f32.mrf.mxu0
    %v4111 = vadd.f32 %v4091, %v4110
    %4112 = vdwg.mxu0
    %4113 = vmatpush.msra.mxu0 %v1708
    %4114 = vmatpush.msra.mxu0 %v1707
    %4115 = vmatpush.msra.mxu0 %v1706
    %4116 = vmatpush.msra.mxu0 %v1705
    %4117 = vmatpush.msra.mxu0 %v1704
    %4118 = vmatpush.msra.mxu0 %v1703
    %4119 = vmatpush.msra.mxu0 %v1702
    %4120 = vmatpush.msra.mxu0 %v1701
    %4121 = vmatpush.msra.mxu0 %v1700
    %4122 = vmatpush.msra.mxu0 %v1699
    %4123 = vmatpush.msra.mxu0 %v1698
    %4124 = vmatpush.msra.mxu0 %v1697
    %4125 = vmatpush.msra.mxu0 %v1696
    %4126 = vmatpush.msra.mxu0 %v1695
    %4127 = vmatpush.msra.mxu0 %v1694
    %4128 = vmatpush.msra.mxu0 %v1693
    %4129 = vmatmul.f32.gmra.mxu0 %v185
    %v4130 = vpop.f32.mrf.mxu0
    %v4131 = vadd.f32 %v4111, %v4130
    %4132 = vdwg.mxu0
    %4133 = vmatpush.msra.mxu0 %v1724
    %4134 = vmatpush.msra.mxu0 %v1723
    %4135 = vmatpush.msra.mxu0 %v1722
    %4136 = vmatpush.msra.mxu0 %v1721
    %4137 = vmatpush.msra.mxu0 %v1720
    %4138 = vmatpush.msra.mxu0 %v1719
    %4139 = vmatpush.msra.mxu0 %v1718
    %4140 = vmatpush.msra.mxu0 %v1717
    %4141 = vmatpush.msra.mxu0 %v1716
    %4142 = vmatpush.msra.mxu0 %v1715
    %4143 = vmatpush.msra.mxu0 %v1714
    %4144 = vmatpush.msra.mxu0 %v1713
    %4145 = vmatpush.msra.mxu0 %v1712
    %4146 = vmatpush.msra.mxu0 %v1711
    %4147 = vmatpush.msra.mxu0 %v1710
    %4148 = vmatpush.msra.mxu0 %v1709
    %4149 = vmatmul.f32.gmra.mxu0 %v186
    %v4150 = vpop.f32.mrf.mxu0
    %v4151 = vadd.f32 %v4131, %v4150
    %4152 = vdwg.mxu0
    %4153 = vmatpush.msra.mxu0 %v1740
    %4154 = vmatpush.msra.mxu0 %v1739
    %4155 = vmatpush.msra.mxu0 %v1738
    %4156 = vmatpush.msra.mxu0 %v1737
    %4157 = vmatpush.msra.mxu0 %v1736
    %4158 = vmatpush.msra.mxu0 %v1735
    %4159 = vmatpush.msra.mxu0 %v1734
    %4160 = vmatpush.msra.mxu0 %v1733
    %4161 = vmatpush.msra.mxu0 %v1732
    %4162 = vmatpush.msra.mxu0 %v1731
    %4163 = vmatpush.msra.mxu0 %v1730
    %4164 = vmatpush.msra.mxu0 %v1729
    %4165 = vmatpush.msra.mxu0 %v1728
    %4166 = vmatpush.msra.mxu0 %v1727
    %4167 = vmatpush.msra.mxu0 %v1726
    %4168 = vmatpush.msra.mxu0 %v1725
    %4169 = vmatmul.f32.gmra.mxu0 %v187
    %v4170 = vpop.f32.mrf.mxu0
    %v4171 = vadd.f32 %v4151, %v4170
    %4172 = vdwg.mxu0
    %4173 = vmatpush.msra.mxu0 %v1756
    %4174 = vmatpush.msra.mxu0 %v1755
    %4175 = vmatpush.msra.mxu0 %v1754
    %4176 = vmatpush.msra.mxu0 %v1753
    %4177 = vmatpush.msra.mxu0 %v1752
    %4178 = vmatpush.msra.mxu0 %v1751
    %4179 = vmatpush.msra.mxu0 %v1750
    %4180 = vmatpush.msra.mxu0 %v1749
    %4181 = vmatpush.msra.mxu0 %v1748
    %4182 = vmatpush.msra.mxu0 %v1747
    %4183 = vmatpush.msra.mxu0 %v1746
    %4184 = vmatpush.msra.mxu0 %v1745
    %4185 = vmatpush.msra.mxu0 %v1744
    %4186 = vmatpush.msra.mxu0 %v1743
    %4187 = vmatpush.msra.mxu0 %v1742
    %4188 = vmatpush.msra.mxu0 %v1741
    %4189 = vmatmul.f32.gmra.mxu0 %v188
    %v4190 = vpop.f32.mrf.mxu0
    %v4191 = vadd.f32 %v4171, %v4190
    %4192 = vdwg.mxu0
    %4193 = vmatpush.msra.mxu0 %v1772
    %4194 = vmatpush.msra.mxu0 %v1771
    %4195 = vmatpush.msra.mxu0 %v1770
    %4196 = vmatpush.msra.mxu0 %v1769
    %4197 = vmatpush.msra.mxu0 %v1768
    %4198 = vmatpush.msra.mxu0 %v1767
    %4199 = vmatpush.msra.mxu0 %v1766
    %4200 = vmatpush.msra.mxu0 %v1765
    %4201 = vmatpush.msra.mxu0 %v1764
    %4202 = vmatpush.msra.mxu0 %v1763
    %4203 = vmatpush.msra.mxu0 %v1762
    %4204 = vmatpush.msra.mxu0 %v1761
    %4205 = vmatpush.msra.mxu0 %v1760
    %4206 = vmatpush.msra.mxu0 %v1759
    %4207 = vmatpush.msra.mxu0 %v1758
    %4208 = vmatpush.msra.mxu0 %v1757
    %4209 = vmatmul.f32.gmra.mxu0 %v189
    %v4210 = vpop.f32.mrf.mxu0
    %v4211 = vadd.f32 %v4191, %v4210
    %4212 = vdwg.mxu0
    %4213 = vmatpush.msra.mxu0 %v1788
    %4214 = vmatpush.msra.mxu0 %v1787
    %4215 = vmatpush.msra.mxu0 %v1786
    %4216 = vmatpush.msra.mxu0 %v1785
    %4217 = vmatpush.msra.mxu0 %v1784
    %4218 = vmatpush.msra.mxu0 %v1783
    %4219 = vmatpush.msra.mxu0 %v1782
    %4220 = vmatpush.msra.mxu0 %v1781
    %4221 = vmatpush.msra.mxu0 %v1780
    %4222 = vmatpush.msra.mxu0 %v1779
    %4223 = vmatpush.msra.mxu0 %v1778
    %4224 = vmatpush.msra.mxu0 %v1777
    %4225 = vmatpush.msra.mxu0 %v1776
    %4226 = vmatpush.msra.mxu0 %v1775
    %4227 = vmatpush.msra.mxu0 %v1774
    %4228 = vmatpush.msra.mxu0 %v1773
    %4229 = vmatmul.f32.gmra.mxu0 %v190
    %v4230 = vpop.f32.mrf.mxu0
    %v4231 = vadd.f32 %v4211, %v4230
    %4232 = vdwg.mxu0
    %4233 = vmatpush.msra.mxu0 %v1804
    %4234 = vmatpush.msra.mxu0 %v1803
    %4235 = vmatpush.msra.mxu0 %v1802
    %4236 = vmatpush.msra.mxu0 %v1801
    %4237 = vmatpush.msra.mxu0 %v1800
    %4238 = vmatpush.msra.mxu0 %v1799
    %4239 = vmatpush.msra.mxu0 %v1798
    %4240 = vmatpush.msra.mxu0 %v1797
    %4241 = vmatpush.msra.mxu0 %v1796
    %4242 = vmatpush.msra.mxu0 %v1795
    %4243 = vmatpush.msra.mxu0 %v1794
    %4244 = vmatpush.msra.mxu0 %v1793
    %4245 = vmatpush.msra.mxu0 %v1792
    %4246 = vmatpush.msra.mxu0 %v1791
    %4247 = vmatpush.msra.mxu0 %v1790
    %4248 = vmatpush.msra.mxu0 %v1789
    %4249 = vmatmul.f32.gmra.mxu0 %v191
    %v4250 = vpop.f32.mrf.mxu0
    %v4251 = vadd.f32 %v4231, %v4250
    %4252 = vdwg.mxu0
    %4253 = vmatpush.msra.mxu0 %v1820
    %4254 = vmatpush.msra.mxu0 %v1819
    %4255 = vmatpush.msra.mxu0 %v1818
    %4256 = vmatpush.msra.mxu0 %v1817
    %4257 = vmatpush.msra.mxu0 %v1816
    %4258 = vmatpush.msra.mxu0 %v1815
    %4259 = vmatpush.msra.mxu0 %v1814
    %4260 = vmatpush.msra.mxu0 %v1813
    %4261 = vmatpush.msra.mxu0 %v1812
    %4262 = vmatpush.msra.mxu0 %v1811
    %4263 = vmatpush.msra.mxu0 %v1810
    %4264 = vmatpush.msra.mxu0 %v1809
    %4265 = vmatpush.msra.mxu0 %v1808
    %4266 = vmatpush.msra.mxu0 %v1807
    %4267 = vmatpush.msra.mxu0 %v1806
    %4268 = vmatpush.msra.mxu0 %v1805
    %4269 = vmatmul.f32.gmra.mxu0 %v192
    %v4270 = vpop.f32.mrf.mxu0
    %v4271 = vadd.f32 %v4251, %v4270
    %4272 = vdwg.mxu0
    %4273 = vmatpush.msra.mxu0 %v1836
    %4274 = vmatpush.msra.mxu0 %v1835
    %4275 = vmatpush.msra.mxu0 %v1834
    %4276 = vmatpush.msra.mxu0 %v1833
    %4277 = vmatpush.msra.mxu0 %v1832
    %4278 = vmatpush.msra.mxu0 %v1831
    %4279 = vmatpush.msra.mxu0 %v1830
    %4280 = vmatpush.msra.mxu0 %v1829
    %4281 = vmatpush.msra.mxu0 %v1828
    %4282 = vmatpush.msra.mxu0 %v1827
    %4283 = vmatpush.msra.mxu0 %v1826
    %4284 = vmatpush.msra.mxu0 %v1825
    %4285 = vmatpush.msra.mxu0 %v1824
    %4286 = vmatpush.msra.mxu0 %v1823
    %4287 = vmatpush.msra.mxu0 %v1822
    %4288 = vmatpush.msra.mxu0 %v1821
    %4289 = vmatmul.f32.gmra.mxu0 %v193
    %v4290 = vpop.f32.mrf.mxu0
    %v4291 = vadd.f32 %v4271, %v4290
    %4292 = vdwg.mxu0
    %4293 = vmatpush.msra.mxu0 %v1852
    %4294 = vmatpush.msra.mxu0 %v1851
    %4295 = vmatpush.msra.mxu0 %v1850
    %4296 = vmatpush.msra.mxu0 %v1849
    %4297 = vmatpush.msra.mxu0 %v1848
    %4298 = vmatpush.msra.mxu0 %v1847
    %4299 = vmatpush.msra.mxu0 %v1846
    %4300 = vmatpush.msra.mxu0 %v1845
    %4301 = vmatpush.msra.mxu0 %v1844
    %4302 = vmatpush.msra.mxu0 %v1843
    %4303 = vmatpush.msra.mxu0 %v1842
    %4304 = vmatpush.msra.mxu0 %v1841
    %4305 = vmatpush.msra.mxu0 %v1840
    %4306 = vmatpush.msra.mxu0 %v1839
    %4307 = vmatpush.msra.mxu0 %v1838
    %4308 = vmatpush.msra.mxu0 %v1837
    %4309 = vmatmul.f32.gmra.mxu0 %v194
    %v4310 = vpop.f32.mrf.mxu0
    %v4311 = vadd.f32 %v4291, %v4310
    %4312 = vdwg.mxu0
    %4313 = vmatpush.msra.mxu0 %v1868
    %4314 = vmatpush.msra.mxu0 %v1867
    %4315 = vmatpush.msra.mxu0 %v1866
    %4316 = vmatpush.msra.mxu0 %v1865
    %4317 = vmatpush.msra.mxu0 %v1864
    %4318 = vmatpush.msra.mxu0 %v1863
    %4319 = vmatpush.msra.mxu0 %v1862
    %4320 = vmatpush.msra.mxu0 %v1861
    %4321 = vmatpush.msra.mxu0 %v1860
    %4322 = vmatpush.msra.mxu0 %v1859
    %4323 = vmatpush.msra.mxu0 %v1858
    %4324 = vmatpush.msra.mxu0 %v1857
    %4325 = vmatpush.msra.mxu0 %v1856
    %4326 = vmatpush.msra.mxu0 %v1855
    %4327 = vmatpush.msra.mxu0 %v1854
    %4328 = vmatpush.msra.mxu0 %v1853
    %4329 = vmatmul.f32.gmra.mxu0 %v195
    %v4330 = vpop.f32.mrf.mxu0
    %v4331 = vadd.f32 %v4311, %v4330
    %4332 = vdwg.mxu0
    %4333 = vmatpush.msra.mxu0 %v1884
    %4334 = vmatpush.msra.mxu0 %v1883
    %4335 = vmatpush.msra.mxu0 %v1882
    %4336 = vmatpush.msra.mxu0 %v1881
    %4337 = vmatpush.msra.mxu0 %v1880
    %4338 = vmatpush.msra.mxu0 %v1879
    %4339 = vmatpush.msra.mxu0 %v1878
    %4340 = vmatpush.msra.mxu0 %v1877
    %4341 = vmatpush.msra.mxu0 %v1876
    %4342 = vmatpush.msra.mxu0 %v1875
    %4343 = vmatpush.msra.mxu0 %v1874
    %4344 = vmatpush.msra.mxu0 %v1873
    %4345 = vmatpush.msra.mxu0 %v1872
    %4346 = vmatpush.msra.mxu0 %v1871
    %4347 = vmatpush.msra.mxu0 %v1870
    %4348 = vmatpush.msra.mxu0 %v1869
    %4349 = vmatmul.f32.gmra.mxu0 %v196
    %v4350 = vpop.f32.mrf.mxu0
    %v4351 = vadd.f32 %v4331, %v4350
    %4352 = vdwg.mxu0
    %4353 = vmatpush.msra.mxu0 %v1900
    %4354 = vmatpush.msra.mxu0 %v1899
    %4355 = vmatpush.msra.mxu0 %v1898
    %4356 = vmatpush.msra.mxu0 %v1897
    %4357 = vmatpush.msra.mxu0 %v1896
    %4358 = vmatpush.msra.mxu0 %v1895
    %4359 = vmatpush.msra.mxu0 %v1894
    %4360 = vmatpush.msra.mxu0 %v1893
    %4361 = vmatpush.msra.mxu0 %v1892
    %4362 = vmatpush.msra.mxu0 %v1891
    %4363 = vmatpush.msra.mxu0 %v1890
    %4364 = vmatpush.msra.mxu0 %v1889
    %4365 = vmatpush.msra.mxu0 %v1888
    %4366 = vmatpush.msra.mxu0 %v1887
    %4367 = vmatpush.msra.mxu0 %v1886
    %4368 = vmatpush.msra.mxu0 %v1885
    %4369 = vmatmul.f32.gmra.mxu0 %v197
    %v4370 = vpop.f32.mrf.mxu0
    %v4371 = vadd.f32 %v4351, %v4370
    %4372 = vdwg.mxu0
    %4373 = vmatpush.msra.mxu0 %v1916
    %4374 = vmatpush.msra.mxu0 %v1915
    %4375 = vmatpush.msra.mxu0 %v1914
    %4376 = vmatpush.msra.mxu0 %v1913
    %4377 = vmatpush.msra.mxu0 %v1912
    %4378 = vmatpush.msra.mxu0 %v1911
    %4379 = vmatpush.msra.mxu0 %v1910
    %4380 = vmatpush.msra.mxu0 %v1909
    %4381 = vmatpush.msra.mxu0 %v1908
    %4382 = vmatpush.msra.mxu0 %v1907
    %4383 = vmatpush.msra.mxu0 %v1906
    %4384 = vmatpush.msra.mxu0 %v1905
    %4385 = vmatpush.msra.mxu0 %v1904
    %4386 = vmatpush.msra.mxu0 %v1903
    %4387 = vmatpush.msra.mxu0 %v1902
    %4388 = vmatpush.msra.mxu0 %v1901
    %4389 = vmatmul.f32.gmra.mxu0 %v198
    %v4390 = vpop.f32.mrf.mxu0
    %v4391 = vadd.f32 %v4371, %v4390
    %4392 = vdwg.mxu0
    %4393 = vmatpush.msra.mxu0 %v1932
    %4394 = vmatpush.msra.mxu0 %v1931
    %4395 = vmatpush.msra.mxu0 %v1930
    %4396 = vmatpush.msra.mxu0 %v1929
    %4397 = vmatpush.msra.mxu0 %v1928
    %4398 = vmatpush.msra.mxu0 %v1927
    %4399 = vmatpush.msra.mxu0 %v1926
    %4400 = vmatpush.msra.mxu0 %v1925
    %4401 = vmatpush.msra.mxu0 %v1924
    %4402 = vmatpush.msra.mxu0 %v1923
    %4403 = vmatpush.msra.mxu0 %v1922
    %4404 = vmatpush.msra.mxu0 %v1921
    %4405 = vmatpush.msra.mxu0 %v1920
    %4406 = vmatpush.msra.mxu0 %v1919
    %4407 = vmatpush.msra.mxu0 %v1918
    %4408 = vmatpush.msra.mxu0 %v1917
    %4409 = vmatmul.f32.gmra.mxu0 %v199
    %v4410 = vpop.f32.mrf.mxu0
    %v4411 = vadd.f32 %v4391, %v4410
    %4412 = vdwg.mxu0
    %4413 = vmatpush.msra.mxu0 %v1948
    %4414 = vmatpush.msra.mxu0 %v1947
    %4415 = vmatpush.msra.mxu0 %v1946
    %4416 = vmatpush.msra.mxu0 %v1945
    %4417 = vmatpush.msra.mxu0 %v1944
    %4418 = vmatpush.msra.mxu0 %v1943
    %4419 = vmatpush.msra.mxu0 %v1942
    %4420 = vmatpush.msra.mxu0 %v1941
    %4421 = vmatpush.msra.mxu0 %v1940
    %4422 = vmatpush.msra.mxu0 %v1939
    %4423 = vmatpush.msra.mxu0 %v1938
    %4424 = vmatpush.msra.mxu0 %v1937
    %4425 = vmatpush.msra.mxu0 %v1936
    %4426 = vmatpush.msra.mxu0 %v1935
    %4427 = vmatpush.msra.mxu0 %v1934
    %4428 = vmatpush.msra.mxu0 %v1933
    %4429 = vmatmul.f32.gmra.mxu0 %v200
    %v4430 = vpop.f32.mrf.mxu0
    %v4431 = vadd.f32 %v4411, %v4430
    %4432 = vdwg.mxu0
    %4433 = vmatpush.msra.mxu0 %v1964
    %4434 = vmatpush.msra.mxu0 %v1963
    %4435 = vmatpush.msra.mxu0 %v1962
    %4436 = vmatpush.msra.mxu0 %v1961
    %4437 = vmatpush.msra.mxu0 %v1960
    %4438 = vmatpush.msra.mxu0 %v1959
    %4439 = vmatpush.msra.mxu0 %v1958
    %4440 = vmatpush.msra.mxu0 %v1957
    %4441 = vmatpush.msra.mxu0 %v1956
    %4442 = vmatpush.msra.mxu0 %v1955
    %4443 = vmatpush.msra.mxu0 %v1954
    %4444 = vmatpush.msra.mxu0 %v1953
    %4445 = vmatpush.msra.mxu0 %v1952
    %4446 = vmatpush.msra.mxu0 %v1951
    %4447 = vmatpush.msra.mxu0 %v1950
    %4448 = vmatpush.msra.mxu0 %v1949
    %4449 = vmatmul.f32.gmra.mxu0 %v201
    %v4450 = vpop.f32.mrf.mxu0
    %v4451 = vadd.f32 %v4431, %v4450
    %4452 = vdwg.mxu0
    %4453 = vmatpush.msra.mxu0 %v1980
    %4454 = vmatpush.msra.mxu0 %v1979
    %4455 = vmatpush.msra.mxu0 %v1978
    %4456 = vmatpush.msra.mxu0 %v1977
    %4457 = vmatpush.msra.mxu0 %v1976
    %4458 = vmatpush.msra.mxu0 %v1975
    %4459 = vmatpush.msra.mxu0 %v1974
    %4460 = vmatpush.msra.mxu0 %v1973
    %4461 = vmatpush.msra.mxu0 %v1972
    %4462 = vmatpush.msra.mxu0 %v1971
    %4463 = vmatpush.msra.mxu0 %v1970
    %4464 = vmatpush.msra.mxu0 %v1969
    %4465 = vmatpush.msra.mxu0 %v1968
    %4466 = vmatpush.msra.mxu0 %v1967
    %4467 = vmatpush.msra.mxu0 %v1966
    %4468 = vmatpush.msra.mxu0 %v1965
    %4469 = vmatmul.f32.gmra.mxu0 %v202
    %v4470 = vpop.f32.mrf.mxu0
    %v4471 = vadd.f32 %v4451, %v4470
    %4472 = vdwg.mxu0
    %4473 = vmatpush.msra.mxu0 %v1996
    %4474 = vmatpush.msra.mxu0 %v1995
    %4475 = vmatpush.msra.mxu0 %v1994
    %4476 = vmatpush.msra.mxu0 %v1993
    %4477 = vmatpush.msra.mxu0 %v1992
    %4478 = vmatpush.msra.mxu0 %v1991
    %4479 = vmatpush.msra.mxu0 %v1990
    %4480 = vmatpush.msra.mxu0 %v1989
    %4481 = vmatpush.msra.mxu0 %v1988
    %4482 = vmatpush.msra.mxu0 %v1987
    %4483 = vmatpush.msra.mxu0 %v1986
    %4484 = vmatpush.msra.mxu0 %v1985
    %4485 = vmatpush.msra.mxu0 %v1984
    %4486 = vmatpush.msra.mxu0 %v1983
    %4487 = vmatpush.msra.mxu0 %v1982
    %4488 = vmatpush.msra.mxu0 %v1981
    %4489 = vmatmul.f32.gmra.mxu0 %v203
    %v4490 = vpop.f32.mrf.mxu0
    %v4491 = vadd.f32 %v4471, %v4490
    %4492 = vdwg.mxu0
    %4493 = vmatpush.msra.mxu0 %v2012
    %4494 = vmatpush.msra.mxu0 %v2011
    %4495 = vmatpush.msra.mxu0 %v2010
    %4496 = vmatpush.msra.mxu0 %v2009
    %4497 = vmatpush.msra.mxu0 %v2008
    %4498 = vmatpush.msra.mxu0 %v2007
    %4499 = vmatpush.msra.mxu0 %v2006
    %4500 = vmatpush.msra.mxu0 %v2005
    %4501 = vmatpush.msra.mxu0 %v2004
    %4502 = vmatpush.msra.mxu0 %v2003
    %4503 = vmatpush.msra.mxu0 %v2002
    %4504 = vmatpush.msra.mxu0 %v2001
    %4505 = vmatpush.msra.mxu0 %v2000
    %4506 = vmatpush.msra.mxu0 %v1999
    %4507 = vmatpush.msra.mxu0 %v1998
    %4508 = vmatpush.msra.mxu0 %v1997
    %4509 = vmatmul.f32.gmra.mxu0 %v204
    %v4510 = vpop.f32.mrf.mxu0
    %v4511 = vadd.f32 %v4491, %v4510
    %4512 = vdwg.mxu0
    %4513 = vmatpush.msra.mxu0 %v2028
    %4514 = vmatpush.msra.mxu0 %v2027
    %4515 = vmatpush.msra.mxu0 %v2026
    %4516 = vmatpush.msra.mxu0 %v2025
    %4517 = vmatpush.msra.mxu0 %v2024
    %4518 = vmatpush.msra.mxu0 %v2023
    %4519 = vmatpush.msra.mxu0 %v2022
    %4520 = vmatpush.msra.mxu0 %v2021
    %4521 = vmatpush.msra.mxu0 %v2020
    %4522 = vmatpush.msra.mxu0 %v2019
    %4523 = vmatpush.msra.mxu0 %v2018
    %4524 = vmatpush.msra.mxu0 %v2017
    %4525 = vmatpush.msra.mxu0 %v2016
    %4526 = vmatpush.msra.mxu0 %v2015
    %4527 = vmatpush.msra.mxu0 %v2014
    %4528 = vmatpush.msra.mxu0 %v2013
    %4529 = vmatmul.f32.gmra.mxu0 %v205
    %v4530 = vpop.f32.mrf.mxu0
    %v4531 = vadd.f32 %v4511, %v4530
    %4532 = vdwg.mxu0
    %4533 = vmatpush.msra.mxu0 %v2044
    %4534 = vmatpush.msra.mxu0 %v2043
    %4535 = vmatpush.msra.mxu0 %v2042
    %4536 = vmatpush.msra.mxu0 %v2041
    %4537 = vmatpush.msra.mxu0 %v2040
    %4538 = vmatpush.msra.mxu0 %v2039
    %4539 = vmatpush.msra.mxu0 %v2038
    %4540 = vmatpush.msra.mxu0 %v2037
    %4541 = vmatpush.msra.mxu0 %v2036
    %4542 = vmatpush.msra.mxu0 %v2035
    %4543 = vmatpush.msra.mxu0 %v2034
    %4544 = vmatpush.msra.mxu0 %v2033
    %4545 = vmatpush.msra.mxu0 %v2032
    %4546 = vmatpush.msra.mxu0 %v2031
    %4547 = vmatpush.msra.mxu0 %v2030
    %4548 = vmatpush.msra.mxu0 %v2029
    %4549 = vmatmul.f32.gmra.mxu0 %v206
    %v4550 = vpop.f32.mrf.mxu0
    %v4551 = vadd.f32 %v4531, %v4550
    %4552 = vdwg.mxu0
    %4553 = vmatpush.msra.mxu0 %v2060
    %4554 = vmatpush.msra.mxu0 %v2059
    %4555 = vmatpush.msra.mxu0 %v2058
    %4556 = vmatpush.msra.mxu0 %v2057
    %4557 = vmatpush.msra.mxu0 %v2056
    %4558 = vmatpush.msra.mxu0 %v2055
    %4559 = vmatpush.msra.mxu0 %v2054
    %4560 = vmatpush.msra.mxu0 %v2053
    %4561 = vmatpush.msra.mxu0 %v2052
    %4562 = vmatpush.msra.mxu0 %v2051
    %4563 = vmatpush.msra.mxu0 %v2050
    %4564 = vmatpush.msra.mxu0 %v2049
    %4565 = vmatpush.msra.mxu0 %v2048
    %4566 = vmatpush.msra.mxu0 %v2047
    %4567 = vmatpush.msra.mxu0 %v2046
    %4568 = vmatpush.msra.mxu0 %v2045
    %4569 = vmatmul.f32.gmra.mxu0 %v207
    %v4570 = vpop.f32.mrf.mxu0
    %v4571 = vadd.f32 %v4551, %v4570
    %4572 = vdwg.mxu0
    %4573 = vmatpush.msra.mxu0 %v2076
    %4574 = vmatpush.msra.mxu0 %v2075
    %4575 = vmatpush.msra.mxu0 %v2074
    %4576 = vmatpush.msra.mxu0 %v2073
    %4577 = vmatpush.msra.mxu0 %v2072
    %4578 = vmatpush.msra.mxu0 %v2071
    %4579 = vmatpush.msra.mxu0 %v2070
    %4580 = vmatpush.msra.mxu0 %v2069
    %4581 = vmatpush.msra.mxu0 %v2068
    %4582 = vmatpush.msra.mxu0 %v2067
    %4583 = vmatpush.msra.mxu0 %v2066
    %4584 = vmatpush.msra.mxu0 %v2065
    %4585 = vmatpush.msra.mxu0 %v2064
    %4586 = vmatpush.msra.mxu0 %v2063
    %4587 = vmatpush.msra.mxu0 %v2062
    %4588 = vmatpush.msra.mxu0 %v2061
    %4589 = vmatmul.f32.gmra.mxu0 %v208
    %v4590 = vpop.f32.mrf.mxu0
    %v4591 = vadd.f32 %v4571, %v4590
    %4592 = vdwg.mxu0
    %4593 = vmatpush.msra.mxu0 %v2092
    %4594 = vmatpush.msra.mxu0 %v2091
    %4595 = vmatpush.msra.mxu0 %v2090
    %4596 = vmatpush.msra.mxu0 %v2089
    %4597 = vmatpush.msra.mxu0 %v2088
    %4598 = vmatpush.msra.mxu0 %v2087
    %4599 = vmatpush.msra.mxu0 %v2086
    %4600 = vmatpush.msra.mxu0 %v2085
    %4601 = vmatpush.msra.mxu0 %v2084
    %4602 = vmatpush.msra.mxu0 %v2083
    %4603 = vmatpush.msra.mxu0 %v2082
    %4604 = vmatpush.msra.mxu0 %v2081
    %4605 = vmatpush.msra.mxu0 %v2080
    %4606 = vmatpush.msra.mxu0 %v2079
    %4607 = vmatpush.msra.mxu0 %v2078
    %4608 = vmatpush.msra.mxu0 %v2077
    %4609 = vmatmul.f32.gmra.mxu0 %v209
    %v4610 = vpop.f32.mrf.mxu0
    %v4611 = vadd.f32 %v4591, %v4610
    %4612 = vdwg.mxu0
    %4613 = vmatpush.msra.mxu0 %v2108
    %4614 = vmatpush.msra.mxu0 %v2107
    %4615 = vmatpush.msra.mxu0 %v2106
    %4616 = vmatpush.msra.mxu0 %v2105
    %4617 = vmatpush.msra.mxu0 %v2104
    %4618 = vmatpush.msra.mxu0 %v2103
    %4619 = vmatpush.msra.mxu0 %v2102
    %4620 = vmatpush.msra.mxu0 %v2101
    %4621 = vmatpush.msra.mxu0 %v2100
    %4622 = vmatpush.msra.mxu0 %v2099
    %4623 = vmatpush.msra.mxu0 %v2098
    %4624 = vmatpush.msra.mxu0 %v2097
    %4625 = vmatpush.msra.mxu0 %v2096
    %4626 = vmatpush.msra.mxu0 %v2095
    %4627 = vmatpush.msra.mxu0 %v2094
    %4628 = vmatpush.msra.mxu0 %v2093
    %4629 = vmatmul.f32.gmra.mxu0 %v210
    %v4630 = vpop.f32.mrf.mxu0
    %v4631 = vadd.f32 %v4611, %v4630
    %4632 = vdwg.mxu0
    %4633 = vmatpush.msra.mxu0 %v2124
    %4634 = vmatpush.msra.mxu0 %v2123
    %4635 = vmatpush.msra.mxu0 %v2122
    %4636 = vmatpush.msra.mxu0 %v2121
    %4637 = vmatpush.msra.mxu0 %v2120
    %4638 = vmatpush.msra.mxu0 %v2119
    %4639 = vmatpush.msra.mxu0 %v2118
    %4640 = vmatpush.msra.mxu0 %v2117
    %4641 = vmatpush.msra.mxu0 %v2116
    %4642 = vmatpush.msra.mxu0 %v2115
    %4643 = vmatpush.msra.mxu0 %v2114
    %4644 = vmatpush.msra.mxu0 %v2113
    %4645 = vmatpush.msra.mxu0 %v2112
    %4646 = vmatpush.msra.mxu0 %v2111
    %4647 = vmatpush.msra.mxu0 %v2110
    %4648 = vmatpush.msra.mxu0 %v2109
    %4649 = vmatmul.f32.gmra.mxu0 %v211
    %v4650 = vpop.f32.mrf.mxu0
    %v4651 = vadd.f32 %v4631, %v4650
    %4652 = vdwg.mxu0
    %4653 = vmatpush.msra.mxu0 %v2140
    %4654 = vmatpush.msra.mxu0 %v2139
    %4655 = vmatpush.msra.mxu0 %v2138
    %4656 = vmatpush.msra.mxu0 %v2137
    %4657 = vmatpush.msra.mxu0 %v2136
    %4658 = vmatpush.msra.mxu0 %v2135
    %4659 = vmatpush.msra.mxu0 %v2134
    %4660 = vmatpush.msra.mxu0 %v2133
    %4661 = vmatpush.msra.mxu0 %v2132
    %4662 = vmatpush.msra.mxu0 %v2131
    %4663 = vmatpush.msra.mxu0 %v2130
    %4664 = vmatpush.msra.mxu0 %v2129
    %4665 = vmatpush.msra.mxu0 %v2128
    %4666 = vmatpush.msra.mxu0 %v2127
    %4667 = vmatpush.msra.mxu0 %v2126
    %4668 = vmatpush.msra.mxu0 %v2125
    %4669 = vmatmul.f32.gmra.mxu0 %v212
    %v4670 = vpop.f32.mrf.mxu0
    %v4671 = vadd.f32 %v4651, %v4670
    %4672 = vdwg.mxu0
    %4673 = vmatpush.msra.mxu0 %v2156
    %4674 = vmatpush.msra.mxu0 %v2155
    %4675 = vmatpush.msra.mxu0 %v2154
    %4676 = vmatpush.msra.mxu0 %v2153
    %4677 = vmatpush.msra.mxu0 %v2152
    %4678 = vmatpush.msra.mxu0 %v2151
    %4679 = vmatpush.msra.mxu0 %v2150
    %4680 = vmatpush.msra.mxu0 %v2149
    %4681 = vmatpush.msra.mxu0 %v2148
    %4682 = vmatpush.msra.mxu0 %v2147
    %4683 = vmatpush.msra.mxu0 %v2146
    %4684 = vmatpush.msra.mxu0 %v2145
    %4685 = vmatpush.msra.mxu0 %v2144
    %4686 = vmatpush.msra.mxu0 %v2143
    %4687 = vmatpush.msra.mxu0 %v2142
    %4688 = vmatpush.msra.mxu0 %v2141
    %4689 = vmatmul.f32.gmra.mxu0 %v213
    %v4690 = vpop.f32.mrf.mxu0
    %v4691 = vadd.f32 %v4671, %v4690
    %4692 = vdwg.mxu0
    %4693 = vmatpush.msra.mxu0 %v2172
    %4694 = vmatpush.msra.mxu0 %v2171
    %4695 = vmatpush.msra.mxu0 %v2170
    %4696 = vmatpush.msra.mxu0 %v2169
    %4697 = vmatpush.msra.mxu0 %v2168
    %4698 = vmatpush.msra.mxu0 %v2167
    %4699 = vmatpush.msra.mxu0 %v2166
    %4700 = vmatpush.msra.mxu0 %v2165
    %4701 = vmatpush.msra.mxu0 %v2164
    %4702 = vmatpush.msra.mxu0 %v2163
    %4703 = vmatpush.msra.mxu0 %v2162
    %4704 = vmatpush.msra.mxu0 %v2161
    %4705 = vmatpush.msra.mxu0 %v2160
    %4706 = vmatpush.msra.mxu0 %v2159
    %4707 = vmatpush.msra.mxu0 %v2158
    %4708 = vmatpush.msra.mxu0 %v2157
    %4709 = vmatmul.f32.gmra.mxu0 %v214
    %v4710 = vpop.f32.mrf.mxu0
    %v4711 = vadd.f32 %v4691, %v4710
    %4712 = vdwg.mxu0
    %4713 = vmatpush.msra.mxu0 %v2188
    %4714 = vmatpush.msra.mxu0 %v2187
    %4715 = vmatpush.msra.mxu0 %v2186
    %4716 = vmatpush.msra.mxu0 %v2185
    %4717 = vmatpush.msra.mxu0 %v2184
    %4718 = vmatpush.msra.mxu0 %v2183
    %4719 = vmatpush.msra.mxu0 %v2182
    %4720 = vmatpush.msra.mxu0 %v2181
    %4721 = vmatpush.msra.mxu0 %v2180
    %4722 = vmatpush.msra.mxu0 %v2179
    %4723 = vmatpush.msra.mxu0 %v2178
    %4724 = vmatpush.msra.mxu0 %v2177
    %4725 = vmatpush.msra.mxu0 %v2176
    %4726 = vmatpush.msra.mxu0 %v2175
    %4727 = vmatpush.msra.mxu0 %v2174
    %4728 = vmatpush.msra.mxu0 %v2173
    %4729 = vmatmul.f32.gmra.mxu0 %v215
    %v4730 = vpop.f32.mrf.mxu0
    %v4731 = vadd.f32 %v4711, %v4730
    %4732 = vdwg.mxu0
    %4733 = vmatpush.msra.mxu0 %v2204
    %4734 = vmatpush.msra.mxu0 %v2203
    %4735 = vmatpush.msra.mxu0 %v2202
    %4736 = vmatpush.msra.mxu0 %v2201
    %4737 = vmatpush.msra.mxu0 %v2200
    %4738 = vmatpush.msra.mxu0 %v2199
    %4739 = vmatpush.msra.mxu0 %v2198
    %4740 = vmatpush.msra.mxu0 %v2197
    %4741 = vmatpush.msra.mxu0 %v2196
    %4742 = vmatpush.msra.mxu0 %v2195
    %4743 = vmatpush.msra.mxu0 %v2194
    %4744 = vmatpush.msra.mxu0 %v2193
    %4745 = vmatpush.msra.mxu0 %v2192
    %4746 = vmatpush.msra.mxu0 %v2191
    %4747 = vmatpush.msra.mxu0 %v2190
    %4748 = vmatpush.msra.mxu0 %v2189
    %4749 = vmatmul.f32.gmra.mxu0 %v216
    %v4750 = vpop.f32.mrf.mxu0
    %v4751 = vadd.f32 %v4731, %v4750
    %4752 = vdwg.mxu0
    %4753 = vmatpush.msra.mxu0 %v2220
    %4754 = vmatpush.msra.mxu0 %v2219
    %4755 = vmatpush.msra.mxu0 %v2218
    %4756 = vmatpush.msra.mxu0 %v2217
    %4757 = vmatpush.msra.mxu0 %v2216
    %4758 = vmatpush.msra.mxu0 %v2215
    %4759 = vmatpush.msra.mxu0 %v2214
    %4760 = vmatpush.msra.mxu0 %v2213
    %4761 = vmatpush.msra.mxu0 %v2212
    %4762 = vmatpush.msra.mxu0 %v2211
    %4763 = vmatpush.msra.mxu0 %v2210
    %4764 = vmatpush.msra.mxu0 %v2209
    %4765 = vmatpush.msra.mxu0 %v2208
    %4766 = vmatpush.msra.mxu0 %v2207
    %4767 = vmatpush.msra.mxu0 %v2206
    %4768 = vmatpush.msra.mxu0 %v2205
    %4769 = vmatmul.f32.gmra.mxu0 %v217
    %v4770 = vpop.f32.mrf.mxu0
    %v4771 = vadd.f32 %v4751, %v4770
    %4772 = vdwg.mxu0
    %4773 = vmatpush.msra.mxu0 %v2236
    %4774 = vmatpush.msra.mxu0 %v2235
    %4775 = vmatpush.msra.mxu0 %v2234
    %4776 = vmatpush.msra.mxu0 %v2233
    %4777 = vmatpush.msra.mxu0 %v2232
    %4778 = vmatpush.msra.mxu0 %v2231
    %4779 = vmatpush.msra.mxu0 %v2230
    %4780 = vmatpush.msra.mxu0 %v2229
    %4781 = vmatpush.msra.mxu0 %v2228
    %4782 = vmatpush.msra.mxu0 %v2227
    %4783 = vmatpush.msra.mxu0 %v2226
    %4784 = vmatpush.msra.mxu0 %v2225
    %4785 = vmatpush.msra.mxu0 %v2224
    %4786 = vmatpush.msra.mxu0 %v2223
    %4787 = vmatpush.msra.mxu0 %v2222
    %4788 = vmatpush.msra.mxu0 %v2221
    %4789 = vmatmul.f32.gmra.mxu0 %v218
    %v4790 = vpop.f32.mrf.mxu0
    %v4791 = vadd.f32 %v4771, %v4790
    %4792 = vdwg.mxu0
    %4793 = vmatpush.msra.mxu0 %v2252
    %4794 = vmatpush.msra.mxu0 %v2251
    %4795 = vmatpush.msra.mxu0 %v2250
    %4796 = vmatpush.msra.mxu0 %v2249
    %4797 = vmatpush.msra.mxu0 %v2248
    %4798 = vmatpush.msra.mxu0 %v2247
    %4799 = vmatpush.msra.mxu0 %v2246
    %4800 = vmatpush.msra.mxu0 %v2245
    %4801 = vmatpush.msra.mxu0 %v2244
    %4802 = vmatpush.msra.mxu0 %v2243
    %4803 = vmatpush.msra.mxu0 %v2242
    %4804 = vmatpush.msra.mxu0 %v2241
    %4805 = vmatpush.msra.mxu0 %v2240
    %4806 = vmatpush.msra.mxu0 %v2239
    %4807 = vmatpush.msra.mxu0 %v2238
    %4808 = vmatpush.msra.mxu0 %v2237
    %4809 = vmatmul.f32.gmra.mxu0 %v219
    %v4810 = vpop.f32.mrf.mxu0
    %v4811 = vadd.f32 %v4791, %v4810
    %4812 = vdwg.mxu0
    %4813 = vmatpush.msra.mxu0 %v2268
    %4814 = vmatpush.msra.mxu0 %v2267
    %4815 = vmatpush.msra.mxu0 %v2266
    %4816 = vmatpush.msra.mxu0 %v2265
    %4817 = vmatpush.msra.mxu0 %v2264
    %4818 = vmatpush.msra.mxu0 %v2263
    %4819 = vmatpush.msra.mxu0 %v2262
    %4820 = vmatpush.msra.mxu0 %v2261
    %4821 = vmatpush.msra.mxu0 %v2260
    %4822 = vmatpush.msra.mxu0 %v2259
    %4823 = vmatpush.msra.mxu0 %v2258
    %4824 = vmatpush.msra.mxu0 %v2257
    %4825 = vmatpush.msra.mxu0 %v2256
    %4826 = vmatpush.msra.mxu0 %v2255
    %4827 = vmatpush.msra.mxu0 %v2254
    %4828 = vmatpush.msra.mxu0 %v2253
    %4829 = vmatmul.f32.gmra.mxu0 %v220
    %v4830 = vpop.f32.mrf.mxu0
    %v4831 = vadd.f32 %v4811, %v4830
    %4832 = vdwg.mxu0
    %v4833 = vmax.f32 %v4831, 0.0
    %v4834 = vld [vmem:[#allocation8] sm:$0xff]
    %v4835 = vld [vmem:[#allocation8 + $0x8] sm:$0xff]
    %v4836 = vld [vmem:[#allocation8 + $0x10] sm:$0xff]
    %v4837 = vld [vmem:[#allocation8 + $0x18] sm:$0xff]
    %v4838 = vld [vmem:[#allocation8 + $0x20] sm:$0xff]
    %v4839 = vld [vmem:[#allocation8 + $0x28] sm:$0xff]
    %v4840 = vld [vmem:[#allocation8 + $0x30] sm:$0xff]
    %v4841 = vld [vmem:[#allocation8 + $0x38] sm:$0xff]
    %v4842 = vld [vmem:[#allocation8 + $0x40] sm:$0xff]
    %v4843 = vld [vmem:[#allocation8 + $0x48] sm:$0xff]
    %v4844 = vld [vmem:[#allocation8 + $0x50] sm:$0xff]
    %v4845 = vld [vmem:[#allocation8 + $0x58] sm:$0xff]
    %v4846 = vld [vmem:[#allocation8 + $0x60] sm:$0xff]
    %v4847 = vld [vmem:[#allocation8 + $0x68] sm:$0xff]
    %v4848 = vld [vmem:[#allocation8 + $0x70] sm:$0xff]
    %v4849 = vld [vmem:[#allocation8 + $0x78] sm:$0xff]
    %v4850 = vld [vmem:[#allocation10] sm:$0x1]
    %v4852 = vperm.slane %v4850, 0
    %4854 = vmatpush.msra.mxu0 %v4849
    %4855 = vmatpush.msra.mxu0 %v4848
    %4856 = vmatpush.msra.mxu0 %v4847
    %4857 = vmatpush.msra.mxu0 %v4846
    %4858 = vmatpush.msra.mxu0 %v4845
    %4859 = vmatpush.msra.mxu0 %v4844
    %4860 = vmatpush.msra.mxu0 %v4843
    %4861 = vmatpush.msra.mxu0 %v4842
    %4862 = vmatpush.msra.mxu0 %v4841
    %4863 = vmatpush.msra.mxu0 %v4840
    %4864 = vmatpush.msra.mxu0 %v4839
    %4865 = vmatpush.msra.mxu0 %v4838
    %4866 = vmatpush.msra.mxu0 %v4837
    %4867 = vmatpush.msra.mxu0 %v4836
    %4868 = vmatpush.msra.mxu0 %v4835
    %4869 = vmatpush.msra.mxu0 %v4834
    %4870 = vmatmul.f32.gmra.mxu0 %v4833
    %v4871 = vpop.f32.mrf.mxu0
    %v4872 = vadd.f32 %v4852, %v4871
    %4873 = vdwg.mxu0
    %4874 = vst [vmem:[#allocation11] sm:$0xff] %v4872
    // Predicated region
    $region42: #{tpu_custom_call.1} parent=1 // pred_check
      _
    $region43: #{tpu_custom_call.1} parent=1 // pred_check_branch
      %4876 = sbr.rel (0) target = $region45
    $region44: #{tpu_custom_call.1} parent=1 // pred_region
      %4878 = vsyncadd [#allocation4], 0
      %s4880 = sshll.u32 [#allocation11], 4
      %s4881 = int_to_ptr.vmem [resolvable:$true] %s4880
      %s4882 = sshll.u32 %s5, 4
      %s4883 = int_to_ptr.hbm [resolvable:$true] %s4882
      %4885 = dma.vmem_to_hbm [thread:$0]  %s4881, 128, %s4883, [#allocation4]
    $region45: #{tpu_custom_call.1} parent=1 // pred_fallthru
      _
    // Predicated region
    $region46: #{tpu_custom_call.1} parent=1 // pred_check
      _
    $region47: #{tpu_custom_call.1} parent=1 // pred_check_branch
      %4887 = sbr.rel (0) target = $region49
    $region48: #{tpu_custom_call.1} parent=1 // pred_region
      %4889 = dma.done [#allocation4], 128
    $region49: #{tpu_custom_call.1} parent=1 // pred_fallthru
      _
    %4890 = vsyncpa [#allocation3], 1
    %4891 = vsyncpa [#allocation6], 1
    %4892 = vsyncpa [#allocation9], 1
    %4893 = vsyncpa [#allocation4], 1

</llo_original>
